<compile_context>
chip_gen: v7x
topology: tpu7x:2x2x1
jax: 0.10.0
libtpu: 0.0.40
codegen_flags: <defaults>
</compile_context>

<pallas_src>
import functools

import jax
import jax.numpy as jnp
from jax import lax
from jax.experimental import pallas as pl
from jax.experimental.pallas import tpu as pltpu


def _ru(x, m):
    return (x + m - 1) // m * m


# ---------------------------------------------------------------------------
# Kernel 1: direct same-padding conv (per-tap MXU matmuls) + fused bias add
#           + fused per-channel sum / sum-of-squares for BatchNorm statistics.
# Grid: one step per batch image (stats accumulate across the grid).
# ---------------------------------------------------------------------------
def _conv_bias_stats_kernel(x_ref, w_ref, b_ref, y_ref, s_ref, q_ref, *,
                            H, W, KH, KW, mxu_dtype):
    @pl.when(pl.program_id(0) == 0)
    def _():
        s_ref[...] = jnp.zeros_like(s_ref)
        q_ref[...] = jnp.zeros_like(q_ref)

    x = x_ref[0]                                   # (Hp, Wp, Cin) halo-padded
    cin = x.shape[-1]
    cout = w_ref.shape[-1]

    acc = jnp.zeros((H * W, cout), jnp.float32)
    for tap in range(KH * KW):                     # unrolled: KH*KW is small
        dh, dw = tap // KW, tap % KW
        win = x[dh:dh + H, dw:dw + W, :].reshape(H * W, cin)
        acc += jnp.dot(win.astype(mxu_dtype),
                       w_ref[tap].astype(mxu_dtype),
                       preferred_element_type=jnp.float32)
    acc += b_ref[...]                              # (1, Cout) broadcast

    y_ref[0] = acc.astype(y_ref.dtype)
    # Fused BN statistics (biased, training-mode).
    s_ref[...] += jnp.sum(acc, axis=0, keepdims=True)
    q_ref[...] += jnp.sum(acc * acc, axis=0, keepdims=True)


# ---------------------------------------------------------------------------
# Kernel 2: fused BatchNorm scale/shift + ReLU (single elementwise pass).
# ---------------------------------------------------------------------------
def _bn_relu_kernel(y_ref, sc_ref, sh_ref, o_ref):
    o_ref[...] = jnp.maximum(y_ref[...] * sc_ref[...] + sh_ref[...],
                             0.0).astype(o_ref.dtype)


# ---------------------------------------------------------------------------
# ConvBlock forward.  Input/weights in PyTorch layouts (NCHW / OIHW converted
# to HWIO by the caller-side init below); output is NCHW.
# ---------------------------------------------------------------------------
def conv_block_forward(params, x_nchw, *, eps=1e-5, use_bf16_mxu=False):
    w, b = params['w'], params['b']                 # HWIO, (Cout,)
    gamma, beta = params['gamma'], params['beta']   # (Cout,), (Cout,)

    x = jnp.transpose(x_nchw, (0, 2, 3, 1))         # NCHW -> NHWC (lane = C)
    N, H, W, Cin = x.shape
    KH, KW, Cin2, Cout = w.shape
    assert Cin == Cin2

    # torch Conv2d(padding='same'), stride 1: extra pad (even kernels) goes after.
    pt, pb = (KH - 1) // 2, (KH - 1) - (KH - 1) // 2
    plft, prgt = (KW - 1) // 2, (KW - 1) - (KW - 1) // 2
    xp = jnp.pad(x, ((0, 0), (pt, pb), (plft, prgt), (0, 0)))
    Hp, Wp = H + pt + pb, W + plft + prgt

    w_taps = w.reshape(KH * KW, Cin, Cout)
    b2 = b.reshape(1, Cout).astype(jnp.float32)
    mxu_dtype = jnp.bfloat16 if use_bf16_mxu else jnp.float32

    y, s, q = pl.pallas_call(
        functools.partial(_conv_bias_stats_kernel, H=H, W=W, KH=KH, KW=KW,
                          mxu_dtype=mxu_dtype),
        out_shape=(jax.ShapeDtypeStruct((N, H * W, Cout), jnp.float32),
                   jax.ShapeDtypeStruct((1, Cout), jnp.float32),
                   jax.ShapeDtypeStruct((1, Cout), jnp.float32)),
        grid_spec=pltpu.PrefetchScalarGridSpec(
            num_scalar_prefetch=0,
            grid=(N,),
            in_specs=[
                pl.BlockSpec((1, Hp, Wp, Cin), lambda n: (n, 0, 0, 0)),
                pl.BlockSpec((KH * KW, Cin, Cout), lambda n: (0, 0, 0)),
                pl.BlockSpec((1, Cout), lambda n: (0, 0)),
            ],
            out_specs=(
                pl.BlockSpec((1, H * W, Cout), lambda n: (n, 0, 0)),
                pl.BlockSpec((1, Cout), lambda n: (0, 0)),
                pl.BlockSpec((1, Cout), lambda n: (0, 0)),
            ),
        ),
        compiler_params=pltpu.CompilerParams(
            dimension_semantics=("arbitrary",),      # stats accumulate across N
            vmem_limit_bytes=64 * 1024 * 1024),
    )(xp, w_taps, b2)

    # Tiny per-channel BN math in plain JAX (O(Cout) work).
    R = N * H * W
    mean = s[0] / R
    var = jnp.maximum(q[0] / R - mean * mean, 0.0)   # biased var (torch train mode)
    # TODO(synk): E[x^2]-E[x]^2 is cancellation-prone for very large R; fine here.
    scale = gamma * lax.rsqrt(var + eps)
    shift = beta - mean * scale

    # Fused BN apply + ReLU over the flattened (R, Cout) activation.
    y2 = y.reshape(R, Cout)
    tr = min(512, _ru(R, 8))
    Rp = _ru(R, tr)
    if Rp != R:
        y2 = jnp.pad(y2, ((0, Rp - R), (0, 0)))

    out = pl.pallas_call(
        _bn_relu_kernel,
        out_shape=jax.ShapeDtypeStruct((Rp, Cout), x.dtype),
        grid_spec=pltpu.PrefetchScalarGridSpec(
            num_scalar_prefetch=0,
            grid=(Rp // tr,),
            in_specs=[pl.BlockSpec((tr, Cout), lambda r: (r, 0)),
                      pl.BlockSpec((1, Cout), lambda r: (0, 0)),
                      pl.BlockSpec((1, Cout), lambda r: (0, 0))],
            out_specs=pl.BlockSpec((tr, Cout), lambda r: (r, 0)),
        ),
        compiler_params=pltpu.CompilerParams(
            dimension_semantics=("parallel",)),
    )(y2,
      scale.reshape(1, Cout).astype(jnp.float32),
      shift.reshape(1, Cout).astype(jnp.float32))

    out = out[:R].reshape(N, H, W, Cout)
    return jnp.transpose(out, (0, 3, 1, 2))          # NHWC -> NCHW


# ---------------------------------------------------------------------------
# Pure-JAX reference (no Pallas) for a cheap correctness check.
# ---------------------------------------------------------------------------
def _reference(params, x_nchw, eps=1e-5):
    w, b = params['w'], params['b']
    gamma, beta = params['gamma'], params['beta']
    x = jnp.transpose(x_nchw, (0, 2, 3, 1))
    KH, KW = w.shape[0], w.shape[1]
    pt, pb = (KH - 1) // 2, (KH - 1) - (KH - 1) // 2
    pleft, pright = (KW - 1) // 2, (KW - 1) - (KW - 1) // 2
    y = lax.conv_general_dilated(
        x, w, window_strides=(1, 1),
        padding=((pt, pb), (pleft, pright)),
        dimension_numbers=('NHWC', 'HWIO', 'NHWC')) + b
    mean = jnp.mean(y, axis=(0, 1, 2))
    var = jnp.mean((y - mean) ** 2, axis=(0, 1, 2))
    y = (y - mean) * lax.rsqrt(var + eps) * gamma + beta
    y = jnp.maximum(y, 0.0)
    return jnp.transpose(y, (0, 3, 1, 2))


if __name__ == "__main__":
    # Small shapes consistent with ConvBlock(in_channels=4, out_channels=32, k=3).
    N, Cin, H, W = 2, 4, 16, 16
    Cout, K = 32, 3

    key = jax.random.PRNGKey(0)
    kx, kw, kb = jax.random.split(key, 3)
    x = jax.random.normal(kx, (N, Cin, H, W), jnp.float32)

    bound = 1.0 / (Cin * K * K) ** 0.5              # torch-like uniform bounds
    params = dict(
        w=jax.random.uniform(kw, (K, K, Cin, Cout), jnp.float32, -bound, bound),
        b=jax.random.uniform(kb, (Cout,), jnp.float32, -bound, bound),
        gamma=jnp.ones((Cout,), jnp.float32),        # torch BatchNorm2d defaults
        beta=jnp.zeros((Cout,), jnp.float32),
    )

    fwd = jax.jit(conv_block_forward)
    y = jax.block_until_ready(fwd(params, x))

    assert y.shape == (N, Cout, H, W), y.shape
    assert bool(jnp.all(jnp.isfinite(y)))

    y_ref = _reference(params, x)
    err = float(jnp.max(jnp.abs(y - y_ref)))
    assert err < 2e-3, f"max abs err vs reference = {err}"

    print("KERNEL_OK")
</pallas_src>

<mosaic_0001>
module attributes {stable_mosaic.version = 11 : i64} {
  func.func @_conv_bias_stats_kernel(%arg0: i32, %arg1: memref<1x18x18x4xf32, #tpu.memory_space<vmem>>, %arg2: memref<9x4x32xf32, #tpu.memory_space<vmem>>, %arg3: memref<1x32xf32, #tpu.memory_space<vmem>>, %arg4: memref<1x256x32xf32, #tpu.memory_space<vmem>>, %arg5: memref<1x32xf32, #tpu.memory_space<vmem>>, %arg6: memref<1x32xf32, #tpu.memory_space<vmem>>) attributes {dimension_semantics = [#tpu.dimension_semantics<arbitrary>], iteration_bounds = array<i64: 2>, scalar_prefetch = 0 : i64, scratch_operands = 0 : i64, tpu.core_type = #tpu.core_type<tc>, window_params = [{transform_indices = @transform_0, window_bounds = array<i64: 1, 18, 18, 4>}, {pipeline_mode = #tpu.pipeline_mode<synchronous>, transform_indices = @transform_1, window_bounds = array<i64: 9, 4, 32>}, {pipeline_mode = #tpu.pipeline_mode<synchronous>, transform_indices = @transform_2, window_bounds = array<i64: 1, 32>}, {transform_indices = @transform_3, window_bounds = array<i64: 1, 256, 32>}, {pipeline_mode = #tpu.pipeline_mode<synchronous>, transform_indices = @transform_4, window_bounds = array<i64: 1, 32>}, {pipeline_mode = #tpu.pipeline_mode<synchronous>, transform_indices = @transform_5, window_bounds = array<i64: 1, 32>}]} {
    %c0_i32 = arith.constant 0 : i32
    %0 = arith.cmpi eq, %arg0, %c0_i32 : i32
    %1 = arith.extui %0 : i1 to i32
    %c0_i32_0 = arith.constant 0 : i32
    %2 = arith.cmpi ne, %1, %c0_i32_0 : i32
    scf.if %2 {
      %cst_47 = arith.constant 0.000000e+00 : f32
      %77 = vector.broadcast %cst_47 : f32 to vector<1x32xf32>
      %c0_48 = arith.constant 0 : index
      %c0_49 = arith.constant 0 : index
      %78 = vector.load %arg5[%c0_48, %c0_49] : memref<1x32xf32, #tpu.memory_space<vmem>>, vector<1x32xf32>
      tpu.vector_store %arg5[%c0_48, %c0_49], %77 {strides = array<i32>} : memref<1x32xf32, #tpu.memory_space<vmem>>, vector<1x32xf32>,
      %cst_50 = arith.constant 0.000000e+00 : f32
      %79 = vector.broadcast %cst_50 : f32 to vector<1x32xf32>
      %c0_51 = arith.constant 0 : index
      %c0_52 = arith.constant 0 : index
      %80 = vector.load %arg6[%c0_51, %c0_52] : memref<1x32xf32, #tpu.memory_space<vmem>>, vector<1x32xf32>
      tpu.vector_store %arg6[%c0_51, %c0_52], %79 {strides = array<i32>} : memref<1x32xf32, #tpu.memory_space<vmem>>, vector<1x32xf32>,
    } else {
    }
    %c0 = arith.constant 0 : index
    %c0_1 = arith.constant 0 : index
    %c0_2 = arith.constant 0 : index
    %c0_3 = arith.constant 0 : index
    %3 = vector.load %arg1[%c0, %c0_1, %c0_2, %c0_3] : memref<1x18x18x4xf32, #tpu.memory_space<vmem>>, vector<1x18x18x4xf32>
    %4 = vector.shape_cast %3 : vector<1x18x18x4xf32> to vector<18x18x4xf32>
    %cst = arith.constant 0.000000e+00 : f32
    %5 = vector.broadcast %cst : f32 to vector<256x32xf32>
    %6 = vector.extract_strided_slice %4 {offsets = [0, 0, 0], sizes = [16, 16, 4], strides = [1, 1, 1]} : vector<18x18x4xf32> to vector<16x16x4xf32>
    %7 = vector.shape_cast %6 : vector<16x16x4xf32> to vector<256x4xf32>
    %c0_4 = arith.constant 0 : index
    %c0_5 = arith.constant 0 : index
    %c0_6 = arith.constant 0 : index
    %8 = vector.load %arg2[%c0_4, %c0_5, %c0_6] : memref<9x4x32xf32, #tpu.memory_space<vmem>>, vector<1x4x32xf32>
    %9 = vector.shape_cast %8 : vector<1x4x32xf32> to vector<4x32xf32>
    %cst_7 = arith.constant dense<0.000000e+00> : vector<256x32xf32>
    %10 = tpu.matmul %7, %9, %cst_7 {dimension_numbers = #tpu.dot_dimension_numbers<[1], [0], [0], [1], [0, 0, 1, 1], [], []>} : vector<256x4xf32>, vector<4x32xf32>, vector<256x32xf32> -> vector<256x32xf32>
    %11 = arith.addf %5, %10 : vector<256x32xf32>
    %12 = vector.extract_strided_slice %4 {offsets = [0, 1, 0], sizes = [16, 16, 4], strides = [1, 1, 1]} : vector<18x18x4xf32> to vector<16x16x4xf32>
    %13 = vector.shape_cast %12 : vector<16x16x4xf32> to vector<256x4xf32>
    %c1 = arith.constant 1 : index
    %c0_8 = arith.constant 0 : index
    %c0_9 = arith.constant 0 : index
    %14 = vector.load %arg2[%c1, %c0_8, %c0_9] : memref<9x4x32xf32, #tpu.memory_space<vmem>>, vector<1x4x32xf32>
    %15 = vector.shape_cast %14 : vector<1x4x32xf32> to vector<4x32xf32>
    %cst_10 = arith.constant dense<0.000000e+00> : vector<256x32xf32>
    %16 = tpu.matmul %13, %15, %cst_10 {dimension_numbers = #tpu.dot_dimension_numbers<[1], [0], [0], [1], [0, 0, 1, 1], [], []>} : vector<256x4xf32>, vector<4x32xf32>, vector<256x32xf32> -> vector<256x32xf32>
    %17 = arith.addf %11, %16 : vector<256x32xf32>
    %18 = vector.extract_strided_slice %4 {offsets = [0, 2, 0], sizes = [16, 16, 4], strides = [1, 1, 1]} : vector<18x18x4xf32> to vector<16x16x4xf32>
    %19 = vector.shape_cast %18 : vector<16x16x4xf32> to vector<256x4xf32>
    %c2 = arith.constant 2 : index
    %c0_11 = arith.constant 0 : index
    %c0_12 = arith.constant 0 : index
    %20 = vector.load %arg2[%c2, %c0_11, %c0_12] : memref<9x4x32xf32, #tpu.memory_space<vmem>>, vector<1x4x32xf32>
    %21 = vector.shape_cast %20 : vector<1x4x32xf32> to vector<4x32xf32>
    %cst_13 = arith.constant dense<0.000000e+00> : vector<256x32xf32>
    %22 = tpu.matmul %19, %21, %cst_13 {dimension_numbers = #tpu.dot_dimension_numbers<[1], [0], [0], [1], [0, 0, 1, 1], [], []>} : vector<256x4xf32>, vector<4x32xf32>, vector<256x32xf32> -> vector<256x32xf32>
    %23 = arith.addf %17, %22 : vector<256x32xf32>
    %24 = vector.extract_strided_slice %4 {offsets = [1, 0, 0], sizes = [16, 16, 4], strides = [1, 1, 1]} : vector<18x18x4xf32> to vector<16x16x4xf32>
    %25 = vector.shape_cast %24 : vector<16x16x4xf32> to vector<256x4xf32>
    %c3 = arith.constant 3 : index
    %c0_14 = arith.constant 0 : index
    %c0_15 = arith.constant 0 : index
    %26 = vector.load %arg2[%c3, %c0_14, %c0_15] : memref<9x4x32xf32, #tpu.memory_space<vmem>>, vector<1x4x32xf32>
    %27 = vector.shape_cast %26 : vector<1x4x32xf32> to vector<4x32xf32>
    %cst_16 = arith.constant dense<0.000000e+00> : vector<256x32xf32>
    %28 = tpu.matmul %25, %27, %cst_16 {dimension_numbers = #tpu.dot_dimension_numbers<[1], [0], [0], [1], [0, 0, 1, 1], [], []>} : vector<256x4xf32>, vector<4x32xf32>, vector<256x32xf32> -> vector<256x32xf32>
    %29 = arith.addf %23, %28 : vector<256x32xf32>
    %30 = vector.extract_strided_slice %4 {offsets = [1, 1, 0], sizes = [16, 16, 4], strides = [1, 1, 1]} : vector<18x18x4xf32> to vector<16x16x4xf32>
    %31 = vector.shape_cast %30 : vector<16x16x4xf32> to vector<256x4xf32>
    %c4 = arith.constant 4 : index
    %c0_17 = arith.constant 0 : index
    %c0_18 = arith.constant 0 : index
    %32 = vector.load %arg2[%c4, %c0_17, %c0_18] : memref<9x4x32xf32, #tpu.memory_space<vmem>>, vector<1x4x32xf32>
    %33 = vector.shape_cast %32 : vector<1x4x32xf32> to vector<4x32xf32>
    %cst_19 = arith.constant dense<0.000000e+00> : vector<256x32xf32>
    %34 = tpu.matmul %31, %33, %cst_19 {dimension_numbers = #tpu.dot_dimension_numbers<[1], [0], [0], [1], [0, 0, 1, 1], [], []>} : vector<256x4xf32>, vector<4x32xf32>, vector<256x32xf32> -> vector<256x32xf32>
    %35 = arith.addf %29, %34 : vector<256x32xf32>
    %36 = vector.extract_strided_slice %4 {offsets = [1, 2, 0], sizes = [16, 16, 4], strides = [1, 1, 1]} : vector<18x18x4xf32> to vector<16x16x4xf32>
    %37 = vector.shape_cast %36 : vector<16x16x4xf32> to vector<256x4xf32>
    %c5 = arith.constant 5 : index
    %c0_20 = arith.constant 0 : index
    %c0_21 = arith.constant 0 : index
    %38 = vector.load %arg2[%c5, %c0_20, %c0_21] : memref<9x4x32xf32, #tpu.memory_space<vmem>>, vector<1x4x32xf32>
    %39 = vector.shape_cast %38 : vector<1x4x32xf32> to vector<4x32xf32>
    %cst_22 = arith.constant dense<0.000000e+00> : vector<256x32xf32>
    %40 = tpu.matmul %37, %39, %cst_22 {dimension_numbers = #tpu.dot_dimension_numbers<[1], [0], [0], [1], [0, 0, 1, 1], [], []>} : vector<256x4xf32>, vector<4x32xf32>, vector<256x32xf32> -> vector<256x32xf32>
    %41 = arith.addf %35, %40 : vector<256x32xf32>
    %42 = vector.extract_strided_slice %4 {offsets = [2, 0, 0], sizes = [16, 16, 4], strides = [1, 1, 1]} : vector<18x18x4xf32> to vector<16x16x4xf32>
    %43 = vector.shape_cast %42 : vector<16x16x4xf32> to vector<256x4xf32>
    %c6 = arith.constant 6 : index
    %c0_23 = arith.constant 0 : index
    %c0_24 = arith.constant 0 : index
    %44 = vector.load %arg2[%c6, %c0_23, %c0_24] : memref<9x4x32xf32, #tpu.memory_space<vmem>>, vector<1x4x32xf32>
    %45 = vector.shape_cast %44 : vector<1x4x32xf32> to vector<4x32xf32>
    %cst_25 = arith.constant dense<0.000000e+00> : vector<256x32xf32>
    %46 = tpu.matmul %43, %45, %cst_25 {dimension_numbers = #tpu.dot_dimension_numbers<[1], [0], [0], [1], [0, 0, 1, 1], [], []>} : vector<256x4xf32>, vector<4x32xf32>, vector<256x32xf32> -> vector<256x32xf32>
    %47 = arith.addf %41, %46 : vector<256x32xf32>
    %48 = vector.extract_strided_slice %4 {offsets = [2, 1, 0], sizes = [16, 16, 4], strides = [1, 1, 1]} : vector<18x18x4xf32> to vector<16x16x4xf32>
    %49 = vector.shape_cast %48 : vector<16x16x4xf32> to vector<256x4xf32>
    %c7 = arith.constant 7 : index
    %c0_26 = arith.constant 0 : index
    %c0_27 = arith.constant 0 : index
    %50 = vector.load %arg2[%c7, %c0_26, %c0_27] : memref<9x4x32xf32, #tpu.memory_space<vmem>>, vector<1x4x32xf32>
    %51 = vector.shape_cast %50 : vector<1x4x32xf32> to vector<4x32xf32>
    %cst_28 = arith.constant dense<0.000000e+00> : vector<256x32xf32>
    %52 = tpu.matmul %49, %51, %cst_28 {dimension_numbers = #tpu.dot_dimension_numbers<[1], [0], [0], [1], [0, 0, 1, 1], [], []>} : vector<256x4xf32>, vector<4x32xf32>, vector<256x32xf32> -> vector<256x32xf32>
    %53 = arith.addf %47, %52 : vector<256x32xf32>
    %54 = vector.extract_strided_slice %4 {offsets = [2, 2, 0], sizes = [16, 16, 4], strides = [1, 1, 1]} : vector<18x18x4xf32> to vector<16x16x4xf32>
    %55 = vector.shape_cast %54 : vector<16x16x4xf32> to vector<256x4xf32>
    %c8 = arith.constant 8 : index
    %c0_29 = arith.constant 0 : index
    %c0_30 = arith.constant 0 : index
    %56 = vector.load %arg2[%c8, %c0_29, %c0_30] : memref<9x4x32xf32, #tpu.memory_space<vmem>>, vector<1x4x32xf32>
    %57 = vector.shape_cast %56 : vector<1x4x32xf32> to vector<4x32xf32>
    %cst_31 = arith.constant dense<0.000000e+00> : vector<256x32xf32>
    %58 = tpu.matmul %55, %57, %cst_31 {dimension_numbers = #tpu.dot_dimension_numbers<[1], [0], [0], [1], [0, 0, 1, 1], [], []>} : vector<256x4xf32>, vector<4x32xf32>, vector<256x32xf32> -> vector<256x32xf32>
    %59 = arith.addf %53, %58 : vector<256x32xf32>
    %c0_32 = arith.constant 0 : index
    %c0_33 = arith.constant 0 : index
    %60 = vector.load %arg3[%c0_32, %c0_33] : memref<1x32xf32, #tpu.memory_space<vmem>>, vector<1x32xf32>
    %61 = vector.broadcast %60 : vector<1x32xf32> to vector<256x32xf32>
    %62 = arith.addf %59, %61 : vector<256x32xf32>
    %c0_34 = arith.constant 0 : index
    %c0_35 = arith.constant 0 : index
    %c0_36 = arith.constant 0 : index
    %63 = vector.load %arg4[%c0_34, %c0_35, %c0_36] : memref<1x256x32xf32, #tpu.memory_space<vmem>>, vector<1x256x32xf32>
    %64 = vector.shape_cast %63 : vector<1x256x32xf32> to vector<256x32xf32>
    %65 = vector.shape_cast %62 : vector<256x32xf32> to vector<1x256x32xf32>
    tpu.vector_store %arg4[%c0_34, %c0_35, %c0_36], %65 {strides = array<i32>} : memref<1x256x32xf32, #tpu.memory_space<vmem>>, vector<1x256x32xf32>,
    %c0_37 = arith.constant 0 : index
    %c0_38 = arith.constant 0 : index
    %66 = vector.load %arg5[%c0_37, %c0_38] : memref<1x32xf32, #tpu.memory_space<vmem>>, vector<1x32xf32>
    %cst_39 = arith.constant dense<0.000000e+00> : vector<32xf32>
    %67 = vector.multi_reduction <add>, %62, %cst_39 [0] : vector<256x32xf32> to vector<32xf32>
    %68 = vector.shape_cast %67 : vector<32xf32> to vector<1x32xf32>
    %69 = arith.addf %66, %68 : vector<1x32xf32>
    %c0_40 = arith.constant 0 : index
    %c0_41 = arith.constant 0 : index
    %70 = vector.load %arg5[%c0_40, %c0_41] : memref<1x32xf32, #tpu.memory_space<vmem>>, vector<1x32xf32>
    tpu.vector_store %arg5[%c0_40, %c0_41], %69 {strides = array<i32>} : memref<1x32xf32, #tpu.memory_space<vmem>>, vector<1x32xf32>,
    %c0_42 = arith.constant 0 : index
    %c0_43 = arith.constant 0 : index
    %71 = vector.load %arg6[%c0_42, %c0_43] : memref<1x32xf32, #tpu.memory_space<vmem>>, vector<1x32xf32>
    %72 = arith.mulf %62, %62 : vector<256x32xf32>
    %cst_44 = arith.constant dense<0.000000e+00> : vector<32xf32>
    %73 = vector.multi_reduction <add>, %72, %cst_44 [0] : vector<256x32xf32> to vector<32xf32>
    %74 = vector.shape_cast %73 : vector<32xf32> to vector<1x32xf32>
    %75 = arith.addf %71, %74 : vector<1x32xf32>
    %c0_45 = arith.constant 0 : index
    %c0_46 = arith.constant 0 : index
    %76 = vector.load %arg6[%c0_45, %c0_46] : memref<1x32xf32, #tpu.memory_space<vmem>>, vector<1x32xf32>
    tpu.vector_store %arg6[%c0_45, %c0_46], %75 {strides = array<i32>} : memref<1x32xf32, #tpu.memory_space<vmem>>, vector<1x32xf32>,
    return
  }
  func.func @transform_0(%arg0: i32) -> (i32, i32, i32, i32) {
    %c0_i32 = arith.constant 0 : i32
    %c0_i32_0 = arith.constant 0 : i32
    %c0_i32_1 = arith.constant 0 : i32
    %c0_i32_2 = arith.constant 0 : i32
    return %arg0, %c0_i32, %c0_i32_0, %c0_i32_1 : i32, i32, i32, i32
  }
  func.func @transform_1(%arg0: i32) -> (i32, i32, i32) {
    %c0_i32 = arith.constant 0 : i32
    %c0_i32_0 = arith.constant 0 : i32
    %c0_i32_1 = arith.constant 0 : i32
    %c0_i32_2 = arith.constant 0 : i32
    return %c0_i32, %c0_i32_0, %c0_i32_1 : i32, i32, i32
  }
  func.func @transform_2(%arg0: i32) -> (i32, i32) {
    %c0_i32 = arith.constant 0 : i32
    %c0_i32_0 = arith.constant 0 : i32
    %c0_i32_1 = arith.constant 0 : i32
    return %c0_i32, %c0_i32_0 : i32, i32
  }
  func.func @transform_3(%arg0: i32) -> (i32, i32, i32) {
    %c0_i32 = arith.constant 0 : i32
    %c0_i32_0 = arith.constant 0 : i32
    %c0_i32_1 = arith.constant 0 : i32
    return %arg0, %c0_i32, %c0_i32_0 : i32, i32, i32
  }
  func.func @transform_4(%arg0: i32) -> (i32, i32) {
    %c0_i32 = arith.constant 0 : i32
    %c0_i32_0 = arith.constant 0 : i32
    %c0_i32_1 = arith.constant 0 : i32
    return %c0_i32, %c0_i32_0 : i32, i32
  }
  func.func @transform_5(%arg0: i32) -> (i32, i32) {
    %c0_i32 = arith.constant 0 : i32
    %c0_i32_0 = arith.constant 0 : i32
    %c0_i32_1 = arith.constant 0 : i32
    return %c0_i32, %c0_i32_0 : i32, i32
  }
}

module attributes {stable_mosaic.version = 11 : i64} {
  func.func @_bn_relu_kernel(%arg0: i32, %arg1: memref<512x32xf32, #tpu.memory_space<vmem>>, %arg2: memref<1x32xf32, #tpu.memory_space<vmem>>, %arg3: memref<1x32xf32, #tpu.memory_space<vmem>>, %arg4: memref<512x32xf32, #tpu.memory_space<vmem>>) attributes {dimension_semantics = [#tpu.dimension_semantics<parallel>], iteration_bounds = array<i64: 1>, scalar_prefetch = 0 : i64, scratch_operands = 0 : i64, tpu.core_type = #tpu.core_type<tc>, window_params = [{transform_indices = @transform_0, window_bounds = array<i64: 512, 32>}, {pipeline_mode = #tpu.pipeline_mode<synchronous>, transform_indices = @transform_1, window_bounds = array<i64: 1, 32>}, {pipeline_mode = #tpu.pipeline_mode<synchronous>, transform_indices = @transform_2, window_bounds = array<i64: 1, 32>}, {transform_indices = @transform_3, window_bounds = array<i64: 512, 32>}]} {
    %c0 = arith.constant 0 : index
    %c0_0 = arith.constant 0 : index
    %0 = vector.load %arg1[%c0, %c0_0] : memref<512x32xf32, #tpu.memory_space<vmem>>, vector<512x32xf32>
    %c0_1 = arith.constant 0 : index
    %c0_2 = arith.constant 0 : index
    %1 = vector.load %arg2[%c0_1, %c0_2] : memref<1x32xf32, #tpu.memory_space<vmem>>, vector<1x32xf32>
    %2 = vector.broadcast %1 : vector<1x32xf32> to vector<512x32xf32>
    %3 = arith.mulf %0, %2 : vector<512x32xf32>
    %c0_3 = arith.constant 0 : index
    %c0_4 = arith.constant 0 : index
    %4 = vector.load %arg3[%c0_3, %c0_4] : memref<1x32xf32, #tpu.memory_space<vmem>>, vector<1x32xf32>
    %5 = vector.broadcast %4 : vector<1x32xf32> to vector<512x32xf32>
    %6 = arith.addf %3, %5 : vector<512x32xf32>
    %cst = arith.constant 0.000000e+00 : f32
    %7 = vector.broadcast %cst : f32 to vector<512x32xf32>
    %8 = arith.maximumf %6, %7 : vector<512x32xf32>
    %c0_5 = arith.constant 0 : index
    %c0_6 = arith.constant 0 : index
    %9 = vector.load %arg4[%c0_5, %c0_6] : memref<512x32xf32, #tpu.memory_space<vmem>>, vector<512x32xf32>
    tpu.vector_store %arg4[%c0_5, %c0_6], %8 {strides = array<i32>} : memref<512x32xf32, #tpu.memory_space<vmem>>, vector<512x32xf32>,
    return
  }
  func.func @transform_0(%arg0: i32) -> (i32, i32) {
    %c0_i32 = arith.constant 0 : i32
    %c0_i32_0 = arith.constant 0 : i32
    return %arg0, %c0_i32 : i32, i32
  }
  func.func @transform_1(%arg0: i32) -> (i32, i32) {
    %c0_i32 = arith.constant 0 : i32
    %c0_i32_0 = arith.constant 0 : i32
    %c0_i32_1 = arith.constant 0 : i32
    return %c0_i32, %c0_i32_0 : i32, i32
  }
  func.func @transform_2(%arg0: i32) -> (i32, i32) {
    %c0_i32 = arith.constant 0 : i32
    %c0_i32_0 = arith.constant 0 : i32
    %c0_i32_1 = arith.constant 0 : i32
    return %c0_i32, %c0_i32_0 : i32, i32
  }
  func.func @transform_3(%arg0: i32) -> (i32, i32) {
    %c0_i32 = arith.constant 0 : i32
    %c0_i32_0 = arith.constant 0 : i32
    return %arg0, %c0_i32 : i32, i32
  }
}

</mosaic_0001>

<llo_original>
// kernel: conv_block_forward.3
$region0: #{conv_block_forward.3}
  #allocation0 [shape = 'u32[]', space=smem, size = 0x4, offset = 0x4, fixed_abs, tag = 'smem constant byte address 0x4 - core index']
  #allocation1 [shape = 'u32[144,128]{1,0:T(1,128)}', space=vmem, size = 0x12000, scoped, tag = 'internal scratch']
  %s0 = inlined_call_operand.hbm [shape: f32[512,32], index: 0, kind: input, shape index: {}]
  %s1 = inlined_call_operand.vmem [shape: f32[1,32], index: 1, kind: input, shape index: {}]
  %s2 = inlined_call_operand.vmem [shape: f32[1,32], index: 2, kind: input, shape index: {}]
  %s3 = inlined_call_operand.hbm [shape: f32[512,32], index: 3, kind: output, shape index: {}]
  %s4 = sld [smem:[#allocation0]]
  $region26: #{conv_block_forward.3} parent=0
    _
  %s6 = ssub.s32 1, %s4
  %s7 = scalar_select 0, %s6, %s4
  $region1: #{conv_block_forward.3} parent=0
    #allocation2 [shape = 'u8[262144]{0}', space=vmem, size = 0x40000, scoped, tag = 'input window, operand 0, single buffered']
    #allocation3 [shape = 's32[1]{0}', space=sflag, size = 0x4, scoped, tag = 'scoped memory for conv_block_forward.3']
    #allocation4 [shape = 's32[1]{0}', space=sflag, size = 0x4, scoped, tag = 'scoped memory for conv_block_forward.3']
    #allocation5 [shape = 'u8[262144]{0}', space=vmem, size = 0x40000, scoped, tag = 'output window, operand 0, single buffered']
    %8 = vsyncpa [#allocation3], 0
    %9 = vsyncpa [#allocation4], 0
    // Predicated region
    $region2: #{conv_block_forward.3} parent=1 // pred_check
      _
    $region3: #{conv_block_forward.3} parent=1 // pred_check_branch
      %11 = sbr.rel (0) target = $region5
    $region4: #{conv_block_forward.3} parent=1 // pred_region
      %s13 = ssub.s32 8192, 8192
      %14 = vsyncadd [#allocation3], %s13
      %s15 = sshll.u32 [#allocation2], 4
      %s16 = int_to_ptr.vmem [resolvable:$true] %s15
      %21 = dma.hbm_to_vmem [thread:$0]  %s0, 8192, %s16, [#allocation3], 128, 128, 8
    $region5: #{conv_block_forward.3} parent=1 // pred_fallthru
      _
    // Predicated region
    $region6: #{conv_block_forward.3} parent=1 // pred_check
      _
    $region7: #{conv_block_forward.3} parent=1 // pred_check_branch
      %23 = sbr.rel (0) target = $region9
    $region8: #{conv_block_forward.3} parent=1 // pred_region
      _
    $region9: #{conv_block_forward.3} parent=1 // pred_fallthru
      _
    // Predicated region
    $region10: #{conv_block_forward.3} parent=1 // pred_check
      _
    $region11: #{conv_block_forward.3} parent=1 // pred_check_branch
      %25 = sbr.rel (0) target = $region13
    $region12: #{conv_block_forward.3} parent=1 // pred_region
      _
    $region13: #{conv_block_forward.3} parent=1 // pred_fallthru
      _
    // Predicated region
    $region14: #{conv_block_forward.3} parent=1 // pred_check
      _
    $region15: #{conv_block_forward.3} parent=1 // pred_check_branch
      %27 = sbr.rel (0) target = $region17
    $region16: #{conv_block_forward.3} parent=1 // pred_region
      %28 = dma.done [#allocation3], 8192
    $region17: #{conv_block_forward.3} parent=1 // pred_fallthru
      _
    %v29 = vld [vmem:[#allocation2] sm:$0xff]
    %v30 = vld [vmem:[#allocation2 + $0x8] sm:$0xff]
    %v31 = vld [vmem:[#allocation2 + $0x10] sm:$0xff]
    %v32 = vld [vmem:[#allocation2 + $0x18] sm:$0xff]
    %v33 = vld [vmem:[#allocation2 + $0x20] sm:$0xff]
    %v34 = vld [vmem:[#allocation2 + $0x28] sm:$0xff]
    %v35 = vld [vmem:[#allocation2 + $0x30] sm:$0xff]
    %v36 = vld [vmem:[#allocation2 + $0x38] sm:$0xff]
    %v37 = vld [vmem:[#allocation2 + $0x40] sm:$0xff]
    %v38 = vld [vmem:[#allocation2 + $0x48] sm:$0xff]
    %v39 = vld [vmem:[#allocation2 + $0x50] sm:$0xff]
    %v40 = vld [vmem:[#allocation2 + $0x58] sm:$0xff]
    %v41 = vld [vmem:[#allocation2 + $0x60] sm:$0xff]
    %v42 = vld [vmem:[#allocation2 + $0x68] sm:$0xff]
    %v43 = vld [vmem:[#allocation2 + $0x70] sm:$0xff]
    %v44 = vld [vmem:[#allocation2 + $0x78] sm:$0xff]
    %v45 = vld [vmem:[#allocation2 + $0x80] sm:$0xff]
    %v46 = vld [vmem:[#allocation2 + $0x88] sm:$0xff]
    %v47 = vld [vmem:[#allocation2 + $0x90] sm:$0xff]
    %v48 = vld [vmem:[#allocation2 + $0x98] sm:$0xff]
    %v49 = vld [vmem:[#allocation2 + $0xa0] sm:$0xff]
    %v50 = vld [vmem:[#allocation2 + $0xa8] sm:$0xff]
    %v51 = vld [vmem:[#allocation2 + $0xb0] sm:$0xff]
    %v52 = vld [vmem:[#allocation2 + $0xb8] sm:$0xff]
    %v53 = vld [vmem:[#allocation2 + $0xc0] sm:$0xff]
    %v54 = vld [vmem:[#allocation2 + $0xc8] sm:$0xff]
    %v55 = vld [vmem:[#allocation2 + $0xd0] sm:$0xff]
    %v56 = vld [vmem:[#allocation2 + $0xd8] sm:$0xff]
    %v57 = vld [vmem:[#allocation2 + $0xe0] sm:$0xff]
    %v58 = vld [vmem:[#allocation2 + $0xe8] sm:$0xff]
    %v59 = vld [vmem:[#allocation2 + $0xf0] sm:$0xff]
    %v60 = vld [vmem:[#allocation2 + $0xf8] sm:$0xff]
    %v61 = vld [vmem:[#allocation2 + $0x100] sm:$0xff]
    %v62 = vld [vmem:[#allocation2 + $0x108] sm:$0xff]
    %v63 = vld [vmem:[#allocation2 + $0x110] sm:$0xff]
    %v64 = vld [vmem:[#allocation2 + $0x118] sm:$0xff]
    %v65 = vld [vmem:[#allocation2 + $0x120] sm:$0xff]
    %v66 = vld [vmem:[#allocation2 + $0x128] sm:$0xff]
    %v67 = vld [vmem:[#allocation2 + $0x130] sm:$0xff]
    %v68 = vld [vmem:[#allocation2 + $0x138] sm:$0xff]
    %v69 = vld [vmem:[#allocation2 + $0x140] sm:$0xff]
    %v70 = vld [vmem:[#allocation2 + $0x148] sm:$0xff]
    %v71 = vld [vmem:[#allocation2 + $0x150] sm:$0xff]
    %v72 = vld [vmem:[#allocation2 + $0x158] sm:$0xff]
    %v73 = vld [vmem:[#allocation2 + $0x160] sm:$0xff]
    %v74 = vld [vmem:[#allocation2 + $0x168] sm:$0xff]
    %v75 = vld [vmem:[#allocation2 + $0x170] sm:$0xff]
    %v76 = vld [vmem:[#allocation2 + $0x178] sm:$0xff]
    %v77 = vld [vmem:[#allocation2 + $0x180] sm:$0xff]
    %v78 = vld [vmem:[#allocation2 + $0x188] sm:$0xff]
    %v79 = vld [vmem:[#allocation2 + $0x190] sm:$0xff]
    %v80 = vld [vmem:[#allocation2 + $0x198] sm:$0xff]
    %v81 = vld [vmem:[#allocation2 + $0x1a0] sm:$0xff]
    %v82 = vld [vmem:[#allocation2 + $0x1a8] sm:$0xff]
    %v83 = vld [vmem:[#allocation2 + $0x1b0] sm:$0xff]
    %v84 = vld [vmem:[#allocation2 + $0x1b8] sm:$0xff]
    %v85 = vld [vmem:[#allocation2 + $0x1c0] sm:$0xff]
    %v86 = vld [vmem:[#allocation2 + $0x1c8] sm:$0xff]
    %v87 = vld [vmem:[#allocation2 + $0x1d0] sm:$0xff]
    %v88 = vld [vmem:[#allocation2 + $0x1d8] sm:$0xff]
    %v89 = vld [vmem:[#allocation2 + $0x1e0] sm:$0xff]
    %v90 = vld [vmem:[#allocation2 + $0x1e8] sm:$0xff]
    %v91 = vld [vmem:[#allocation2 + $0x1f0] sm:$0xff]
    %v92 = vld [vmem:[#allocation2 + $0x1f8] sm:$0xff]
    %v93 = vld [vmem:[%s1] sm:$0x1]
    %v95 = vlaneseq
    %v96 = vshrl.u32 %v95, 7
    %v97 = vsub.s32 0, %v96
    %v98 = vrot.slane %v93, %v97
    %v100 = vmul.f32 %v29, %v98
    %v101 = vmul.f32 %v30, %v98
    %v102 = vmul.f32 %v31, %v98
    %v103 = vmul.f32 %v32, %v98
    %v104 = vmul.f32 %v33, %v98
    %v105 = vmul.f32 %v34, %v98
    %v106 = vmul.f32 %v35, %v98
    %v107 = vmul.f32 %v36, %v98
    %v108 = vmul.f32 %v37, %v98
    %v109 = vmul.f32 %v38, %v98
    %v110 = vmul.f32 %v39, %v98
    %v111 = vmul.f32 %v40, %v98
    %v112 = vmul.f32 %v41, %v98
    %v113 = vmul.f32 %v42, %v98
    %v114 = vmul.f32 %v43, %v98
    %v115 = vmul.f32 %v44, %v98
    %v116 = vmul.f32 %v45, %v98
    %v117 = vmul.f32 %v46, %v98
    %v118 = vmul.f32 %v47, %v98
    %v119 = vmul.f32 %v48, %v98
    %v120 = vmul.f32 %v49, %v98
    %v121 = vmul.f32 %v50, %v98
    %v122 = vmul.f32 %v51, %v98
    %v123 = vmul.f32 %v52, %v98
    %v124 = vmul.f32 %v53, %v98
    %v125 = vmul.f32 %v54, %v98
    %v126 = vmul.f32 %v55, %v98
    %v127 = vmul.f32 %v56, %v98
    %v128 = vmul.f32 %v57, %v98
    %v129 = vmul.f32 %v58, %v98
    %v130 = vmul.f32 %v59, %v98
    %v131 = vmul.f32 %v60, %v98
    %v132 = vmul.f32 %v61, %v98
    %v133 = vmul.f32 %v62, %v98
    %v134 = vmul.f32 %v63, %v98
    %v135 = vmul.f32 %v64, %v98
    %v136 = vmul.f32 %v65, %v98
    %v137 = vmul.f32 %v66, %v98
    %v138 = vmul.f32 %v67, %v98
    %v139 = vmul.f32 %v68, %v98
    %v140 = vmul.f32 %v69, %v98
    %v141 = vmul.f32 %v70, %v98
    %v142 = vmul.f32 %v71, %v98
    %v143 = vmul.f32 %v72, %v98
    %v144 = vmul.f32 %v73, %v98
    %v145 = vmul.f32 %v74, %v98
    %v146 = vmul.f32 %v75, %v98
    %v147 = vmul.f32 %v76, %v98
    %v148 = vmul.f32 %v77, %v98
    %v149 = vmul.f32 %v78, %v98
    %v150 = vmul.f32 %v79, %v98
    %v151 = vmul.f32 %v80, %v98
    %v152 = vmul.f32 %v81, %v98
    %v153 = vmul.f32 %v82, %v98
    %v154 = vmul.f32 %v83, %v98
    %v155 = vmul.f32 %v84, %v98
    %v156 = vmul.f32 %v85, %v98
    %v157 = vmul.f32 %v86, %v98
    %v158 = vmul.f32 %v87, %v98
    %v159 = vmul.f32 %v88, %v98
    %v160 = vmul.f32 %v89, %v98
    %v161 = vmul.f32 %v90, %v98
    %v162 = vmul.f32 %v91, %v98
    %v163 = vmul.f32 %v92, %v98
    %v164 = vld [vmem:[%s2] sm:$0x1]
    %v166 = vlaneseq
    %v167 = vshrl.u32 %v166, 7
    %v168 = vsub.s32 0, %v167
    %v169 = vrot.slane %v164, %v168
    %v171 = vadd.f32 %v100, %v169
    %v172 = vadd.f32 %v101, %v169
    %v173 = vadd.f32 %v102, %v169
    %v174 = vadd.f32 %v103, %v169
    %v175 = vadd.f32 %v104, %v169
    %v176 = vadd.f32 %v105, %v169
    %v177 = vadd.f32 %v106, %v169
    %v178 = vadd.f32 %v107, %v169
    %v179 = vadd.f32 %v108, %v169
    %v180 = vadd.f32 %v109, %v169
    %v181 = vadd.f32 %v110, %v169
    %v182 = vadd.f32 %v111, %v169
    %v183 = vadd.f32 %v112, %v169
    %v184 = vadd.f32 %v113, %v169
    %v185 = vadd.f32 %v114, %v169
    %v186 = vadd.f32 %v115, %v169
    %v187 = vadd.f32 %v116, %v169
    %v188 = vadd.f32 %v117, %v169
    %v189 = vadd.f32 %v118, %v169
    %v190 = vadd.f32 %v119, %v169
    %v191 = vadd.f32 %v120, %v169
    %v192 = vadd.f32 %v121, %v169
    %v193 = vadd.f32 %v122, %v169
    %v194 = vadd.f32 %v123, %v169
    %v195 = vadd.f32 %v124, %v169
    %v196 = vadd.f32 %v125, %v169
    %v197 = vadd.f32 %v126, %v169
    %v198 = vadd.f32 %v127, %v169
    %v199 = vadd.f32 %v128, %v169
    %v200 = vadd.f32 %v129, %v169
    %v201 = vadd.f32 %v130, %v169
    %v202 = vadd.f32 %v131, %v169
    %v203 = vadd.f32 %v132, %v169
    %v204 = vadd.f32 %v133, %v169
    %v205 = vadd.f32 %v134, %v169
    %v206 = vadd.f32 %v135, %v169
    %v207 = vadd.f32 %v136, %v169
    %v208 = vadd.f32 %v137, %v169
    %v209 = vadd.f32 %v138, %v169
    %v210 = vadd.f32 %v139, %v169
    %v211 = vadd.f32 %v140, %v169
    %v212 = vadd.f32 %v141, %v169
    %v213 = vadd.f32 %v142, %v169
    %v214 = vadd.f32 %v143, %v169
    %v215 = vadd.f32 %v144, %v169
    %v216 = vadd.f32 %v145, %v169
    %v217 = vadd.f32 %v146, %v169
    %v218 = vadd.f32 %v147, %v169
    %v219 = vadd.f32 %v148, %v169
    %v220 = vadd.f32 %v149, %v169
    %v221 = vadd.f32 %v150, %v169
    %v222 = vadd.f32 %v151, %v169
    %v223 = vadd.f32 %v152, %v169
    %v224 = vadd.f32 %v153, %v169
    %v225 = vadd.f32 %v154, %v169
    %v226 = vadd.f32 %v155, %v169
    %v227 = vadd.f32 %v156, %v169
    %v228 = vadd.f32 %v157, %v169
    %v229 = vadd.f32 %v158, %v169
    %v230 = vadd.f32 %v159, %v169
    %v231 = vadd.f32 %v160, %v169
    %v232 = vadd.f32 %v161, %v169
    %v233 = vadd.f32 %v162, %v169
    %v234 = vadd.f32 %v163, %v169
    %v235 = vmax.f32 %v171, 0.0
    %v236 = vmax.f32 %v172, 0.0
    %v237 = vmax.f32 %v173, 0.0
    %v238 = vmax.f32 %v174, 0.0
    %v239 = vmax.f32 %v175, 0.0
    %v240 = vmax.f32 %v176, 0.0
    %v241 = vmax.f32 %v177, 0.0
    %v242 = vmax.f32 %v178, 0.0
    %v243 = vmax.f32 %v179, 0.0
    %v244 = vmax.f32 %v180, 0.0
    %v245 = vmax.f32 %v181, 0.0
    %v246 = vmax.f32 %v182, 0.0
    %v247 = vmax.f32 %v183, 0.0
    %v248 = vmax.f32 %v184, 0.0
    %v249 = vmax.f32 %v185, 0.0
    %v250 = vmax.f32 %v186, 0.0
    %v251 = vmax.f32 %v187, 0.0
    %v252 = vmax.f32 %v188, 0.0
    %v253 = vmax.f32 %v189, 0.0
    %v254 = vmax.f32 %v190, 0.0
    %v255 = vmax.f32 %v191, 0.0
    %v256 = vmax.f32 %v192, 0.0
    %v257 = vmax.f32 %v193, 0.0
    %v258 = vmax.f32 %v194, 0.0
    %v259 = vmax.f32 %v195, 0.0
    %v260 = vmax.f32 %v196, 0.0
    %v261 = vmax.f32 %v197, 0.0
    %v262 = vmax.f32 %v198, 0.0
    %v263 = vmax.f32 %v199, 0.0
    %v264 = vmax.f32 %v200, 0.0
    %v265 = vmax.f32 %v201, 0.0
    %v266 = vmax.f32 %v202, 0.0
    %v267 = vmax.f32 %v203, 0.0
    %v268 = vmax.f32 %v204, 0.0
    %v269 = vmax.f32 %v205, 0.0
    %v270 = vmax.f32 %v206, 0.0
    %v271 = vmax.f32 %v207, 0.0
    %v272 = vmax.f32 %v208, 0.0
    %v273 = vmax.f32 %v209, 0.0
    %v274 = vmax.f32 %v210, 0.0
    %v275 = vmax.f32 %v211, 0.0
    %v276 = vmax.f32 %v212, 0.0
    %v277 = vmax.f32 %v213, 0.0
    %v278 = vmax.f32 %v214, 0.0
    %v279 = vmax.f32 %v215, 0.0
    %v280 = vmax.f32 %v216, 0.0
    %v281 = vmax.f32 %v217, 0.0
    %v282 = vmax.f32 %v218, 0.0
    %v283 = vmax.f32 %v219, 0.0
    %v284 = vmax.f32 %v220, 0.0
    %v285 = vmax.f32 %v221, 0.0
    %v286 = vmax.f32 %v222, 0.0
    %v287 = vmax.f32 %v223, 0.0
    %v288 = vmax.f32 %v224, 0.0
    %v289 = vmax.f32 %v225, 0.0
    %v290 = vmax.f32 %v226, 0.0
    %v291 = vmax.f32 %v227, 0.0
    %v292 = vmax.f32 %v228, 0.0
    %v293 = vmax.f32 %v229, 0.0
    %v294 = vmax.f32 %v230, 0.0
    %v295 = vmax.f32 %v231, 0.0
    %v296 = vmax.f32 %v232, 0.0
    %v297 = vmax.f32 %v233, 0.0
    %v298 = vmax.f32 %v234, 0.0
    %vm299 = vcmask 261120
    %300 = vst.msk [vmem:[#allocation5] sm:$0xff] %vm299, %v235
    %301 = vst.msk [vmem:[#allocation5 + $0x8] sm:$0xff] %vm299, %v236
    %302 = vst.msk [vmem:[#allocation5 + $0x10] sm:$0xff] %vm299, %v237
    %303 = vst.msk [vmem:[#allocation5 + $0x18] sm:$0xff] %vm299, %v238
    %304 = vst.msk [vmem:[#allocation5 + $0x20] sm:$0xff] %vm299, %v239
    %305 = vst.msk [vmem:[#allocation5 + $0x28] sm:$0xff] %vm299, %v240
    %306 = vst.msk [vmem:[#allocation5 + $0x30] sm:$0xff] %vm299, %v241
    %307 = vst.msk [vmem:[#allocation5 + $0x38] sm:$0xff] %vm299, %v242
    %308 = vst.msk [vmem:[#allocation5 + $0x40] sm:$0xff] %vm299, %v243
    %309 = vst.msk [vmem:[#allocation5 + $0x48] sm:$0xff] %vm299, %v244
    %310 = vst.msk [vmem:[#allocation5 + $0x50] sm:$0xff] %vm299, %v245
    %311 = vst.msk [vmem:[#allocation5 + $0x58] sm:$0xff] %vm299, %v246
    %312 = vst.msk [vmem:[#allocation5 + $0x60] sm:$0xff] %vm299, %v247
    %313 = vst.msk [vmem:[#allocation5 + $0x68] sm:$0xff] %vm299, %v248
    %314 = vst.msk [vmem:[#allocation5 + $0x70] sm:$0xff] %vm299, %v249
    %315 = vst.msk [vmem:[#allocation5 + $0x78] sm:$0xff] %vm299, %v250
    %316 = vst.msk [vmem:[#allocation5 + $0x80] sm:$0xff] %vm299, %v251
    %317 = vst.msk [vmem:[#allocation5 + $0x88] sm:$0xff] %vm299, %v252
    %318 = vst.msk [vmem:[#allocation5 + $0x90] sm:$0xff] %vm299, %v253
    %319 = vst.msk [vmem:[#allocation5 + $0x98] sm:$0xff] %vm299, %v254
    %320 = vst.msk [vmem:[#allocation5 + $0xa0] sm:$0xff] %vm299, %v255
    %321 = vst.msk [vmem:[#allocation5 + $0xa8] sm:$0xff] %vm299, %v256
    %322 = vst.msk [vmem:[#allocation5 + $0xb0] sm:$0xff] %vm299, %v257
    %323 = vst.msk [vmem:[#allocation5 + $0xb8] sm:$0xff] %vm299, %v258
    %324 = vst.msk [vmem:[#allocation5 + $0xc0] sm:$0xff] %vm299, %v259
    %325 = vst.msk [vmem:[#allocation5 + $0xc8] sm:$0xff] %vm299, %v260
    %326 = vst.msk [vmem:[#allocation5 + $0xd0] sm:$0xff] %vm299, %v261
    %327 = vst.msk [vmem:[#allocation5 + $0xd8] sm:$0xff] %vm299, %v262
    %328 = vst.msk [vmem:[#allocation5 + $0xe0] sm:$0xff] %vm299, %v263
    %329 = vst.msk [vmem:[#allocation5 + $0xe8] sm:$0xff] %vm299, %v264
    %330 = vst.msk [vmem:[#allocation5 + $0xf0] sm:$0xff] %vm299, %v265
    %331 = vst.msk [vmem:[#allocation5 + $0xf8] sm:$0xff] %vm299, %v266
    %332 = vst.msk [vmem:[#allocation5 + $0x100] sm:$0xff] %vm299, %v267
    %333 = vst.msk [vmem:[#allocation5 + $0x108] sm:$0xff] %vm299, %v268
    %334 = vst.msk [vmem:[#allocation5 + $0x110] sm:$0xff] %vm299, %v269
    %335 = vst.msk [vmem:[#allocation5 + $0x118] sm:$0xff] %vm299, %v270
    %336 = vst.msk [vmem:[#allocation5 + $0x120] sm:$0xff] %vm299, %v271
    %337 = vst.msk [vmem:[#allocation5 + $0x128] sm:$0xff] %vm299, %v272
    %338 = vst.msk [vmem:[#allocation5 + $0x130] sm:$0xff] %vm299, %v273
    %339 = vst.msk [vmem:[#allocation5 + $0x138] sm:$0xff] %vm299, %v274
    %340 = vst.msk [vmem:[#allocation5 + $0x140] sm:$0xff] %vm299, %v275
    %341 = vst.msk [vmem:[#allocation5 + $0x148] sm:$0xff] %vm299, %v276
    %342 = vst.msk [vmem:[#allocation5 + $0x150] sm:$0xff] %vm299, %v277
    %343 = vst.msk [vmem:[#allocation5 + $0x158] sm:$0xff] %vm299, %v278
    %344 = vst.msk [vmem:[#allocation5 + $0x160] sm:$0xff] %vm299, %v279
    %345 = vst.msk [vmem:[#allocation5 + $0x168] sm:$0xff] %vm299, %v280
    %346 = vst.msk [vmem:[#allocation5 + $0x170] sm:$0xff] %vm299, %v281
    %347 = vst.msk [vmem:[#allocation5 + $0x178] sm:$0xff] %vm299, %v282
    %348 = vst.msk [vmem:[#allocation5 + $0x180] sm:$0xff] %vm299, %v283
    %349 = vst.msk [vmem:[#allocation5 + $0x188] sm:$0xff] %vm299, %v284
    %350 = vst.msk [vmem:[#allocation5 + $0x190] sm:$0xff] %vm299, %v285
    %351 = vst.msk [vmem:[#allocation5 + $0x198] sm:$0xff] %vm299, %v286
    %352 = vst.msk [vmem:[#allocation5 + $0x1a0] sm:$0xff] %vm299, %v287
    %353 = vst.msk [vmem:[#allocation5 + $0x1a8] sm:$0xff] %vm299, %v288
    %354 = vst.msk [vmem:[#allocation5 + $0x1b0] sm:$0xff] %vm299, %v289
    %355 = vst.msk [vmem:[#allocation5 + $0x1b8] sm:$0xff] %vm299, %v290
    %356 = vst.msk [vmem:[#allocation5 + $0x1c0] sm:$0xff] %vm299, %v291
    %357 = vst.msk [vmem:[#allocation5 + $0x1c8] sm:$0xff] %vm299, %v292
    %358 = vst.msk [vmem:[#allocation5 + $0x1d0] sm:$0xff] %vm299, %v293
    %359 = vst.msk [vmem:[#allocation5 + $0x1d8] sm:$0xff] %vm299, %v294
    %360 = vst.msk [vmem:[#allocation5 + $0x1e0] sm:$0xff] %vm299, %v295
    %361 = vst.msk [vmem:[#allocation5 + $0x1e8] sm:$0xff] %vm299, %v296
    %362 = vst.msk [vmem:[#allocation5 + $0x1f0] sm:$0xff] %vm299, %v297
    %363 = vst.msk [vmem:[#allocation5 + $0x1f8] sm:$0xff] %vm299, %v298
    // Predicated region
    $region18: #{conv_block_forward.3} parent=1 // pred_check
      _
    $region19: #{conv_block_forward.3} parent=1 // pred_check_branch
      %365 = sbr.rel (0) target = $region21
    $region20: #{conv_block_forward.3} parent=1 // pred_region
      %s367 = ssub.s32 8192, 8192
      %368 = vsyncadd [#allocation4], %s367
      %s369 = sshll.u32 [#allocation5], 4
      %s370 = int_to_ptr.vmem [resolvable:$true] %s369
      %375 = dma.vmem_to_hbm [thread:$0]  %s370, 8192, %s3, [#allocation4], 128, 128, 8
    $region21: #{conv_block_forward.3} parent=1 // pred_fallthru
      _
    // Predicated region
    $region22: #{conv_block_forward.3} parent=1 // pred_check
      _
    $region23: #{conv_block_forward.3} parent=1 // pred_check_branch
      %377 = sbr.rel (0) target = $region25
    $region24: #{conv_block_forward.3} parent=1 // pred_region
      %378 = dma.done [#allocation4], 8192
    $region25: #{conv_block_forward.3} parent=1 // pred_fallthru
      _
    %379 = vsyncpa [#allocation3], 1
    %380 = vsyncpa [#allocation4], 1

// kernel: conv_block_forward.2
$region0: #{conv_block_forward.2}
  #allocation0 [shape = 'u32[]', space=smem, size = 0x4, offset = 0x4, fixed_abs, tag = 'smem constant byte address 0x4 - core index']
  #allocation1 [shape = 'u32[144,128]{1,0:T(1,128)}', space=vmem, size = 0x12000, scoped, tag = 'internal scratch']
  %s0 = inlined_call_operand.hbm [shape: f32[2,18,18,4], index: 0, kind: input, shape index: {}]
  %s1 = inlined_call_operand.hbm [shape: f32[9,4,32], index: 1, kind: input, shape index: {}]
  %s2 = inlined_call_operand.hbm [shape: f32[1,32], index: 2, kind: input, shape index: {}]
  %s3 = inlined_call_operand.hbm [shape: f32[2,256,32], index: 3, kind: output, shape index: {0}]
  %s4 = inlined_call_operand.hbm [shape: f32[1,32], index: 4, kind: output, shape index: {1}]
  %s5 = inlined_call_operand.hbm [shape: f32[1,32], index: 5, kind: output, shape index: {2}]
  %6 = xla_tuple %s3, %s4, %s5
  %s7 = sld [smem:[#allocation0]]
  $region77: #{conv_block_forward.2} parent=0
    _
  %s9 = ssub.s32 1, %s7
  %s10 = scalar_select 0, %s9, %s7
  $region1: #{conv_block_forward.2} parent=0
    #allocation2 [shape = 'u8[442368]{0}', space=vmem, size = 0x6c000, scoped, tag = 'input window, operand 0']
    #allocation3 [shape = 's32[2]{0}', space=sflag, size = 0x8, scoped, tag = 'scoped memory for conv_block_forward.2']
    #allocation4 [shape = 's32[2]{0}', space=sflag, size = 0x8, scoped, tag = 'scoped memory for conv_block_forward.2']
    #allocation5 [shape = 'u8[18432]{0}', space=vmem, size = 0x4800, scoped, tag = 'input window, operand 1, single buffered']
    #allocation6 [shape = 's32[1]{0}', space=sflag, size = 0x4, scoped, tag = 'scoped memory for conv_block_forward.2']
    #allocation7 [shape = 'u8[512]{0}', space=vmem, size = 0x400, scoped, tag = 'input window, operand 2, single buffered']
    #allocation8 [shape = 'u8[262144]{0}', space=vmem, size = 0x40000, scoped, tag = 'output window, operand 0']
    #allocation9 [shape = 'u8[512]{0}', space=vmem, size = 0x400, scoped, tag = 'output window, operand 1, single buffered']
    #allocation10 [shape = 's32[1]{0}', space=sflag, size = 0x4, scoped, tag = 'scoped memory for conv_block_forward.2']
    #allocation11 [shape = 'u8[512]{0}', space=vmem, size = 0x400, scoped, tag = 'output window, operand 2, single buffered']
    %11 = vsyncpa [#allocation3], 0
    %s12 = scalar_lea.sflag [#allocation3], 1
    %13 = vsyncpa %s12, 0
    %14 = vsyncpa [#allocation6], 0
    %15 = vsyncpa [#allocation4], 0
    %s16 = scalar_lea.sflag [#allocation4], 1
    %17 = vsyncpa %s16, 0
    %18 = vsyncpa [#allocation10], 0
    loop: start=0, step=1, limit=4
    $region2: #{conv_block_forward.2} parent=1 // loop_pre_header
      _
    $region3: #{conv_block_forward.2} parent=1 // loop_header
      %s20 = sphi 0, %s24
      %p21 = scmp.ge.s32.totalorder %s20, 4
      %s30 = sphi 0, %s32
      %s33 = sphi 0, %s30
      %s34 = sphi 0, %s33
      %s50 = sphi 0, %s34
      %s54 = sphi 0, %s54
      %s56 = sphi 0, %s54
      %s57 = sphi 0, %s56
      %s71 = sphi 0, %s57
      %s75 = sphi 0, %s75
      %s77 = sphi 0, %s75
      %s78 = sphi 0, %s77
      %s92 = sphi 0, %s78
      %s98 = sphi 0, %s100
      %s101 = sphi 0, %s98
      %s102 = sphi 0, %s101
      %s118 = sphi 0, %s102
      %s122 = sphi 0, %s122
      %s124 = sphi 0, %s122
      %s125 = sphi 0, %s124
      %s139 = sphi 0, %s125
      %s143 = sphi 0, %s143
      %s145 = sphi 0, %s143
      %s146 = sphi 0, %s145
      %s160 = sphi 0, %s146
    $region4: #{conv_block_forward.2} parent=1 // loop_header_branch
      %23 = sbr.rel (%p21) target = $region8
    $region5: #{conv_block_forward.2} parent=1 // loop_body
      %s25 = ssub.s32 %s20, 1
      %s26 = ssub.s32 %s20, 2
      %s27 = sadd.s32 %s20, 1
      %s28 = ssub.s32 %s20, %s27
      %p29 = scmp.eq.s32.totalorder %s28, 0
      %s31 = sadd.s32 %s30, 1
      %s32 = scalar_select %p29, %s30, %s31
      %p35 = pneg %p29
      %p36 = scmp.eq.s32.totalorder %s20, 1
      %p37 = por %p35, %p36
      %p38 = scmp.ne.s32.totalorder %s30, %s33
      %p39 = scmp.eq.s32.totalorder %s20, 0
      %p40 = por %p38, %p39
      %p41 = scmp.ne.s32.totalorder %s30, %s33
      %p42 = scmp.eq.s32.totalorder %s25, 1
      %p43 = por %p41, %p42
      %p44 = scmp.ne.s32.totalorder %s33, %s34
      %p45 = scmp.eq.s32.totalorder %s25, 0
      %p46 = por %p44, %p45
      %p47 = scmp.ne.s32.totalorder %s33, %s34
      %p48 = scmp.eq.s32.totalorder %s26, 1
      %p49 = por %p47, %p48
      %p51 = scmp.ne.s32.totalorder %s34, %s50
      %p52 = scmp.eq.s32.totalorder %s26, 0
      %p53 = por %p51, %p52
      %s55 = sadd.s32 %s54, 1
      %p58 = scmp.eq.s32.totalorder %s20, 1
      %p59 = scmp.ne.s32.totalorder %s54, %s56
      %p60 = scmp.eq.s32.totalorder %s20, 0
      %p61 = por %p59, %p60
      %p62 = scmp.ne.s32.totalorder %s54, %s56
      %p63 = scmp.eq.s32.totalorder %s25, 1
      %p64 = por %p62, %p63
      %p65 = scmp.ne.s32.totalorder %s56, %s57
      %p66 = scmp.eq.s32.totalorder %s25, 0
      %p67 = por %p65, %p66
      %p68 = scmp.ne.s32.totalorder %s56, %s57
      %p69 = scmp.eq.s32.totalorder %s26, 1
      %p70 = por %p68, %p69
      %p72 = scmp.ne.s32.totalorder %s57, %s71
      %p73 = scmp.eq.s32.totalorder %s26, 0
      %p74 = por %p72, %p73
      %s76 = sadd.s32 %s75, 1
      %p79 = scmp.eq.s32.totalorder %s20, 1
      %p80 = scmp.ne.s32.totalorder %s75, %s77
      %p81 = scmp.eq.s32.totalorder %s20, 0
      %p82 = por %p80, %p81
      %p83 = scmp.ne.s32.totalorder %s75, %s77
      %p84 = scmp.eq.s32.totalorder %s25, 1
      %p85 = por %p83, %p84
      %p86 = scmp.ne.s32.totalorder %s77, %s78
      %p87 = scmp.eq.s32.totalorder %s25, 0
      %p88 = por %p86, %p87
      %p89 = scmp.ne.s32.totalorder %s77, %s78
      %p90 = scmp.eq.s32.totalorder %s26, 1
      %p91 = por %p89, %p90
      %p93 = scmp.ne.s32.totalorder %s78, %s92
      %p94 = scmp.eq.s32.totalorder %s26, 0
      %p95 = por %p93, %p94
      %s96 = ssub.s32 %s20, %s27
      %p97 = scmp.eq.s32.totalorder %s96, 0
      %s99 = sadd.s32 %s98, 1
      %s100 = scalar_select %p97, %s98, %s99
      %p103 = pneg %p97
      %p104 = scmp.eq.s32.totalorder %s20, 1
      %p105 = por %p103, %p104
      %p106 = scmp.ne.s32.totalorder %s98, %s101
      %p107 = scmp.eq.s32.totalorder %s20, 0
      %p108 = por %p106, %p107
      %p109 = scmp.ne.s32.totalorder %s98, %s101
      %p110 = scmp.eq.s32.totalorder %s25, 1
      %p111 = por %p109, %p110
      %p112 = scmp.ne.s32.totalorder %s101, %s102
      %p113 = scmp.eq.s32.totalorder %s25, 0
      %p114 = por %p112, %p113
      %p115 = scmp.ne.s32.totalorder %s101, %s102
      %p116 = scmp.eq.s32.totalorder %s26, 1
      %p117 = por %p115, %p116
      %p119 = scmp.ne.s32.totalorder %s102, %s118
      %p120 = scmp.eq.s32.totalorder %s26, 0
      %p121 = por %p119, %p120
      %s123 = sadd.s32 %s122, 1
      %p126 = scmp.eq.s32.totalorder %s20, 1
      %p127 = scmp.ne.s32.totalorder %s122, %s124
      %p128 = scmp.eq.s32.totalorder %s20, 0
      %p129 = por %p127, %p128
      %p130 = scmp.ne.s32.totalorder %s122, %s124
      %p131 = scmp.eq.s32.totalorder %s25, 1
      %p132 = por %p130, %p131
      %p133 = scmp.ne.s32.totalorder %s124, %s125
      %p134 = scmp.eq.s32.totalorder %s25, 0
      %p135 = por %p133, %p134
      %p136 = scmp.ne.s32.totalorder %s124, %s125
      %p137 = scmp.eq.s32.totalorder %s26, 1
      %p138 = por %p136, %p137
      %p140 = scmp.ne.s32.totalorder %s125, %s139
      %p141 = scmp.eq.s32.totalorder %s26, 0
      %p142 = por %p140, %p141
      %s144 = sadd.s32 %s143, 1
      %p147 = scmp.eq.s32.totalorder %s20, 1
      %p148 = scmp.ne.s32.totalorder %s143, %s145
      %p149 = scmp.eq.s32.totalorder %s20, 0
      %p150 = por %p148, %p149
      %p151 = scmp.ne.s32.totalorder %s143, %s145
      %p152 = scmp.eq.s32.totalorder %s25, 1
      %p153 = por %p151, %p152
      %p154 = scmp.ne.s32.totalorder %s145, %s146
      %p155 = scmp.eq.s32.totalorder %s25, 0
      %p156 = por %p154, %p155
      %p157 = scmp.ne.s32.totalorder %s145, %s146
      %p158 = scmp.eq.s32.totalorder %s26, 1
      %p159 = por %p157, %p158
      %p161 = scmp.ne.s32.totalorder %s146, %s160
      %p162 = scmp.eq.s32.totalorder %s26, 0
      %p163 = por %p161, %p162
      %p164 = scmp.le.s32.totalorder 1, %s20
      %p165 = scmp.lt.s32.totalorder %s20, 3
      %p166 = pnand %p164, %p165
      %p167 = pneg %p166
      // Predicated region
      $region9: #{conv_block_forward.2} parent=5 // pred_check
        _
      $region10: #{conv_block_forward.2} parent=5 // pred_check_branch
        %169 = sbr.rel (%p166) target = $region12
      $region11: #{conv_block_forward.2} parent=5 // pred_region
        %s170 = ssub.s32 %s20, 1
        // Predicated region
        $region13: #{conv_block_forward.2} parent=11 // pred_check
          %p171 = pneg %p67
        $region14: #{conv_block_forward.2} parent=11 // pred_check_branch
          %173 = sbr.rel (%p171) target = $region16
        $region15: #{conv_block_forward.2} parent=11 // pred_region
          %s175 = ssub.s32 576, 576
          %176 = vsyncadd [#allocation6], %s175
          %s177 = sshll.u32 [#allocation5], 4
          %s178 = int_to_ptr.vmem [resolvable:$true] %s177
          %183 = dma.hbm_to_vmem [thread:$0]  %s1, 576, %s178, [#allocation6], 64, 64, 4
        $region16: #{conv_block_forward.2} parent=11 // pred_fallthru
          _
        // Predicated region
        $region17: #{conv_block_forward.2} parent=11 // pred_check
          %p184 = pneg %p88
        $region18: #{conv_block_forward.2} parent=11 // pred_check_branch
          %186 = sbr.rel (%p184) target = $region20
        $region19: #{conv_block_forward.2} parent=11 // pred_region
          %s188 = ssub.s32 16, 16
          %189 = vsyncadd [#allocation6], %s188
          %s191 = sshll.u32 [#allocation7], 4
          %s192 = int_to_ptr.vmem [resolvable:$true] %s191
          %194 = dma.hbm_to_vmem [thread:$0]  %s2, 16, %s192, [#allocation6]
        $region20: #{conv_block_forward.2} parent=11 // pred_fallthru
          _
      $region12: #{conv_block_forward.2} parent=5 // pred_fallthru
        _
      %p195 = scmp.lt.s32.totalorder %s20, 2
      // Predicated region
      $region21: #{conv_block_forward.2} parent=5 // pred_check
        %p196 = pneg %p195
      $region22: #{conv_block_forward.2} parent=5 // pred_check_branch
        %198 = sbr.rel (%p196) target = $region24
      $region23: #{conv_block_forward.2} parent=5 // pred_region
        // Predicated region
        $region25: #{conv_block_forward.2} parent=23 // pred_check
          %p199 = pneg %p40
        $region26: #{conv_block_forward.2} parent=23 // pred_check_branch
          %201 = sbr.rel (%p199) target = $region28
        $region27: #{conv_block_forward.2} parent=23 // pred_region
          %s202 = sand.u32 %s30, 1
          %s203 = scalar_lea.sflag [#allocation3], %s202
          %s204 = sand.u32 %s30, 1
          %s205 = smul.addr %s204, 432
          %s206 = scalar_lea.vmem [#allocation2], %s205
          %s208 = ssub.s32 6912, 6912
          %209 = vsyncadd %s203, %s208
          %s210 = smul.addr %s20, 54
          %s211 = smul.addr %s210, 128
          %s212 = scalar_lea.hbm %s0, %s211
          %s213 = sshll.u32 %s206, 4
          %s214 = int_to_ptr.vmem [resolvable:$true] %s213
          %219 = dma.hbm_to_vmem [thread:$0]  %s212, 6912, %s214, %s203, 128, 128, 8
        $region28: #{conv_block_forward.2} parent=23 // pred_fallthru
          _
      $region24: #{conv_block_forward.2} parent=5 // pred_fallthru
        _
      %p220 = scmp.le.s32.totalorder 1, %s20
      %p221 = scmp.lt.s32.totalorder %s20, 3
      %p222 = pnand %p220, %p221
      %p223 = pneg %p222
      // Predicated region
      $region29: #{conv_block_forward.2} parent=5 // pred_check
        _
      $region30: #{conv_block_forward.2} parent=5 // pred_check_branch
        %225 = sbr.rel (%p222) target = $region32
      $region31: #{conv_block_forward.2} parent=5 // pred_region
        %s226 = ssub.s32 %s20, 1
        %s227 = sand.u32 %s33, 1
        %s228 = scalar_lea.sflag [#allocation3], %s227
        %s229 = sand.u32 %s33, 1
        %s230 = smul.addr %s229, 432
        %s231 = scalar_lea.vmem [#allocation2], %s230
        // Predicated region
        $region33: #{conv_block_forward.2} parent=31 // pred_check
          %p232 = pneg %p46
        $region34: #{conv_block_forward.2} parent=31 // pred_check_branch
          %234 = sbr.rel (%p232) target = $region36
        $region35: #{conv_block_forward.2} parent=31 // pred_region
          %235 = dma.done %s228, 6912
        $region36: #{conv_block_forward.2} parent=31 // pred_fallthru
          _
        // Predicated region
        $region37: #{conv_block_forward.2} parent=31 // pred_check
          %p236 = pneg %p67
        $region38: #{conv_block_forward.2} parent=31 // pred_check_branch
          %238 = sbr.rel (%p236) target = $region40
        $region39: #{conv_block_forward.2} parent=31 // pred_region
          %239 = dma.done [#allocation6], 576
        $region40: #{conv_block_forward.2} parent=31 // pred_fallthru
          _
        // Predicated region
        $region41: #{conv_block_forward.2} parent=31 // pred_check
          %p240 = pneg %p88
        $region42: #{conv_block_forward.2} parent=31 // pred_check_branch
          %242 = sbr.rel (%p240) target = $region44
        $region43: #{conv_block_forward.2} parent=31 // pred_region
          %243 = dma.done [#allocation6], 16
        $region44: #{conv_block_forward.2} parent=31 // pred_fallthru
          _
        %s244 = sand.u32 %s33, 1
        %s245 = scalar_lea.sflag [#allocation3], %s244
        %s246 = sand.u32 %s33, 1
        %s247 = smul.addr %s246, 432
        %s248 = scalar_lea.vmem [#allocation2], %s247
        %p249 = pneg %p46
        %p250 = pneg %p43
        %p251 = pneg %p67
        %p252 = pneg %p64
        %p253 = pneg %p88
        %p254 = pneg %p85
        %p255 = pneg %p114
        %p256 = pneg %p111
        %s257 = sand.u32 %s101, 1
        %s258 = scalar_lea.sflag [#allocation4], %s257
        %s259 = sand.u32 %s101, 1
        %s260 = smul.addr %s259, 256
        %s261 = scalar_lea.vmem [#allocation8], %s260
        %p262 = pneg %p135
        %p263 = pneg %p132
        %p264 = pneg %p156
        %p265 = pneg %p153
        %p266 = scmp.eq.s32.totalorder %s25, 0
        // Predicated region
        $region45: #{conv_block_forward.2} parent=31 // pred_check
          %p267 = pneg %p266
        $region46: #{conv_block_forward.2} parent=31 // pred_check_branch
          %269 = sbr.rel (%p267) target = $region48
        $region47: #{conv_block_forward.2} parent=31 // pred_region
          %vm270 = vcmask 253952
          %271 = vst.msk [vmem:[#allocation9] sm:$0x1] %vm270, 0.0
          %272 = vst.msk [vmem:[#allocation11] sm:$0x1] %vm270, 0.0
        $region48: #{conv_block_forward.2} parent=31 // pred_fallthru
          _
        %v273 = vld [vmem:[%s231] sm:$0xff]
        %v274 = vld [vmem:[%s231 + $0x8] sm:$0xff]
        %v275 = vld [vmem:[%s231 + $0x10] sm:$0x3]
        %v276 = vld [vmem:[%s231 + $0x18] sm:$0xff]
        %v277 = vld [vmem:[%s231 + $0x20] sm:$0xff]
        %v278 = vld [vmem:[%s231 + $0x28] sm:$0x3]
        %v279 = vld [vmem:[%s231 + $0x30] sm:$0xff]
        %v280 = vld [vmem:[%s231 + $0x38] sm:$0xff]
        %v281 = vld [vmem:[%s231 + $0x40] sm:$0x3]
        %v282 = vld [vmem:[%s231 + $0x48] sm:$0xff]
        %v283 = vld [vmem:[%s231 + $0x50] sm:$0xff]
        %v284 = vld [vmem:[%s231 + $0x58] sm:$0x3]
        %v285 = vld [vmem:[%s231 + $0x60] sm:$0xff]
        %v286 = vld [vmem:[%s231 + $0x68] sm:$0xff]
        %v287 = vld [vmem:[%s231 + $0x70] sm:$0x3]
        %v288 = vld [vmem:[%s231 + $0x78] sm:$0xff]
        %v289 = vld [vmem:[%s231 + $0x80] sm:$0xff]
        %v290 = vld [vmem:[%s231 + $0x88] sm:$0x3]
        %v291 = vld [vmem:[%s231 + $0x90] sm:$0xff]
        %v292 = vld [vmem:[%s231 + $0x98] sm:$0xff]
        %v293 = vld [vmem:[%s231 + $0xa0] sm:$0x3]
        %v294 = vld [vmem:[%s231 + $0xa8] sm:$0xff]
        %v295 = vld [vmem:[%s231 + $0xb0] sm:$0xff]
        %v296 = vld [vmem:[%s231 + $0xb8] sm:$0x3]
        %v297 = vld [vmem:[%s231 + $0xc0] sm:$0xff]
        %v298 = vld [vmem:[%s231 + $0xc8] sm:$0xff]
        %v299 = vld [vmem:[%s231 + $0xd0] sm:$0x3]
        %v300 = vld [vmem:[%s231 + $0xd8] sm:$0xff]
        %v301 = vld [vmem:[%s231 + $0xe0] sm:$0xff]
        %v302 = vld [vmem:[%s231 + $0xe8] sm:$0x3]
        %v303 = vld [vmem:[%s231 + $0xf0] sm:$0xff]
        %v304 = vld [vmem:[%s231 + $0xf8] sm:$0xff]
        %v305 = vld [vmem:[%s231 + $0x100] sm:$0x3]
        %v306 = vld [vmem:[%s231 + $0x108] sm:$0xff]
        %v307 = vld [vmem:[%s231 + $0x110] sm:$0xff]
        %v308 = vld [vmem:[%s231 + $0x118] sm:$0x3]
        %v309 = vld [vmem:[%s231 + $0x120] sm:$0xff]
        %v310 = vld [vmem:[%s231 + $0x128] sm:$0xff]
        %v311 = vld [vmem:[%s231 + $0x130] sm:$0x3]
        %v312 = vld [vmem:[%s231 + $0x138] sm:$0xff]
        %v313 = vld [vmem:[%s231 + $0x140] sm:$0xff]
        %v314 = vld [vmem:[%s231 + $0x148] sm:$0x3]
        %v315 = vld [vmem:[%s231 + $0x150] sm:$0xff]
        %v316 = vld [vmem:[%s231 + $0x158] sm:$0xff]
        %v317 = vld [vmem:[%s231 + $0x160] sm:$0x3]
        %v318 = vld [vmem:[%s231 + $0x168] sm:$0xff]
        %v319 = vld [vmem:[%s231 + $0x170] sm:$0xff]
        %v320 = vld [vmem:[%s231 + $0x178] sm:$0x3]
        %v321 = vld [vmem:[%s231 + $0x180] sm:$0xff]
        %v322 = vld [vmem:[%s231 + $0x188] sm:$0xff]
        %v323 = vld [vmem:[%s231 + $0x190] sm:$0x3]
        %v324 = vld [vmem:[%s231 + $0x198] sm:$0xff]
        %v325 = vld [vmem:[%s231 + $0x1a0] sm:$0xff]
        %v326 = vld [vmem:[%s231 + $0x1a8] sm:$0x3]
        %v327 = vld [vmem:[#allocation5] sm:$0xf]
        %vm376 = vcmask 1046528
        %v377 = vrot.slane %v273, 1
        %v378 = vrot.slane %v274, 1
        %v379 = vsel %vm376, %v377, %v378
        %v380 = vrot.slane %v275, 1
        %v381 = vsel %vm376, %v378, %v380
        %v382 = vrot.slane %v276, 1
        %v383 = vrot.slane %v277, 1
        %v384 = vsel %vm376, %v382, %v383
        %v385 = vrot.slane %v278, 1
        %v386 = vsel %vm376, %v383, %v385
        %v387 = vrot.slane %v279, 1
        %v388 = vrot.slane %v280, 1
        %v389 = vsel %vm376, %v387, %v388
        %v390 = vrot.slane %v281, 1
        %v391 = vsel %vm376, %v388, %v390
        %v392 = vrot.slane %v282, 1
        %v393 = vrot.slane %v283, 1
        %v394 = vsel %vm376, %v392, %v393
        %v395 = vrot.slane %v284, 1
        %v396 = vsel %vm376, %v393, %v395
        %v397 = vrot.slane %v285, 1
        %v398 = vrot.slane %v286, 1
        %v399 = vsel %vm376, %v397, %v398
        %v400 = vrot.slane %v287, 1
        %v401 = vsel %vm376, %v398, %v400
        %v402 = vrot.slane %v288, 1
        %v403 = vrot.slane %v289, 1
        %v404 = vsel %vm376, %v402, %v403
        %v405 = vrot.slane %v290, 1
        %v406 = vsel %vm376, %v403, %v405
        %v407 = vrot.slane %v291, 1
        %v408 = vrot.slane %v292, 1
        %v409 = vsel %vm376, %v407, %v408
        %v410 = vrot.slane %v293, 1
        %v411 = vsel %vm376, %v408, %v410
        %v412 = vrot.slane %v294, 1
        %v413 = vrot.slane %v295, 1
        %v414 = vsel %vm376, %v412, %v413
        %v415 = vrot.slane %v296, 1
        %v416 = vsel %vm376, %v413, %v415
        %v417 = vrot.slane %v297, 1
        %v418 = vrot.slane %v298, 1
        %v419 = vsel %vm376, %v417, %v418
        %v420 = vrot.slane %v299, 1
        %v421 = vsel %vm376, %v418, %v420
        %v422 = vrot.slane %v300, 1
        %v423 = vrot.slane %v301, 1
        %v424 = vsel %vm376, %v422, %v423
        %v425 = vrot.slane %v302, 1
        %v426 = vsel %vm376, %v423, %v425
        %v427 = vrot.slane %v303, 1
        %v428 = vrot.slane %v304, 1
        %v429 = vsel %vm376, %v427, %v428
        %v430 = vrot.slane %v305, 1
        %v431 = vsel %vm376, %v428, %v430
        %v432 = vrot.slane %v306, 1
        %v433 = vrot.slane %v307, 1
        %v434 = vsel %vm376, %v432, %v433
        %v435 = vrot.slane %v308, 1
        %v436 = vsel %vm376, %v433, %v435
        %v437 = vrot.slane %v309, 1
        %v438 = vrot.slane %v310, 1
        %v439 = vsel %vm376, %v437, %v438
        %v440 = vrot.slane %v311, 1
        %v441 = vsel %vm376, %v438, %v440
        %v442 = vrot.slane %v312, 1
        %v443 = vrot.slane %v313, 1
        %v444 = vsel %vm376, %v442, %v443
        %v445 = vrot.slane %v314, 1
        %v446 = vsel %vm376, %v443, %v445
        %v447 = vrot.slane %v315, 1
        %v448 = vrot.slane %v316, 1
        %v449 = vsel %vm376, %v447, %v448
        %v450 = vrot.slane %v317, 1
        %v451 = vsel %vm376, %v448, %v450
        %v452 = vrot.slane %v318, 1
        %v453 = vrot.slane %v319, 1
        %v454 = vsel %vm376, %v452, %v453
        %v455 = vrot.slane %v320, 1
        %v456 = vsel %vm376, %v453, %v455
        %s457 = scalar_lea.vmem [#allocation5], 4
        %v458 = vld [vmem:[%s457] sm:$0xf]
        %vm459 = vcmask 31744
        %v460 = vsel %vm459, %v379, 0
        %v462 = vsel %vm459, %v381, 0
        %v464 = vsel %vm459, %v384, 0
        %v466 = vsel %vm459, %v386, 0
        %v468 = vsel %vm459, %v389, 0
        %v470 = vsel %vm459, %v391, 0
        %v472 = vsel %vm459, %v394, 0
        %v474 = vsel %vm459, %v396, 0
        %v476 = vsel %vm459, %v399, 0
        %v478 = vsel %vm459, %v401, 0
        %v480 = vsel %vm459, %v404, 0
        %v482 = vsel %vm459, %v406, 0
        %v484 = vsel %vm459, %v409, 0
        %v486 = vsel %vm459, %v411, 0
        %v488 = vsel %vm459, %v414, 0
        %v490 = vsel %vm459, %v416, 0
        %v492 = vsel %vm459, %v419, 0
        %v494 = vsel %vm459, %v421, 0
        %v496 = vsel %vm459, %v424, 0
        %v498 = vsel %vm459, %v426, 0
        %v500 = vsel %vm459, %v429, 0
        %v502 = vsel %vm459, %v431, 0
        %v504 = vsel %vm459, %v434, 0
        %v506 = vsel %vm459, %v436, 0
        %v508 = vsel %vm459, %v439, 0
        %v510 = vsel %vm459, %v441, 0
        %v512 = vsel %vm459, %v444, 0
        %v514 = vsel %vm459, %v446, 0
        %v516 = vsel %vm459, %v449, 0
        %v518 = vsel %vm459, %v451, 0
        %v520 = vsel %vm459, %v454, 0
        %v522 = vsel %vm459, %v456, 0
        %vm524 = vcmask 1043456
        %v526 = vsel %vm524, %v458, 0
        %528 = vmatprep.subr.mxu0 0.0
        %529 = vmatpush1.msra.mxu0 %v526
        %530 = vmatprep.subr.mxu0 0.0
        %531 = vmatpush1.msra.mxu0 0.0
        %532 = vmatprep.subr.mxu0 0.0
        %533 = vmatpush1.msra.mxu0 0.0
        %534 = vmatprep.subr.mxu0 0.0
        %535 = vmatpush1.msra.mxu0 0.0
        %536 = vmatprep.subr.mxu0 0.0
        %537 = vmatpush1.msra.mxu0 0.0
        %538 = vmatprep.subr.mxu0 0.0
        %539 = vmatpush1.msra.mxu0 0.0
        %540 = vmatprep.subr.mxu0 0.0
        %541 = vmatpush1.msra.mxu0 0.0
        %542 = vmatprep.subr.mxu0 0.0
        %543 = vmatpush1.msra.mxu0 0.0
        %544 = vmatprep.subr.mxu0 0.0
        %545 = vmatpush1.msra.mxu0 0.0
        %546 = vmatprep.subr.mxu0 0.0
        %547 = vmatpush1.msra.mxu0 0.0
        %548 = vmatprep.subr.mxu0 0.0
        %549 = vmatpush1.msra.mxu0 0.0
        %550 = vmatprep.subr.mxu0 0.0
        %551 = vmatpush1.msra.mxu0 0.0
        %552 = vmatprep.subr.mxu0 0.0
        %553 = vmatpush1.msra.mxu0 0.0
        %554 = vmatprep.subr.mxu0 0.0
        %555 = vmatpush1.msra.mxu0 0.0
        %556 = vmatprep.subr.mxu0 0.0
        %557 = vmatpush1.msra.mxu0 0.0
        %558 = vmatprep.subr.mxu0 0.0
        %559 = vmatpush1.msra.mxu0 0.0
        %560 = vmatprep.subr.mxu0 0.0
        %561 = vmatpush1.msra.mxu0 0.0
        %562 = vmatprep.subr.mxu0 0.0
        %563 = vmatpush1.msra.mxu0 0.0
        %564 = vmatprep.subr.mxu0 0.0
        %565 = vmatpush1.msra.mxu0 0.0
        %566 = vmatprep.subr.mxu0 0.0
        %567 = vmatpush1.msra.mxu0 0.0
        %568 = vmatprep.subr.mxu0 0.0
        %569 = vmatpush1.msra.mxu0 0.0
        %570 = vmatprep.subr.mxu0 0.0
        %571 = vmatpush1.msra.mxu0 0.0
        %572 = vmatprep.subr.mxu0 0.0
        %573 = vmatpush1.msra.mxu0 0.0
        %574 = vmatprep.subr.mxu0 0.0
        %575 = vmatpush1.msra.mxu0 0.0
        %576 = vmatprep.subr.mxu0 0.0
        %577 = vmatpush1.msra.mxu0 0.0
        %578 = vmatprep.subr.mxu0 0.0
        %579 = vmatpush1.msra.mxu0 0.0
        %580 = vmatprep.subr.mxu0 0.0
        %581 = vmatpush1.msra.mxu0 0.0
        %582 = vmatprep.subr.mxu0 0.0
        %583 = vmatpush1.msra.mxu0 0.0
        %584 = vmatprep.subr.mxu0 0.0
        %585 = vmatpush1.msra.mxu0 0.0
        %586 = vmatprep.subr.mxu0 0.0
        %587 = vmatpush1.msra.mxu0 0.0
        %588 = vmatprep.subr.mxu0 0.0
        %589 = vmatpush1.msra.mxu0 0.0
        %590 = vmatprep.subr.mxu0 0.0
        %591 = vmatpush1.msra.mxu0 0.0
        %592 = vmatprep.mubr.f32.mxu0 0.0
        %593 = vmatmul.mubr.f32.gmra.mrb[0].mxu0 %v460
        %v594 = vpop.f32.mrb[0].mxu0
        %v595 = vadd.f32 0.0, %v594
        %v596 = vpop.f32.mrb[0].mxu0
        %597 = vmatprep.mubr.f32.mxu0 0.0
        %598 = vmatmul.mubr.f32.gmra.mrb[0].mxu0 %v462
        %v599 = vpop.f32.mrb[0].mxu0
        %v600 = vadd.f32 0.0, %v599
        %v601 = vpop.f32.mrb[0].mxu0
        %602 = vmatprep.mubr.f32.mxu0 0.0
        %603 = vmatmul.mubr.f32.gmra.mrb[0].mxu0 %v464
        %v604 = vpop.f32.mrb[0].mxu0
        %v605 = vadd.f32 0.0, %v604
        %v606 = vpop.f32.mrb[0].mxu0
        %607 = vmatprep.mubr.f32.mxu0 0.0
        %608 = vmatmul.mubr.f32.gmra.mrb[0].mxu0 %v466
        %v609 = vpop.f32.mrb[0].mxu0
        %v610 = vadd.f32 0.0, %v609
        %v611 = vpop.f32.mrb[0].mxu0
        %612 = vmatprep.mubr.f32.mxu0 0.0
        %613 = vmatmul.mubr.f32.gmra.mrb[0].mxu0 %v468
        %v614 = vpop.f32.mrb[0].mxu0
        %v615 = vadd.f32 0.0, %v614
        %v616 = vpop.f32.mrb[0].mxu0
        %617 = vmatprep.mubr.f32.mxu0 0.0
        %618 = vmatmul.mubr.f32.gmra.mrb[0].mxu0 %v470
        %v619 = vpop.f32.mrb[0].mxu0
        %v620 = vadd.f32 0.0, %v619
        %v621 = vpop.f32.mrb[0].mxu0
        %622 = vmatprep.mubr.f32.mxu0 0.0
        %623 = vmatmul.mubr.f32.gmra.mrb[0].mxu0 %v472
        %v624 = vpop.f32.mrb[0].mxu0
        %v625 = vadd.f32 0.0, %v624
        %v626 = vpop.f32.mrb[0].mxu0
        %627 = vmatprep.mubr.f32.mxu0 0.0
        %628 = vmatmul.mubr.f32.gmra.mrb[0].mxu0 %v474
        %v629 = vpop.f32.mrb[0].mxu0
        %v630 = vadd.f32 0.0, %v629
        %v631 = vpop.f32.mrb[0].mxu0
        %632 = vmatprep.mubr.f32.mxu0 0.0
        %633 = vmatmul.mubr.f32.gmra.mrb[0].mxu0 %v476
        %v634 = vpop.f32.mrb[0].mxu0
        %v635 = vadd.f32 0.0, %v634
        %v636 = vpop.f32.mrb[0].mxu0
        %637 = vmatprep.mubr.f32.mxu0 0.0
        %638 = vmatmul.mubr.f32.gmra.mrb[0].mxu0 %v478
        %v639 = vpop.f32.mrb[0].mxu0
        %v640 = vadd.f32 0.0, %v639
        %v641 = vpop.f32.mrb[0].mxu0
        %642 = vmatprep.mubr.f32.mxu0 0.0
        %643 = vmatmul.mubr.f32.gmra.mrb[0].mxu0 %v480
        %v644 = vpop.f32.mrb[0].mxu0
        %v645 = vadd.f32 0.0, %v644
        %v646 = vpop.f32.mrb[0].mxu0
        %647 = vmatprep.mubr.f32.mxu0 0.0
        %648 = vmatmul.mubr.f32.gmra.mrb[0].mxu0 %v482
        %v649 = vpop.f32.mrb[0].mxu0
        %v650 = vadd.f32 0.0, %v649
        %v651 = vpop.f32.mrb[0].mxu0
        %652 = vmatprep.mubr.f32.mxu0 0.0
        %653 = vmatmul.mubr.f32.gmra.mrb[0].mxu0 %v484
        %v654 = vpop.f32.mrb[0].mxu0
        %v655 = vadd.f32 0.0, %v654
        %v656 = vpop.f32.mrb[0].mxu0
        %657 = vmatprep.mubr.f32.mxu0 0.0
        %658 = vmatmul.mubr.f32.gmra.mrb[0].mxu0 %v486
        %v659 = vpop.f32.mrb[0].mxu0
        %v660 = vadd.f32 0.0, %v659
        %v661 = vpop.f32.mrb[0].mxu0
        %662 = vmatprep.mubr.f32.mxu0 0.0
        %663 = vmatmul.mubr.f32.gmra.mrb[0].mxu0 %v488
        %v664 = vpop.f32.mrb[0].mxu0
        %v665 = vadd.f32 0.0, %v664
        %v666 = vpop.f32.mrb[0].mxu0
        %667 = vmatprep.mubr.f32.mxu0 0.0
        %668 = vmatmul.mubr.f32.gmra.mrb[0].mxu0 %v490
        %v669 = vpop.f32.mrb[0].mxu0
        %v670 = vadd.f32 0.0, %v669
        %v671 = vpop.f32.mrb[0].mxu0
        %672 = vmatprep.mubr.f32.mxu0 0.0
        %673 = vmatmul.mubr.f32.gmra.mrb[0].mxu0 %v492
        %v674 = vpop.f32.mrb[0].mxu0
        %v675 = vadd.f32 0.0, %v674
        %v676 = vpop.f32.mrb[0].mxu0
        %677 = vmatprep.mubr.f32.mxu0 0.0
        %678 = vmatmul.mubr.f32.gmra.mrb[0].mxu0 %v494
        %v679 = vpop.f32.mrb[0].mxu0
        %v680 = vadd.f32 0.0, %v679
        %v681 = vpop.f32.mrb[0].mxu0
        %682 = vmatprep.mubr.f32.mxu0 0.0
        %683 = vmatmul.mubr.f32.gmra.mrb[0].mxu0 %v496
        %v684 = vpop.f32.mrb[0].mxu0
        %v685 = vadd.f32 0.0, %v684
        %v686 = vpop.f32.mrb[0].mxu0
        %687 = vmatprep.mubr.f32.mxu0 0.0
        %688 = vmatmul.mubr.f32.gmra.mrb[0].mxu0 %v498
        %v689 = vpop.f32.mrb[0].mxu0
        %v690 = vadd.f32 0.0, %v689
        %v691 = vpop.f32.mrb[0].mxu0
        %692 = vmatprep.mubr.f32.mxu0 0.0
        %693 = vmatmul.mubr.f32.gmra.mrb[0].mxu0 %v500
        %v694 = vpop.f32.mrb[0].mxu0
        %v695 = vadd.f32 0.0, %v694
        %v696 = vpop.f32.mrb[0].mxu0
        %697 = vmatprep.mubr.f32.mxu0 0.0
        %698 = vmatmul.mubr.f32.gmra.mrb[0].mxu0 %v502
        %v699 = vpop.f32.mrb[0].mxu0
        %v700 = vadd.f32 0.0, %v699
        %v701 = vpop.f32.mrb[0].mxu0
        %702 = vmatprep.mubr.f32.mxu0 0.0
        %703 = vmatmul.mubr.f32.gmra.mrb[0].mxu0 %v504
        %v704 = vpop.f32.mrb[0].mxu0
        %v705 = vadd.f32 0.0, %v704
        %v706 = vpop.f32.mrb[0].mxu0
        %707 = vmatprep.mubr.f32.mxu0 0.0
        %708 = vmatmul.mubr.f32.gmra.mrb[0].mxu0 %v506
        %v709 = vpop.f32.mrb[0].mxu0
        %v710 = vadd.f32 0.0, %v709
        %v711 = vpop.f32.mrb[0].mxu0
        %712 = vmatprep.mubr.f32.mxu0 0.0
        %713 = vmatmul.mubr.f32.gmra.mrb[0].mxu0 %v508
        %v714 = vpop.f32.mrb[0].mxu0
        %v715 = vadd.f32 0.0, %v714
        %v716 = vpop.f32.mrb[0].mxu0
        %717 = vmatprep.mubr.f32.mxu0 0.0
        %718 = vmatmul.mubr.f32.gmra.mrb[0].mxu0 %v510
        %v719 = vpop.f32.mrb[0].mxu0
        %v720 = vadd.f32 0.0, %v719
        %v721 = vpop.f32.mrb[0].mxu0
        %722 = vmatprep.mubr.f32.mxu0 0.0
        %723 = vmatmul.mubr.f32.gmra.mrb[0].mxu0 %v512
        %v724 = vpop.f32.mrb[0].mxu0
        %v725 = vadd.f32 0.0, %v724
        %v726 = vpop.f32.mrb[0].mxu0
        %727 = vmatprep.mubr.f32.mxu0 0.0
        %728 = vmatmul.mubr.f32.gmra.mrb[0].mxu0 %v514
        %v729 = vpop.f32.mrb[0].mxu0
        %v730 = vadd.f32 0.0, %v729
        %v731 = vpop.f32.mrb[0].mxu0
        %732 = vmatprep.mubr.f32.mxu0 0.0
        %733 = vmatmul.mubr.f32.gmra.mrb[0].mxu0 %v516
        %v734 = vpop.f32.mrb[0].mxu0
        %v735 = vadd.f32 0.0, %v734
        %v736 = vpop.f32.mrb[0].mxu0
        %737 = vmatprep.mubr.f32.mxu0 0.0
        %738 = vmatmul.mubr.f32.gmra.mrb[0].mxu0 %v518
        %v739 = vpop.f32.mrb[0].mxu0
        %v740 = vadd.f32 0.0, %v739
        %v741 = vpop.f32.mrb[0].mxu0
        %742 = vmatprep.mubr.f32.mxu0 0.0
        %743 = vmatmul.mubr.f32.gmra.mrb[0].mxu0 %v520
        %v744 = vpop.f32.mrb[0].mxu0
        %v745 = vadd.f32 0.0, %v744
        %v746 = vpop.f32.mrb[0].mxu0
        %747 = vmatprep.mubr.f32.mxu0 0.0
        %748 = vmatmul.mubr.f32.gmra.mrb[0].mxu0 %v522
        %v749 = vpop.f32.mrb[0].mxu0
        %v750 = vadd.f32 0.0, %v749
        %v751 = vpop.f32.mrb[0].mxu0
        %752 = vdwg.mxu0
        %v753 = vsel %vm459, %v273, 0
        %v755 = vsel %vm459, %v274, 0
        %v757 = vsel %vm459, %v276, 0
        %v759 = vsel %vm459, %v277, 0
        %v761 = vsel %vm459, %v279, 0
        %v763 = vsel %vm459, %v280, 0
        %v765 = vsel %vm459, %v282, 0
        %v767 = vsel %vm459, %v283, 0
        %v769 = vsel %vm459, %v285, 0
        %v771 = vsel %vm459, %v286, 0
        %v773 = vsel %vm459, %v288, 0
        %v775 = vsel %vm459, %v289, 0
        %v777 = vsel %vm459, %v291, 0
        %v779 = vsel %vm459, %v292, 0
        %v781 = vsel %vm459, %v294, 0
        %v783 = vsel %vm459, %v295, 0
        %v785 = vsel %vm459, %v297, 0
        %v787 = vsel %vm459, %v298, 0
        %v789 = vsel %vm459, %v300, 0
        %v791 = vsel %vm459, %v301, 0
        %v793 = vsel %vm459, %v303, 0
        %v795 = vsel %vm459, %v304, 0
        %v797 = vsel %vm459, %v306, 0
        %v799 = vsel %vm459, %v307, 0
        %v801 = vsel %vm459, %v309, 0
        %v803 = vsel %vm459, %v310, 0
        %v805 = vsel %vm459, %v312, 0
        %v807 = vsel %vm459, %v313, 0
        %v809 = vsel %vm459, %v315, 0
        %v811 = vsel %vm459, %v316, 0
        %v813 = vsel %vm459, %v318, 0
        %v815 = vsel %vm459, %v319, 0
        %v818 = vsel %vm524, %v327, 0
        %820 = vmatprep.subr.mxu0 0.0
        %821 = vmatpush1.msra.mxu0 %v818
        %822 = vmatprep.subr.mxu0 0.0
        %823 = vmatpush1.msra.mxu0 0.0
        %824 = vmatprep.subr.mxu0 0.0
        %825 = vmatpush1.msra.mxu0 0.0
        %826 = vmatprep.subr.mxu0 0.0
        %827 = vmatpush1.msra.mxu0 0.0
        %828 = vmatprep.subr.mxu0 0.0
        %829 = vmatpush1.msra.mxu0 0.0
        %830 = vmatprep.subr.mxu0 0.0
        %831 = vmatpush1.msra.mxu0 0.0
        %832 = vmatprep.subr.mxu0 0.0
        %833 = vmatpush1.msra.mxu0 0.0
        %834 = vmatprep.subr.mxu0 0.0
        %835 = vmatpush1.msra.mxu0 0.0
        %836 = vmatprep.subr.mxu0 0.0
        %837 = vmatpush1.msra.mxu0 0.0
        %838 = vmatprep.subr.mxu0 0.0
        %839 = vmatpush1.msra.mxu0 0.0
        %840 = vmatprep.subr.mxu0 0.0
        %841 = vmatpush1.msra.mxu0 0.0
        %842 = vmatprep.subr.mxu0 0.0
        %843 = vmatpush1.msra.mxu0 0.0
        %844 = vmatprep.subr.mxu0 0.0
        %845 = vmatpush1.msra.mxu0 0.0
        %846 = vmatprep.subr.mxu0 0.0
        %847 = vmatpush1.msra.mxu0 0.0
        %848 = vmatprep.subr.mxu0 0.0
        %849 = vmatpush1.msra.mxu0 0.0
        %850 = vmatprep.subr.mxu0 0.0
        %851 = vmatpush1.msra.mxu0 0.0
        %852 = vmatprep.subr.mxu0 0.0
        %853 = vmatpush1.msra.mxu0 0.0
        %854 = vmatprep.subr.mxu0 0.0
        %855 = vmatpush1.msra.mxu0 0.0
        %856 = vmatprep.subr.mxu0 0.0
        %857 = vmatpush1.msra.mxu0 0.0
        %858 = vmatprep.subr.mxu0 0.0
        %859 = vmatpush1.msra.mxu0 0.0
        %860 = vmatprep.subr.mxu0 0.0
        %861 = vmatpush1.msra.mxu0 0.0
        %862 = vmatprep.subr.mxu0 0.0
        %863 = vmatpush1.msra.mxu0 0.0
        %864 = vmatprep.subr.mxu0 0.0
        %865 = vmatpush1.msra.mxu0 0.0
        %866 = vmatprep.subr.mxu0 0.0
        %867 = vmatpush1.msra.mxu0 0.0
        %868 = vmatprep.subr.mxu0 0.0
        %869 = vmatpush1.msra.mxu0 0.0
        %870 = vmatprep.subr.mxu0 0.0
        %871 = vmatpush1.msra.mxu0 0.0
        %872 = vmatprep.subr.mxu0 0.0
        %873 = vmatpush1.msra.mxu0 0.0
        %874 = vmatprep.subr.mxu0 0.0
        %875 = vmatpush1.msra.mxu0 0.0
        %876 = vmatprep.subr.mxu0 0.0
        %877 = vmatpush1.msra.mxu0 0.0
        %878 = vmatprep.subr.mxu0 0.0
        %879 = vmatpush1.msra.mxu0 0.0
        %880 = vmatprep.subr.mxu0 0.0
        %881 = vmatpush1.msra.mxu0 0.0
        %882 = vmatprep.subr.mxu0 0.0
        %883 = vmatpush1.msra.mxu0 0.0
        %884 = vmatprep.mubr.f32.mxu0 0.0
        %885 = vmatmul.mubr.f32.gmra.mrb[0].mxu0 %v753
        %v886 = vpop.f32.mrb[0].mxu0
        %v887 = vadd.f32 %v595, %v886
        %v888 = vpop.f32.mrb[0].mxu0
        %889 = vmatprep.mubr.f32.mxu0 0.0
        %890 = vmatmul.mubr.f32.gmra.mrb[0].mxu0 %v755
        %v891 = vpop.f32.mrb[0].mxu0
        %v892 = vadd.f32 %v600, %v891
        %v893 = vpop.f32.mrb[0].mxu0
        %894 = vmatprep.mubr.f32.mxu0 0.0
        %895 = vmatmul.mubr.f32.gmra.mrb[0].mxu0 %v757
        %v896 = vpop.f32.mrb[0].mxu0
        %v897 = vadd.f32 %v605, %v896
        %v898 = vpop.f32.mrb[0].mxu0
        %899 = vmatprep.mubr.f32.mxu0 0.0
        %900 = vmatmul.mubr.f32.gmra.mrb[0].mxu0 %v759
        %v901 = vpop.f32.mrb[0].mxu0
        %v902 = vadd.f32 %v610, %v901
        %v903 = vpop.f32.mrb[0].mxu0
        %904 = vmatprep.mubr.f32.mxu0 0.0
        %905 = vmatmul.mubr.f32.gmra.mrb[0].mxu0 %v761
        %v906 = vpop.f32.mrb[0].mxu0
        %v907 = vadd.f32 %v615, %v906
        %v908 = vpop.f32.mrb[0].mxu0
        %909 = vmatprep.mubr.f32.mxu0 0.0
        %910 = vmatmul.mubr.f32.gmra.mrb[0].mxu0 %v763
        %v911 = vpop.f32.mrb[0].mxu0
        %v912 = vadd.f32 %v620, %v911
        %v913 = vpop.f32.mrb[0].mxu0
        %914 = vmatprep.mubr.f32.mxu0 0.0
        %915 = vmatmul.mubr.f32.gmra.mrb[0].mxu0 %v765
        %v916 = vpop.f32.mrb[0].mxu0
        %v917 = vadd.f32 %v625, %v916
        %v918 = vpop.f32.mrb[0].mxu0
        %919 = vmatprep.mubr.f32.mxu0 0.0
        %920 = vmatmul.mubr.f32.gmra.mrb[0].mxu0 %v767
        %v921 = vpop.f32.mrb[0].mxu0
        %v922 = vadd.f32 %v630, %v921
        %v923 = vpop.f32.mrb[0].mxu0
        %924 = vmatprep.mubr.f32.mxu0 0.0
        %925 = vmatmul.mubr.f32.gmra.mrb[0].mxu0 %v769
        %v926 = vpop.f32.mrb[0].mxu0
        %v927 = vadd.f32 %v635, %v926
        %v928 = vpop.f32.mrb[0].mxu0
        %929 = vmatprep.mubr.f32.mxu0 0.0
        %930 = vmatmul.mubr.f32.gmra.mrb[0].mxu0 %v771
        %v931 = vpop.f32.mrb[0].mxu0
        %v932 = vadd.f32 %v640, %v931
        %v933 = vpop.f32.mrb[0].mxu0
        %934 = vmatprep.mubr.f32.mxu0 0.0
        %935 = vmatmul.mubr.f32.gmra.mrb[0].mxu0 %v773
        %v936 = vpop.f32.mrb[0].mxu0
        %v937 = vadd.f32 %v645, %v936
        %v938 = vpop.f32.mrb[0].mxu0
        %939 = vmatprep.mubr.f32.mxu0 0.0
        %940 = vmatmul.mubr.f32.gmra.mrb[0].mxu0 %v775
        %v941 = vpop.f32.mrb[0].mxu0
        %v942 = vadd.f32 %v650, %v941
        %v943 = vpop.f32.mrb[0].mxu0
        %944 = vmatprep.mubr.f32.mxu0 0.0
        %945 = vmatmul.mubr.f32.gmra.mrb[0].mxu0 %v777
        %v946 = vpop.f32.mrb[0].mxu0
        %v947 = vadd.f32 %v655, %v946
        %v948 = vpop.f32.mrb[0].mxu0
        %949 = vmatprep.mubr.f32.mxu0 0.0
        %950 = vmatmul.mubr.f32.gmra.mrb[0].mxu0 %v779
        %v951 = vpop.f32.mrb[0].mxu0
        %v952 = vadd.f32 %v660, %v951
        %v953 = vpop.f32.mrb[0].mxu0
        %954 = vmatprep.mubr.f32.mxu0 0.0
        %955 = vmatmul.mubr.f32.gmra.mrb[0].mxu0 %v781
        %v956 = vpop.f32.mrb[0].mxu0
        %v957 = vadd.f32 %v665, %v956
        %v958 = vpop.f32.mrb[0].mxu0
        %959 = vmatprep.mubr.f32.mxu0 0.0
        %960 = vmatmul.mubr.f32.gmra.mrb[0].mxu0 %v783
        %v961 = vpop.f32.mrb[0].mxu0
        %v962 = vadd.f32 %v670, %v961
        %v963 = vpop.f32.mrb[0].mxu0
        %964 = vmatprep.mubr.f32.mxu0 0.0
        %965 = vmatmul.mubr.f32.gmra.mrb[0].mxu0 %v785
        %v966 = vpop.f32.mrb[0].mxu0
        %v967 = vadd.f32 %v675, %v966
        %v968 = vpop.f32.mrb[0].mxu0
        %969 = vmatprep.mubr.f32.mxu0 0.0
        %970 = vmatmul.mubr.f32.gmra.mrb[0].mxu0 %v787
        %v971 = vpop.f32.mrb[0].mxu0
        %v972 = vadd.f32 %v680, %v971
        %v973 = vpop.f32.mrb[0].mxu0
        %974 = vmatprep.mubr.f32.mxu0 0.0
        %975 = vmatmul.mubr.f32.gmra.mrb[0].mxu0 %v789
        %v976 = vpop.f32.mrb[0].mxu0
        %v977 = vadd.f32 %v685, %v976
        %v978 = vpop.f32.mrb[0].mxu0
        %979 = vmatprep.mubr.f32.mxu0 0.0
        %980 = vmatmul.mubr.f32.gmra.mrb[0].mxu0 %v791
        %v981 = vpop.f32.mrb[0].mxu0
        %v982 = vadd.f32 %v690, %v981
        %v983 = vpop.f32.mrb[0].mxu0
        %984 = vmatprep.mubr.f32.mxu0 0.0
        %985 = vmatmul.mubr.f32.gmra.mrb[0].mxu0 %v793
        %v986 = vpop.f32.mrb[0].mxu0
        %v987 = vadd.f32 %v695, %v986
        %v988 = vpop.f32.mrb[0].mxu0
        %989 = vmatprep.mubr.f32.mxu0 0.0
        %990 = vmatmul.mubr.f32.gmra.mrb[0].mxu0 %v795
        %v991 = vpop.f32.mrb[0].mxu0
        %v992 = vadd.f32 %v700, %v991
        %v993 = vpop.f32.mrb[0].mxu0
        %994 = vmatprep.mubr.f32.mxu0 0.0
        %995 = vmatmul.mubr.f32.gmra.mrb[0].mxu0 %v797
        %v996 = vpop.f32.mrb[0].mxu0
        %v997 = vadd.f32 %v705, %v996
        %v998 = vpop.f32.mrb[0].mxu0
        %999 = vmatprep.mubr.f32.mxu0 0.0
        %1000 = vmatmul.mubr.f32.gmra.mrb[0].mxu0 %v799
        %v1001 = vpop.f32.mrb[0].mxu0
        %v1002 = vadd.f32 %v710, %v1001
        %v1003 = vpop.f32.mrb[0].mxu0
        %1004 = vmatprep.mubr.f32.mxu0 0.0
        %1005 = vmatmul.mubr.f32.gmra.mrb[0].mxu0 %v801
        %v1006 = vpop.f32.mrb[0].mxu0
        %v1007 = vadd.f32 %v715, %v1006
        %v1008 = vpop.f32.mrb[0].mxu0
        %1009 = vmatprep.mubr.f32.mxu0 0.0
        %1010 = vmatmul.mubr.f32.gmra.mrb[0].mxu0 %v803
        %v1011 = vpop.f32.mrb[0].mxu0
        %v1012 = vadd.f32 %v720, %v1011
        %v1013 = vpop.f32.mrb[0].mxu0
        %1014 = vmatprep.mubr.f32.mxu0 0.0
        %1015 = vmatmul.mubr.f32.gmra.mrb[0].mxu0 %v805
        %v1016 = vpop.f32.mrb[0].mxu0
        %v1017 = vadd.f32 %v725, %v1016
        %v1018 = vpop.f32.mrb[0].mxu0
        %1019 = vmatprep.mubr.f32.mxu0 0.0
        %1020 = vmatmul.mubr.f32.gmra.mrb[0].mxu0 %v807
        %v1021 = vpop.f32.mrb[0].mxu0
        %v1022 = vadd.f32 %v730, %v1021
        %v1023 = vpop.f32.mrb[0].mxu0
        %1024 = vmatprep.mubr.f32.mxu0 0.0
        %1025 = vmatmul.mubr.f32.gmra.mrb[0].mxu0 %v809
        %v1026 = vpop.f32.mrb[0].mxu0
        %v1027 = vadd.f32 %v735, %v1026
        %v1028 = vpop.f32.mrb[0].mxu0
        %1029 = vmatprep.mubr.f32.mxu0 0.0
        %1030 = vmatmul.mubr.f32.gmra.mrb[0].mxu0 %v811
        %v1031 = vpop.f32.mrb[0].mxu0
        %v1032 = vadd.f32 %v740, %v1031
        %v1033 = vpop.f32.mrb[0].mxu0
        %1034 = vmatprep.mubr.f32.mxu0 0.0
        %1035 = vmatmul.mubr.f32.gmra.mrb[0].mxu0 %v813
        %v1036 = vpop.f32.mrb[0].mxu0
        %v1037 = vadd.f32 %v745, %v1036
        %v1038 = vpop.f32.mrb[0].mxu0
        %1039 = vmatprep.mubr.f32.mxu0 0.0
        %1040 = vmatmul.mubr.f32.gmra.mrb[0].mxu0 %v815
        %v1041 = vpop.f32.mrb[0].mxu0
        %v1042 = vadd.f32 %v750, %v1041
        %v1043 = vpop.f32.mrb[0].mxu0
        %1044 = vdwg.mxu0
        %vm1045 = vcmask 1045504
        %v1046 = vrot.slane %v273, 2
        %v1047 = vrot.slane %v274, 2
        %v1048 = vsel %vm1045, %v1046, %v1047
        %v1049 = vrot.slane %v275, 2
        %v1050 = vsel %vm1045, %v1047, %v1049
        %v1051 = vrot.slane %v276, 2
        %v1052 = vrot.slane %v277, 2
        %v1053 = vsel %vm1045, %v1051, %v1052
        %v1054 = vrot.slane %v278, 2
        %v1055 = vsel %vm1045, %v1052, %v1054
        %v1056 = vrot.slane %v279, 2
        %v1057 = vrot.slane %v280, 2
        %v1058 = vsel %vm1045, %v1056, %v1057
        %v1059 = vrot.slane %v281, 2
        %v1060 = vsel %vm1045, %v1057, %v1059
        %v1061 = vrot.slane %v282, 2
        %v1062 = vrot.slane %v283, 2
        %v1063 = vsel %vm1045, %v1061, %v1062
        %v1064 = vrot.slane %v284, 2
        %v1065 = vsel %vm1045, %v1062, %v1064
        %v1066 = vrot.slane %v285, 2
        %v1067 = vrot.slane %v286, 2
        %v1068 = vsel %vm1045, %v1066, %v1067
        %v1069 = vrot.slane %v287, 2
        %v1070 = vsel %vm1045, %v1067, %v1069
        %v1071 = vrot.slane %v288, 2
        %v1072 = vrot.slane %v289, 2
        %v1073 = vsel %vm1045, %v1071, %v1072
        %v1074 = vrot.slane %v290, 2
        %v1075 = vsel %vm1045, %v1072, %v1074
        %v1076 = vrot.slane %v291, 2
        %v1077 = vrot.slane %v292, 2
        %v1078 = vsel %vm1045, %v1076, %v1077
        %v1079 = vrot.slane %v293, 2
        %v1080 = vsel %vm1045, %v1077, %v1079
        %v1081 = vrot.slane %v294, 2
        %v1082 = vrot.slane %v295, 2
        %v1083 = vsel %vm1045, %v1081, %v1082
        %v1084 = vrot.slane %v296, 2
        %v1085 = vsel %vm1045, %v1082, %v1084
        %v1086 = vrot.slane %v297, 2
        %v1087 = vrot.slane %v298, 2
        %v1088 = vsel %vm1045, %v1086, %v1087
        %v1089 = vrot.slane %v299, 2
        %v1090 = vsel %vm1045, %v1087, %v1089
        %v1091 = vrot.slane %v300, 2
        %v1092 = vrot.slane %v301, 2
        %v1093 = vsel %vm1045, %v1091, %v1092
        %v1094 = vrot.slane %v302, 2
        %v1095 = vsel %vm1045, %v1092, %v1094
        %v1096 = vrot.slane %v303, 2
        %v1097 = vrot.slane %v304, 2
        %v1098 = vsel %vm1045, %v1096, %v1097
        %v1099 = vrot.slane %v305, 2
        %v1100 = vsel %vm1045, %v1097, %v1099
        %v1101 = vrot.slane %v306, 2
        %v1102 = vrot.slane %v307, 2
        %v1103 = vsel %vm1045, %v1101, %v1102
        %v1104 = vrot.slane %v308, 2
        %v1105 = vsel %vm1045, %v1102, %v1104
        %v1106 = vrot.slane %v309, 2
        %v1107 = vrot.slane %v310, 2
        %v1108 = vsel %vm1045, %v1106, %v1107
        %v1109 = vrot.slane %v311, 2
        %v1110 = vsel %vm1045, %v1107, %v1109
        %v1111 = vrot.slane %v312, 2
        %v1112 = vrot.slane %v313, 2
        %v1113 = vsel %vm1045, %v1111, %v1112
        %v1114 = vrot.slane %v314, 2
        %v1115 = vsel %vm1045, %v1112, %v1114
        %v1116 = vrot.slane %v315, 2
        %v1117 = vrot.slane %v316, 2
        %v1118 = vsel %vm1045, %v1116, %v1117
        %v1119 = vrot.slane %v317, 2
        %v1120 = vsel %vm1045, %v1117, %v1119
        %v1121 = vrot.slane %v318, 2
        %v1122 = vrot.slane %v319, 2
        %v1123 = vsel %vm1045, %v1121, %v1122
        %v1124 = vrot.slane %v320, 2
        %v1125 = vsel %vm1045, %v1122, %v1124
        %s1126 = scalar_lea.vmem [#allocation5], 8
        %v1127 = vld [vmem:[%s1126] sm:$0xf]
        %v1128 = vsel %vm459, %v1048, 0
        %v1130 = vsel %vm459, %v1050, 0
        %v1132 = vsel %vm459, %v1053, 0
        %v1134 = vsel %vm459, %v1055, 0
        %v1136 = vsel %vm459, %v1058, 0
        %v1138 = vsel %vm459, %v1060, 0
        %v1140 = vsel %vm459, %v1063, 0
        %v1142 = vsel %vm459, %v1065, 0
        %v1144 = vsel %vm459, %v1068, 0
        %v1146 = vsel %vm459, %v1070, 0
        %v1148 = vsel %vm459, %v1073, 0
        %v1150 = vsel %vm459, %v1075, 0
        %v1152 = vsel %vm459, %v1078, 0
        %v1154 = vsel %vm459, %v1080, 0
        %v1156 = vsel %vm459, %v1083, 0
        %v1158 = vsel %vm459, %v1085, 0
        %v1160 = vsel %vm459, %v1088, 0
        %v1162 = vsel %vm459, %v1090, 0
        %v1164 = vsel %vm459, %v1093, 0
        %v1166 = vsel %vm459, %v1095, 0
        %v1168 = vsel %vm459, %v1098, 0
        %v1170 = vsel %vm459, %v1100, 0
        %v1172 = vsel %vm459, %v1103, 0
        %v1174 = vsel %vm459, %v1105, 0
        %v1176 = vsel %vm459, %v1108, 0
        %v1178 = vsel %vm459, %v1110, 0
        %v1180 = vsel %vm459, %v1113, 0
        %v1182 = vsel %vm459, %v1115, 0
        %v1184 = vsel %vm459, %v1118, 0
        %v1186 = vsel %vm459, %v1120, 0
        %v1188 = vsel %vm459, %v1123, 0
        %v1190 = vsel %vm459, %v1125, 0
        %v1193 = vsel %vm524, %v1127, 0
        %1195 = vmatprep.subr.mxu0 0.0
        %1196 = vmatpush1.msra.mxu0 %v1193
        %1197 = vmatprep.subr.mxu0 0.0
        %1198 = vmatpush1.msra.mxu0 0.0
        %1199 = vmatprep.subr.mxu0 0.0
        %1200 = vmatpush1.msra.mxu0 0.0
        %1201 = vmatprep.subr.mxu0 0.0
        %1202 = vmatpush1.msra.mxu0 0.0
        %1203 = vmatprep.subr.mxu0 0.0
        %1204 = vmatpush1.msra.mxu0 0.0
        %1205 = vmatprep.subr.mxu0 0.0
        %1206 = vmatpush1.msra.mxu0 0.0
        %1207 = vmatprep.subr.mxu0 0.0
        %1208 = vmatpush1.msra.mxu0 0.0
        %1209 = vmatprep.subr.mxu0 0.0
        %1210 = vmatpush1.msra.mxu0 0.0
        %1211 = vmatprep.subr.mxu0 0.0
        %1212 = vmatpush1.msra.mxu0 0.0
        %1213 = vmatprep.subr.mxu0 0.0
        %1214 = vmatpush1.msra.mxu0 0.0
        %1215 = vmatprep.subr.mxu0 0.0
        %1216 = vmatpush1.msra.mxu0 0.0
        %1217 = vmatprep.subr.mxu0 0.0
        %1218 = vmatpush1.msra.mxu0 0.0
        %1219 = vmatprep.subr.mxu0 0.0
        %1220 = vmatpush1.msra.mxu0 0.0
        %1221 = vmatprep.subr.mxu0 0.0
        %1222 = vmatpush1.msra.mxu0 0.0
        %1223 = vmatprep.subr.mxu0 0.0
        %1224 = vmatpush1.msra.mxu0 0.0
        %1225 = vmatprep.subr.mxu0 0.0
        %1226 = vmatpush1.msra.mxu0 0.0
        %1227 = vmatprep.subr.mxu0 0.0
        %1228 = vmatpush1.msra.mxu0 0.0
        %1229 = vmatprep.subr.mxu0 0.0
        %1230 = vmatpush1.msra.mxu0 0.0
        %1231 = vmatprep.subr.mxu0 0.0
        %1232 = vmatpush1.msra.mxu0 0.0
        %1233 = vmatprep.subr.mxu0 0.0
        %1234 = vmatpush1.msra.mxu0 0.0
        %1235 = vmatprep.subr.mxu0 0.0
        %1236 = vmatpush1.msra.mxu0 0.0
        %1237 = vmatprep.subr.mxu0 0.0
        %1238 = vmatpush1.msra.mxu0 0.0
        %1239 = vmatprep.subr.mxu0 0.0
        %1240 = vmatpush1.msra.mxu0 0.0
        %1241 = vmatprep.subr.mxu0 0.0
        %1242 = vmatpush1.msra.mxu0 0.0
        %1243 = vmatprep.subr.mxu0 0.0
        %1244 = vmatpush1.msra.mxu0 0.0
        %1245 = vmatprep.subr.mxu0 0.0
        %1246 = vmatpush1.msra.mxu0 0.0
        %1247 = vmatprep.subr.mxu0 0.0
        %1248 = vmatpush1.msra.mxu0 0.0
        %1249 = vmatprep.subr.mxu0 0.0
        %1250 = vmatpush1.msra.mxu0 0.0
        %1251 = vmatprep.subr.mxu0 0.0
        %1252 = vmatpush1.msra.mxu0 0.0
        %1253 = vmatprep.subr.mxu0 0.0
        %1254 = vmatpush1.msra.mxu0 0.0
        %1255 = vmatprep.subr.mxu0 0.0
        %1256 = vmatpush1.msra.mxu0 0.0
        %1257 = vmatprep.subr.mxu0 0.0
        %1258 = vmatpush1.msra.mxu0 0.0
        %1259 = vmatprep.mubr.f32.mxu0 0.0
        %1260 = vmatmul.mubr.f32.gmra.mrb[0].mxu0 %v1128
        %v1261 = vpop.f32.mrb[0].mxu0
        %v1262 = vadd.f32 0.0, %v1261
        %v1263 = vpop.f32.mrb[0].mxu0
        %1264 = vmatprep.mubr.f32.mxu0 0.0
        %1265 = vmatmul.mubr.f32.gmra.mrb[0].mxu0 %v1130
        %v1266 = vpop.f32.mrb[0].mxu0
        %v1267 = vadd.f32 0.0, %v1266
        %v1268 = vpop.f32.mrb[0].mxu0
        %1269 = vmatprep.mubr.f32.mxu0 0.0
        %1270 = vmatmul.mubr.f32.gmra.mrb[0].mxu0 %v1132
        %v1271 = vpop.f32.mrb[0].mxu0
        %v1272 = vadd.f32 0.0, %v1271
        %v1273 = vpop.f32.mrb[0].mxu0
        %1274 = vmatprep.mubr.f32.mxu0 0.0
        %1275 = vmatmul.mubr.f32.gmra.mrb[0].mxu0 %v1134
        %v1276 = vpop.f32.mrb[0].mxu0
        %v1277 = vadd.f32 0.0, %v1276
        %v1278 = vpop.f32.mrb[0].mxu0
        %1279 = vmatprep.mubr.f32.mxu0 0.0
        %1280 = vmatmul.mubr.f32.gmra.mrb[0].mxu0 %v1136
        %v1281 = vpop.f32.mrb[0].mxu0
        %v1282 = vadd.f32 0.0, %v1281
        %v1283 = vpop.f32.mrb[0].mxu0
        %1284 = vmatprep.mubr.f32.mxu0 0.0
        %1285 = vmatmul.mubr.f32.gmra.mrb[0].mxu0 %v1138
        %v1286 = vpop.f32.mrb[0].mxu0
        %v1287 = vadd.f32 0.0, %v1286
        %v1288 = vpop.f32.mrb[0].mxu0
        %1289 = vmatprep.mubr.f32.mxu0 0.0
        %1290 = vmatmul.mubr.f32.gmra.mrb[0].mxu0 %v1140
        %v1291 = vpop.f32.mrb[0].mxu0
        %v1292 = vadd.f32 0.0, %v1291
        %v1293 = vpop.f32.mrb[0].mxu0
        %1294 = vmatprep.mubr.f32.mxu0 0.0
        %1295 = vmatmul.mubr.f32.gmra.mrb[0].mxu0 %v1142
        %v1296 = vpop.f32.mrb[0].mxu0
        %v1297 = vadd.f32 0.0, %v1296
        %v1298 = vpop.f32.mrb[0].mxu0
        %1299 = vmatprep.mubr.f32.mxu0 0.0
        %1300 = vmatmul.mubr.f32.gmra.mrb[0].mxu0 %v1144
        %v1301 = vpop.f32.mrb[0].mxu0
        %v1302 = vadd.f32 0.0, %v1301
        %v1303 = vpop.f32.mrb[0].mxu0
        %1304 = vmatprep.mubr.f32.mxu0 0.0
        %1305 = vmatmul.mubr.f32.gmra.mrb[0].mxu0 %v1146
        %v1306 = vpop.f32.mrb[0].mxu0
        %v1307 = vadd.f32 0.0, %v1306
        %v1308 = vpop.f32.mrb[0].mxu0
        %1309 = vmatprep.mubr.f32.mxu0 0.0
        %1310 = vmatmul.mubr.f32.gmra.mrb[0].mxu0 %v1148
        %v1311 = vpop.f32.mrb[0].mxu0
        %v1312 = vadd.f32 0.0, %v1311
        %v1313 = vpop.f32.mrb[0].mxu0
        %1314 = vmatprep.mubr.f32.mxu0 0.0
        %1315 = vmatmul.mubr.f32.gmra.mrb[0].mxu0 %v1150
        %v1316 = vpop.f32.mrb[0].mxu0
        %v1317 = vadd.f32 0.0, %v1316
        %v1318 = vpop.f32.mrb[0].mxu0
        %1319 = vmatprep.mubr.f32.mxu0 0.0
        %1320 = vmatmul.mubr.f32.gmra.mrb[0].mxu0 %v1152
        %v1321 = vpop.f32.mrb[0].mxu0
        %v1322 = vadd.f32 0.0, %v1321
        %v1323 = vpop.f32.mrb[0].mxu0
        %1324 = vmatprep.mubr.f32.mxu0 0.0
        %1325 = vmatmul.mubr.f32.gmra.mrb[0].mxu0 %v1154
        %v1326 = vpop.f32.mrb[0].mxu0
        %v1327 = vadd.f32 0.0, %v1326
        %v1328 = vpop.f32.mrb[0].mxu0
        %1329 = vmatprep.mubr.f32.mxu0 0.0
        %1330 = vmatmul.mubr.f32.gmra.mrb[0].mxu0 %v1156
        %v1331 = vpop.f32.mrb[0].mxu0
        %v1332 = vadd.f32 0.0, %v1331
        %v1333 = vpop.f32.mrb[0].mxu0
        %1334 = vmatprep.mubr.f32.mxu0 0.0
        %1335 = vmatmul.mubr.f32.gmra.mrb[0].mxu0 %v1158
        %v1336 = vpop.f32.mrb[0].mxu0
        %v1337 = vadd.f32 0.0, %v1336
        %v1338 = vpop.f32.mrb[0].mxu0
        %1339 = vmatprep.mubr.f32.mxu0 0.0
        %1340 = vmatmul.mubr.f32.gmra.mrb[0].mxu0 %v1160
        %v1341 = vpop.f32.mrb[0].mxu0
        %v1342 = vadd.f32 0.0, %v1341
        %v1343 = vpop.f32.mrb[0].mxu0
        %1344 = vmatprep.mubr.f32.mxu0 0.0
        %1345 = vmatmul.mubr.f32.gmra.mrb[0].mxu0 %v1162
        %v1346 = vpop.f32.mrb[0].mxu0
        %v1347 = vadd.f32 0.0, %v1346
        %v1348 = vpop.f32.mrb[0].mxu0
        %1349 = vmatprep.mubr.f32.mxu0 0.0
        %1350 = vmatmul.mubr.f32.gmra.mrb[0].mxu0 %v1164
        %v1351 = vpop.f32.mrb[0].mxu0
        %v1352 = vadd.f32 0.0, %v1351
        %v1353 = vpop.f32.mrb[0].mxu0
        %1354 = vmatprep.mubr.f32.mxu0 0.0
        %1355 = vmatmul.mubr.f32.gmra.mrb[0].mxu0 %v1166
        %v1356 = vpop.f32.mrb[0].mxu0
        %v1357 = vadd.f32 0.0, %v1356
        %v1358 = vpop.f32.mrb[0].mxu0
        %1359 = vmatprep.mubr.f32.mxu0 0.0
        %1360 = vmatmul.mubr.f32.gmra.mrb[0].mxu0 %v1168
        %v1361 = vpop.f32.mrb[0].mxu0
        %v1362 = vadd.f32 0.0, %v1361
        %v1363 = vpop.f32.mrb[0].mxu0
        %1364 = vmatprep.mubr.f32.mxu0 0.0
        %1365 = vmatmul.mubr.f32.gmra.mrb[0].mxu0 %v1170
        %v1366 = vpop.f32.mrb[0].mxu0
        %v1367 = vadd.f32 0.0, %v1366
        %v1368 = vpop.f32.mrb[0].mxu0
        %1369 = vmatprep.mubr.f32.mxu0 0.0
        %1370 = vmatmul.mubr.f32.gmra.mrb[0].mxu0 %v1172
        %v1371 = vpop.f32.mrb[0].mxu0
        %v1372 = vadd.f32 0.0, %v1371
        %v1373 = vpop.f32.mrb[0].mxu0
        %1374 = vmatprep.mubr.f32.mxu0 0.0
        %1375 = vmatmul.mubr.f32.gmra.mrb[0].mxu0 %v1174
        %v1376 = vpop.f32.mrb[0].mxu0
        %v1377 = vadd.f32 0.0, %v1376
        %v1378 = vpop.f32.mrb[0].mxu0
        %1379 = vmatprep.mubr.f32.mxu0 0.0
        %1380 = vmatmul.mubr.f32.gmra.mrb[0].mxu0 %v1176
        %v1381 = vpop.f32.mrb[0].mxu0
        %v1382 = vadd.f32 0.0, %v1381
        %v1383 = vpop.f32.mrb[0].mxu0
        %1384 = vmatprep.mubr.f32.mxu0 0.0
        %1385 = vmatmul.mubr.f32.gmra.mrb[0].mxu0 %v1178
        %v1386 = vpop.f32.mrb[0].mxu0
        %v1387 = vadd.f32 0.0, %v1386
        %v1388 = vpop.f32.mrb[0].mxu0
        %1389 = vmatprep.mubr.f32.mxu0 0.0
        %1390 = vmatmul.mubr.f32.gmra.mrb[0].mxu0 %v1180
        %v1391 = vpop.f32.mrb[0].mxu0
        %v1392 = vadd.f32 0.0, %v1391
        %v1393 = vpop.f32.mrb[0].mxu0
        %1394 = vmatprep.mubr.f32.mxu0 0.0
        %1395 = vmatmul.mubr.f32.gmra.mrb[0].mxu0 %v1182
        %v1396 = vpop.f32.mrb[0].mxu0
        %v1397 = vadd.f32 0.0, %v1396
        %v1398 = vpop.f32.mrb[0].mxu0
        %1399 = vmatprep.mubr.f32.mxu0 0.0
        %1400 = vmatmul.mubr.f32.gmra.mrb[0].mxu0 %v1184
        %v1401 = vpop.f32.mrb[0].mxu0
        %v1402 = vadd.f32 0.0, %v1401
        %v1403 = vpop.f32.mrb[0].mxu0
        %1404 = vmatprep.mubr.f32.mxu0 0.0
        %1405 = vmatmul.mubr.f32.gmra.mrb[0].mxu0 %v1186
        %v1406 = vpop.f32.mrb[0].mxu0
        %v1407 = vadd.f32 0.0, %v1406
        %v1408 = vpop.f32.mrb[0].mxu0
        %1409 = vmatprep.mubr.f32.mxu0 0.0
        %1410 = vmatmul.mubr.f32.gmra.mrb[0].mxu0 %v1188
        %v1411 = vpop.f32.mrb[0].mxu0
        %v1412 = vadd.f32 0.0, %v1411
        %v1413 = vpop.f32.mrb[0].mxu0
        %1414 = vmatprep.mubr.f32.mxu0 0.0
        %1415 = vmatmul.mubr.f32.gmra.mrb[0].mxu0 %v1190
        %v1416 = vpop.f32.mrb[0].mxu0
        %v1417 = vadd.f32 0.0, %v1416
        %v1418 = vpop.f32.mrb[0].mxu0
        %1419 = vdwg.mxu0
        %v1420 = vadd.f32 %v887, %v1262
        %v1421 = vadd.f32 %v892, %v1267
        %v1422 = vadd.f32 %v897, %v1272
        %v1423 = vadd.f32 %v902, %v1277
        %v1424 = vadd.f32 %v907, %v1282
        %v1425 = vadd.f32 %v912, %v1287
        %v1426 = vadd.f32 %v917, %v1292
        %v1427 = vadd.f32 %v922, %v1297
        %v1428 = vadd.f32 %v927, %v1302
        %v1429 = vadd.f32 %v932, %v1307
        %v1430 = vadd.f32 %v937, %v1312
        %v1431 = vadd.f32 %v942, %v1317
        %v1432 = vadd.f32 %v947, %v1322
        %v1433 = vadd.f32 %v952, %v1327
        %v1434 = vadd.f32 %v957, %v1332
        %v1435 = vadd.f32 %v962, %v1337
        %v1436 = vadd.f32 %v967, %v1342
        %v1437 = vadd.f32 %v972, %v1347
        %v1438 = vadd.f32 %v977, %v1352
        %v1439 = vadd.f32 %v982, %v1357
        %v1440 = vadd.f32 %v987, %v1362
        %v1441 = vadd.f32 %v992, %v1367
        %v1442 = vadd.f32 %v997, %v1372
        %v1443 = vadd.f32 %v1002, %v1377
        %v1444 = vadd.f32 %v1007, %v1382
        %v1445 = vadd.f32 %v1012, %v1387
        %v1446 = vadd.f32 %v1017, %v1392
        %v1447 = vadd.f32 %v1022, %v1397
        %v1448 = vadd.f32 %v1027, %v1402
        %v1449 = vadd.f32 %v1032, %v1407
        %v1450 = vadd.f32 %v1037, %v1412
        %v1451 = vadd.f32 %v1042, %v1417
        %s1452 = scalar_lea.vmem [#allocation5], 12
        %v1453 = vld [vmem:[%s1452] sm:$0xf]
        %v1455 = vsel %vm459, %v321, 0
        %v1458 = vsel %vm459, %v322, 0
        %v1461 = vsel %vm524, %v1453, 0
        %1463 = vmatprep.subr.mxu0 0.0
        %1464 = vmatpush1.msra.mxu0 %v1461
        %1465 = vmatprep.subr.mxu0 0.0
        %1466 = vmatpush1.msra.mxu0 0.0
        %1467 = vmatprep.subr.mxu0 0.0
        %1468 = vmatpush1.msra.mxu0 0.0
        %1469 = vmatprep.subr.mxu0 0.0
        %1470 = vmatpush1.msra.mxu0 0.0
        %1471 = vmatprep.subr.mxu0 0.0
        %1472 = vmatpush1.msra.mxu0 0.0
        %1473 = vmatprep.subr.mxu0 0.0
        %1474 = vmatpush1.msra.mxu0 0.0
        %1475 = vmatprep.subr.mxu0 0.0
        %1476 = vmatpush1.msra.mxu0 0.0
        %1477 = vmatprep.subr.mxu0 0.0
        %1478 = vmatpush1.msra.mxu0 0.0
        %1479 = vmatprep.subr.mxu0 0.0
        %1480 = vmatpush1.msra.mxu0 0.0
        %1481 = vmatprep.subr.mxu0 0.0
        %1482 = vmatpush1.msra.mxu0 0.0
        %1483 = vmatprep.subr.mxu0 0.0
        %1484 = vmatpush1.msra.mxu0 0.0
        %1485 = vmatprep.subr.mxu0 0.0
        %1486 = vmatpush1.msra.mxu0 0.0
        %1487 = vmatprep.subr.mxu0 0.0
        %1488 = vmatpush1.msra.mxu0 0.0
        %1489 = vmatprep.subr.mxu0 0.0
        %1490 = vmatpush1.msra.mxu0 0.0
        %1491 = vmatprep.subr.mxu0 0.0
        %1492 = vmatpush1.msra.mxu0 0.0
        %1493 = vmatprep.subr.mxu0 0.0
        %1494 = vmatpush1.msra.mxu0 0.0
        %1495 = vmatprep.subr.mxu0 0.0
        %1496 = vmatpush1.msra.mxu0 0.0
        %1497 = vmatprep.subr.mxu0 0.0
        %1498 = vmatpush1.msra.mxu0 0.0
        %1499 = vmatprep.subr.mxu0 0.0
        %1500 = vmatpush1.msra.mxu0 0.0
        %1501 = vmatprep.subr.mxu0 0.0
        %1502 = vmatpush1.msra.mxu0 0.0
        %1503 = vmatprep.subr.mxu0 0.0
        %1504 = vmatpush1.msra.mxu0 0.0
        %1505 = vmatprep.subr.mxu0 0.0
        %1506 = vmatpush1.msra.mxu0 0.0
        %1507 = vmatprep.subr.mxu0 0.0
        %1508 = vmatpush1.msra.mxu0 0.0
        %1509 = vmatprep.subr.mxu0 0.0
        %1510 = vmatpush1.msra.mxu0 0.0
        %1511 = vmatprep.subr.mxu0 0.0
        %1512 = vmatpush1.msra.mxu0 0.0
        %1513 = vmatprep.subr.mxu0 0.0
        %1514 = vmatpush1.msra.mxu0 0.0
        %1515 = vmatprep.subr.mxu0 0.0
        %1516 = vmatpush1.msra.mxu0 0.0
        %1517 = vmatprep.subr.mxu0 0.0
        %1518 = vmatpush1.msra.mxu0 0.0
        %1519 = vmatprep.subr.mxu0 0.0
        %1520 = vmatpush1.msra.mxu0 0.0
        %1521 = vmatprep.subr.mxu0 0.0
        %1522 = vmatpush1.msra.mxu0 0.0
        %1523 = vmatprep.subr.mxu0 0.0
        %1524 = vmatpush1.msra.mxu0 0.0
        %1525 = vmatprep.subr.mxu0 0.0
        %1526 = vmatpush1.msra.mxu0 0.0
        %1527 = vmatprep.mubr.f32.mxu0 0.0
        %1528 = vmatmul.mubr.f32.gmra.mrb[0].mxu0 %v757
        %v1529 = vpop.f32.mrb[0].mxu0
        %v1530 = vadd.f32 0.0, %v1529
        %v1531 = vpop.f32.mrb[0].mxu0
        %1532 = vmatprep.mubr.f32.mxu0 0.0
        %1533 = vmatmul.mubr.f32.gmra.mrb[0].mxu0 %v759
        %v1534 = vpop.f32.mrb[0].mxu0
        %v1535 = vadd.f32 0.0, %v1534
        %v1536 = vpop.f32.mrb[0].mxu0
        %1537 = vmatprep.mubr.f32.mxu0 0.0
        %1538 = vmatmul.mubr.f32.gmra.mrb[0].mxu0 %v761
        %v1539 = vpop.f32.mrb[0].mxu0
        %v1540 = vadd.f32 0.0, %v1539
        %v1541 = vpop.f32.mrb[0].mxu0
        %1542 = vmatprep.mubr.f32.mxu0 0.0
        %1543 = vmatmul.mubr.f32.gmra.mrb[0].mxu0 %v763
        %v1544 = vpop.f32.mrb[0].mxu0
        %v1545 = vadd.f32 0.0, %v1544
        %v1546 = vpop.f32.mrb[0].mxu0
        %1547 = vmatprep.mubr.f32.mxu0 0.0
        %1548 = vmatmul.mubr.f32.gmra.mrb[0].mxu0 %v765
        %v1549 = vpop.f32.mrb[0].mxu0
        %v1550 = vadd.f32 0.0, %v1549
        %v1551 = vpop.f32.mrb[0].mxu0
        %1552 = vmatprep.mubr.f32.mxu0 0.0
        %1553 = vmatmul.mubr.f32.gmra.mrb[0].mxu0 %v767
        %v1554 = vpop.f32.mrb[0].mxu0
        %v1555 = vadd.f32 0.0, %v1554
        %v1556 = vpop.f32.mrb[0].mxu0
        %1557 = vmatprep.mubr.f32.mxu0 0.0
        %1558 = vmatmul.mubr.f32.gmra.mrb[0].mxu0 %v769
        %v1559 = vpop.f32.mrb[0].mxu0
        %v1560 = vadd.f32 0.0, %v1559
        %v1561 = vpop.f32.mrb[0].mxu0
        %1562 = vmatprep.mubr.f32.mxu0 0.0
        %1563 = vmatmul.mubr.f32.gmra.mrb[0].mxu0 %v771
        %v1564 = vpop.f32.mrb[0].mxu0
        %v1565 = vadd.f32 0.0, %v1564
        %v1566 = vpop.f32.mrb[0].mxu0
        %1567 = vmatprep.mubr.f32.mxu0 0.0
        %1568 = vmatmul.mubr.f32.gmra.mrb[0].mxu0 %v773
        %v1569 = vpop.f32.mrb[0].mxu0
        %v1570 = vadd.f32 0.0, %v1569
        %v1571 = vpop.f32.mrb[0].mxu0
        %1572 = vmatprep.mubr.f32.mxu0 0.0
        %1573 = vmatmul.mubr.f32.gmra.mrb[0].mxu0 %v775
        %v1574 = vpop.f32.mrb[0].mxu0
        %v1575 = vadd.f32 0.0, %v1574
        %v1576 = vpop.f32.mrb[0].mxu0
        %1577 = vmatprep.mubr.f32.mxu0 0.0
        %1578 = vmatmul.mubr.f32.gmra.mrb[0].mxu0 %v777
        %v1579 = vpop.f32.mrb[0].mxu0
        %v1580 = vadd.f32 0.0, %v1579
        %v1581 = vpop.f32.mrb[0].mxu0
        %1582 = vmatprep.mubr.f32.mxu0 0.0
        %1583 = vmatmul.mubr.f32.gmra.mrb[0].mxu0 %v779
        %v1584 = vpop.f32.mrb[0].mxu0
        %v1585 = vadd.f32 0.0, %v1584
        %v1586 = vpop.f32.mrb[0].mxu0
        %1587 = vmatprep.mubr.f32.mxu0 0.0
        %1588 = vmatmul.mubr.f32.gmra.mrb[0].mxu0 %v781
        %v1589 = vpop.f32.mrb[0].mxu0
        %v1590 = vadd.f32 0.0, %v1589
        %v1591 = vpop.f32.mrb[0].mxu0
        %1592 = vmatprep.mubr.f32.mxu0 0.0
        %1593 = vmatmul.mubr.f32.gmra.mrb[0].mxu0 %v783
        %v1594 = vpop.f32.mrb[0].mxu0
        %v1595 = vadd.f32 0.0, %v1594
        %v1596 = vpop.f32.mrb[0].mxu0
        %1597 = vmatprep.mubr.f32.mxu0 0.0
        %1598 = vmatmul.mubr.f32.gmra.mrb[0].mxu0 %v785
        %v1599 = vpop.f32.mrb[0].mxu0
        %v1600 = vadd.f32 0.0, %v1599
        %v1601 = vpop.f32.mrb[0].mxu0
        %1602 = vmatprep.mubr.f32.mxu0 0.0
        %1603 = vmatmul.mubr.f32.gmra.mrb[0].mxu0 %v787
        %v1604 = vpop.f32.mrb[0].mxu0
        %v1605 = vadd.f32 0.0, %v1604
        %v1606 = vpop.f32.mrb[0].mxu0
        %1607 = vmatprep.mubr.f32.mxu0 0.0
        %1608 = vmatmul.mubr.f32.gmra.mrb[0].mxu0 %v789
        %v1609 = vpop.f32.mrb[0].mxu0
        %v1610 = vadd.f32 0.0, %v1609
        %v1611 = vpop.f32.mrb[0].mxu0
        %1612 = vmatprep.mubr.f32.mxu0 0.0
        %1613 = vmatmul.mubr.f32.gmra.mrb[0].mxu0 %v791
        %v1614 = vpop.f32.mrb[0].mxu0
        %v1615 = vadd.f32 0.0, %v1614
        %v1616 = vpop.f32.mrb[0].mxu0
        %1617 = vmatprep.mubr.f32.mxu0 0.0
        %1618 = vmatmul.mubr.f32.gmra.mrb[0].mxu0 %v793
        %v1619 = vpop.f32.mrb[0].mxu0
        %v1620 = vadd.f32 0.0, %v1619
        %v1621 = vpop.f32.mrb[0].mxu0
        %1622 = vmatprep.mubr.f32.mxu0 0.0
        %1623 = vmatmul.mubr.f32.gmra.mrb[0].mxu0 %v795
        %v1624 = vpop.f32.mrb[0].mxu0
        %v1625 = vadd.f32 0.0, %v1624
        %v1626 = vpop.f32.mrb[0].mxu0
        %1627 = vmatprep.mubr.f32.mxu0 0.0
        %1628 = vmatmul.mubr.f32.gmra.mrb[0].mxu0 %v797
        %v1629 = vpop.f32.mrb[0].mxu0
        %v1630 = vadd.f32 0.0, %v1629
        %v1631 = vpop.f32.mrb[0].mxu0
        %1632 = vmatprep.mubr.f32.mxu0 0.0
        %1633 = vmatmul.mubr.f32.gmra.mrb[0].mxu0 %v799
        %v1634 = vpop.f32.mrb[0].mxu0
        %v1635 = vadd.f32 0.0, %v1634
        %v1636 = vpop.f32.mrb[0].mxu0
        %1637 = vmatprep.mubr.f32.mxu0 0.0
        %1638 = vmatmul.mubr.f32.gmra.mrb[0].mxu0 %v801
        %v1639 = vpop.f32.mrb[0].mxu0
        %v1640 = vadd.f32 0.0, %v1639
        %v1641 = vpop.f32.mrb[0].mxu0
        %1642 = vmatprep.mubr.f32.mxu0 0.0
        %1643 = vmatmul.mubr.f32.gmra.mrb[0].mxu0 %v803
        %v1644 = vpop.f32.mrb[0].mxu0
        %v1645 = vadd.f32 0.0, %v1644
        %v1646 = vpop.f32.mrb[0].mxu0
        %1647 = vmatprep.mubr.f32.mxu0 0.0
        %1648 = vmatmul.mubr.f32.gmra.mrb[0].mxu0 %v805
        %v1649 = vpop.f32.mrb[0].mxu0
        %v1650 = vadd.f32 0.0, %v1649
        %v1651 = vpop.f32.mrb[0].mxu0
        %1652 = vmatprep.mubr.f32.mxu0 0.0
        %1653 = vmatmul.mubr.f32.gmra.mrb[0].mxu0 %v807
        %v1654 = vpop.f32.mrb[0].mxu0
        %v1655 = vadd.f32 0.0, %v1654
        %v1656 = vpop.f32.mrb[0].mxu0
        %1657 = vmatprep.mubr.f32.mxu0 0.0
        %1658 = vmatmul.mubr.f32.gmra.mrb[0].mxu0 %v809
        %v1659 = vpop.f32.mrb[0].mxu0
        %v1660 = vadd.f32 0.0, %v1659
        %v1661 = vpop.f32.mrb[0].mxu0
        %1662 = vmatprep.mubr.f32.mxu0 0.0
        %1663 = vmatmul.mubr.f32.gmra.mrb[0].mxu0 %v811
        %v1664 = vpop.f32.mrb[0].mxu0
        %v1665 = vadd.f32 0.0, %v1664
        %v1666 = vpop.f32.mrb[0].mxu0
        %1667 = vmatprep.mubr.f32.mxu0 0.0
        %1668 = vmatmul.mubr.f32.gmra.mrb[0].mxu0 %v813
        %v1669 = vpop.f32.mrb[0].mxu0
        %v1670 = vadd.f32 0.0, %v1669
        %v1671 = vpop.f32.mrb[0].mxu0
        %1672 = vmatprep.mubr.f32.mxu0 0.0
        %1673 = vmatmul.mubr.f32.gmra.mrb[0].mxu0 %v815
        %v1674 = vpop.f32.mrb[0].mxu0
        %v1675 = vadd.f32 0.0, %v1674
        %v1676 = vpop.f32.mrb[0].mxu0
        %1677 = vmatprep.mubr.f32.mxu0 0.0
        %1678 = vmatmul.mubr.f32.gmra.mrb[0].mxu0 %v1455
        %v1679 = vpop.f32.mrb[0].mxu0
        %v1680 = vadd.f32 0.0, %v1679
        %v1681 = vpop.f32.mrb[0].mxu0
        %1682 = vmatprep.mubr.f32.mxu0 0.0
        %1683 = vmatmul.mubr.f32.gmra.mrb[0].mxu0 %v1458
        %v1684 = vpop.f32.mrb[0].mxu0
        %v1685 = vadd.f32 0.0, %v1684
        %v1686 = vpop.f32.mrb[0].mxu0
        %1687 = vdwg.mxu0
        %v1688 = vadd.f32 %v1420, %v1530
        %v1689 = vadd.f32 %v1421, %v1535
        %v1690 = vadd.f32 %v1422, %v1540
        %v1691 = vadd.f32 %v1423, %v1545
        %v1692 = vadd.f32 %v1424, %v1550
        %v1693 = vadd.f32 %v1425, %v1555
        %v1694 = vadd.f32 %v1426, %v1560
        %v1695 = vadd.f32 %v1427, %v1565
        %v1696 = vadd.f32 %v1428, %v1570
        %v1697 = vadd.f32 %v1429, %v1575
        %v1698 = vadd.f32 %v1430, %v1580
        %v1699 = vadd.f32 %v1431, %v1585
        %v1700 = vadd.f32 %v1432, %v1590
        %v1701 = vadd.f32 %v1433, %v1595
        %v1702 = vadd.f32 %v1434, %v1600
        %v1703 = vadd.f32 %v1435, %v1605
        %v1704 = vadd.f32 %v1436, %v1610
        %v1705 = vadd.f32 %v1437, %v1615
        %v1706 = vadd.f32 %v1438, %v1620
        %v1707 = vadd.f32 %v1439, %v1625
        %v1708 = vadd.f32 %v1440, %v1630
        %v1709 = vadd.f32 %v1441, %v1635
        %v1710 = vadd.f32 %v1442, %v1640
        %v1711 = vadd.f32 %v1443, %v1645
        %v1712 = vadd.f32 %v1444, %v1650
        %v1713 = vadd.f32 %v1445, %v1655
        %v1714 = vadd.f32 %v1446, %v1660
        %v1715 = vadd.f32 %v1447, %v1665
        %v1716 = vadd.f32 %v1448, %v1670
        %v1717 = vadd.f32 %v1449, %v1675
        %v1718 = vadd.f32 %v1450, %v1680
        %v1719 = vadd.f32 %v1451, %v1685
        %v1721 = vrot.slane %v321, 1
        %v1722 = vrot.slane %v322, 1
        %v1723 = vsel %vm376, %v1721, %v1722
        %v1724 = vrot.slane %v323, 1
        %v1725 = vsel %vm376, %v1722, %v1724
        %s1726 = scalar_lea.vmem [#allocation5], 16
        %v1727 = vld [vmem:[%s1726] sm:$0xf]
        %v1728 = vsel %vm459, %v1723, 0
        %v1730 = vsel %vm459, %v1725, 0
        %v1733 = vsel %vm524, %v1727, 0
        %1735 = vmatprep.subr.mxu0 0.0
        %1736 = vmatpush1.msra.mxu0 %v1733
        %1737 = vmatprep.subr.mxu0 0.0
        %1738 = vmatpush1.msra.mxu0 0.0
        %1739 = vmatprep.subr.mxu0 0.0
        %1740 = vmatpush1.msra.mxu0 0.0
        %1741 = vmatprep.subr.mxu0 0.0
        %1742 = vmatpush1.msra.mxu0 0.0
        %1743 = vmatprep.subr.mxu0 0.0
        %1744 = vmatpush1.msra.mxu0 0.0
        %1745 = vmatprep.subr.mxu0 0.0
        %1746 = vmatpush1.msra.mxu0 0.0
        %1747 = vmatprep.subr.mxu0 0.0
        %1748 = vmatpush1.msra.mxu0 0.0
        %1749 = vmatprep.subr.mxu0 0.0
        %1750 = vmatpush1.msra.mxu0 0.0
        %1751 = vmatprep.subr.mxu0 0.0
        %1752 = vmatpush1.msra.mxu0 0.0
        %1753 = vmatprep.subr.mxu0 0.0
        %1754 = vmatpush1.msra.mxu0 0.0
        %1755 = vmatprep.subr.mxu0 0.0
        %1756 = vmatpush1.msra.mxu0 0.0
        %1757 = vmatprep.subr.mxu0 0.0
        %1758 = vmatpush1.msra.mxu0 0.0
        %1759 = vmatprep.subr.mxu0 0.0
        %1760 = vmatpush1.msra.mxu0 0.0
        %1761 = vmatprep.subr.mxu0 0.0
        %1762 = vmatpush1.msra.mxu0 0.0
        %1763 = vmatprep.subr.mxu0 0.0
        %1764 = vmatpush1.msra.mxu0 0.0
        %1765 = vmatprep.subr.mxu0 0.0
        %1766 = vmatpush1.msra.mxu0 0.0
        %1767 = vmatprep.subr.mxu0 0.0
        %1768 = vmatpush1.msra.mxu0 0.0
        %1769 = vmatprep.subr.mxu0 0.0
        %1770 = vmatpush1.msra.mxu0 0.0
        %1771 = vmatprep.subr.mxu0 0.0
        %1772 = vmatpush1.msra.mxu0 0.0
        %1773 = vmatprep.subr.mxu0 0.0
        %1774 = vmatpush1.msra.mxu0 0.0
        %1775 = vmatprep.subr.mxu0 0.0
        %1776 = vmatpush1.msra.mxu0 0.0
        %1777 = vmatprep.subr.mxu0 0.0
        %1778 = vmatpush1.msra.mxu0 0.0
        %1779 = vmatprep.subr.mxu0 0.0
        %1780 = vmatpush1.msra.mxu0 0.0
        %1781 = vmatprep.subr.mxu0 0.0
        %1782 = vmatpush1.msra.mxu0 0.0
        %1783 = vmatprep.subr.mxu0 0.0
        %1784 = vmatpush1.msra.mxu0 0.0
        %1785 = vmatprep.subr.mxu0 0.0
        %1786 = vmatpush1.msra.mxu0 0.0
        %1787 = vmatprep.subr.mxu0 0.0
        %1788 = vmatpush1.msra.mxu0 0.0
        %1789 = vmatprep.subr.mxu0 0.0
        %1790 = vmatpush1.msra.mxu0 0.0
        %1791 = vmatprep.subr.mxu0 0.0
        %1792 = vmatpush1.msra.mxu0 0.0
        %1793 = vmatprep.subr.mxu0 0.0
        %1794 = vmatpush1.msra.mxu0 0.0
        %1795 = vmatprep.subr.mxu0 0.0
        %1796 = vmatpush1.msra.mxu0 0.0
        %1797 = vmatprep.subr.mxu0 0.0
        %1798 = vmatpush1.msra.mxu0 0.0
        %1799 = vmatprep.mubr.f32.mxu0 0.0
        %1800 = vmatmul.mubr.f32.gmra.mrb[0].mxu0 %v464
        %v1801 = vpop.f32.mrb[0].mxu0
        %v1802 = vadd.f32 0.0, %v1801
        %v1803 = vpop.f32.mrb[0].mxu0
        %1804 = vmatprep.mubr.f32.mxu0 0.0
        %1805 = vmatmul.mubr.f32.gmra.mrb[0].mxu0 %v466
        %v1806 = vpop.f32.mrb[0].mxu0
        %v1807 = vadd.f32 0.0, %v1806
        %v1808 = vpop.f32.mrb[0].mxu0
        %1809 = vmatprep.mubr.f32.mxu0 0.0
        %1810 = vmatmul.mubr.f32.gmra.mrb[0].mxu0 %v468
        %v1811 = vpop.f32.mrb[0].mxu0
        %v1812 = vadd.f32 0.0, %v1811
        %v1813 = vpop.f32.mrb[0].mxu0
        %1814 = vmatprep.mubr.f32.mxu0 0.0
        %1815 = vmatmul.mubr.f32.gmra.mrb[0].mxu0 %v470
        %v1816 = vpop.f32.mrb[0].mxu0
        %v1817 = vadd.f32 0.0, %v1816
        %v1818 = vpop.f32.mrb[0].mxu0
        %1819 = vmatprep.mubr.f32.mxu0 0.0
        %1820 = vmatmul.mubr.f32.gmra.mrb[0].mxu0 %v472
        %v1821 = vpop.f32.mrb[0].mxu0
        %v1822 = vadd.f32 0.0, %v1821
        %v1823 = vpop.f32.mrb[0].mxu0
        %1824 = vmatprep.mubr.f32.mxu0 0.0
        %1825 = vmatmul.mubr.f32.gmra.mrb[0].mxu0 %v474
        %v1826 = vpop.f32.mrb[0].mxu0
        %v1827 = vadd.f32 0.0, %v1826
        %v1828 = vpop.f32.mrb[0].mxu0
        %1829 = vmatprep.mubr.f32.mxu0 0.0
        %1830 = vmatmul.mubr.f32.gmra.mrb[0].mxu0 %v476
        %v1831 = vpop.f32.mrb[0].mxu0
        %v1832 = vadd.f32 0.0, %v1831
        %v1833 = vpop.f32.mrb[0].mxu0
        %1834 = vmatprep.mubr.f32.mxu0 0.0
        %1835 = vmatmul.mubr.f32.gmra.mrb[0].mxu0 %v478
        %v1836 = vpop.f32.mrb[0].mxu0
        %v1837 = vadd.f32 0.0, %v1836
        %v1838 = vpop.f32.mrb[0].mxu0
        %1839 = vmatprep.mubr.f32.mxu0 0.0
        %1840 = vmatmul.mubr.f32.gmra.mrb[0].mxu0 %v480
        %v1841 = vpop.f32.mrb[0].mxu0
        %v1842 = vadd.f32 0.0, %v1841
        %v1843 = vpop.f32.mrb[0].mxu0
        %1844 = vmatprep.mubr.f32.mxu0 0.0
        %1845 = vmatmul.mubr.f32.gmra.mrb[0].mxu0 %v482
        %v1846 = vpop.f32.mrb[0].mxu0
        %v1847 = vadd.f32 0.0, %v1846
        %v1848 = vpop.f32.mrb[0].mxu0
        %1849 = vmatprep.mubr.f32.mxu0 0.0
        %1850 = vmatmul.mubr.f32.gmra.mrb[0].mxu0 %v484
        %v1851 = vpop.f32.mrb[0].mxu0
        %v1852 = vadd.f32 0.0, %v1851
        %v1853 = vpop.f32.mrb[0].mxu0
        %1854 = vmatprep.mubr.f32.mxu0 0.0
        %1855 = vmatmul.mubr.f32.gmra.mrb[0].mxu0 %v486
        %v1856 = vpop.f32.mrb[0].mxu0
        %v1857 = vadd.f32 0.0, %v1856
        %v1858 = vpop.f32.mrb[0].mxu0
        %1859 = vmatprep.mubr.f32.mxu0 0.0
        %1860 = vmatmul.mubr.f32.gmra.mrb[0].mxu0 %v488
        %v1861 = vpop.f32.mrb[0].mxu0
        %v1862 = vadd.f32 0.0, %v1861
        %v1863 = vpop.f32.mrb[0].mxu0
        %1864 = vmatprep.mubr.f32.mxu0 0.0
        %1865 = vmatmul.mubr.f32.gmra.mrb[0].mxu0 %v490
        %v1866 = vpop.f32.mrb[0].mxu0
        %v1867 = vadd.f32 0.0, %v1866
        %v1868 = vpop.f32.mrb[0].mxu0
        %1869 = vmatprep.mubr.f32.mxu0 0.0
        %1870 = vmatmul.mubr.f32.gmra.mrb[0].mxu0 %v492
        %v1871 = vpop.f32.mrb[0].mxu0
        %v1872 = vadd.f32 0.0, %v1871
        %v1873 = vpop.f32.mrb[0].mxu0
        %1874 = vmatprep.mubr.f32.mxu0 0.0
        %1875 = vmatmul.mubr.f32.gmra.mrb[0].mxu0 %v494
        %v1876 = vpop.f32.mrb[0].mxu0
        %v1877 = vadd.f32 0.0, %v1876
        %v1878 = vpop.f32.mrb[0].mxu0
        %1879 = vmatprep.mubr.f32.mxu0 0.0
        %1880 = vmatmul.mubr.f32.gmra.mrb[0].mxu0 %v496
        %v1881 = vpop.f32.mrb[0].mxu0
        %v1882 = vadd.f32 0.0, %v1881
        %v1883 = vpop.f32.mrb[0].mxu0
        %1884 = vmatprep.mubr.f32.mxu0 0.0
        %1885 = vmatmul.mubr.f32.gmra.mrb[0].mxu0 %v498
        %v1886 = vpop.f32.mrb[0].mxu0
        %v1887 = vadd.f32 0.0, %v1886
        %v1888 = vpop.f32.mrb[0].mxu0
        %1889 = vmatprep.mubr.f32.mxu0 0.0
        %1890 = vmatmul.mubr.f32.gmra.mrb[0].mxu0 %v500
        %v1891 = vpop.f32.mrb[0].mxu0
        %v1892 = vadd.f32 0.0, %v1891
        %v1893 = vpop.f32.mrb[0].mxu0
        %1894 = vmatprep.mubr.f32.mxu0 0.0
        %1895 = vmatmul.mubr.f32.gmra.mrb[0].mxu0 %v502
        %v1896 = vpop.f32.mrb[0].mxu0
        %v1897 = vadd.f32 0.0, %v1896
        %v1898 = vpop.f32.mrb[0].mxu0
        %1899 = vmatprep.mubr.f32.mxu0 0.0
        %1900 = vmatmul.mubr.f32.gmra.mrb[0].mxu0 %v504
        %v1901 = vpop.f32.mrb[0].mxu0
        %v1902 = vadd.f32 0.0, %v1901
        %v1903 = vpop.f32.mrb[0].mxu0
        %1904 = vmatprep.mubr.f32.mxu0 0.0
        %1905 = vmatmul.mubr.f32.gmra.mrb[0].mxu0 %v506
        %v1906 = vpop.f32.mrb[0].mxu0
        %v1907 = vadd.f32 0.0, %v1906
        %v1908 = vpop.f32.mrb[0].mxu0
        %1909 = vmatprep.mubr.f32.mxu0 0.0
        %1910 = vmatmul.mubr.f32.gmra.mrb[0].mxu0 %v508
        %v1911 = vpop.f32.mrb[0].mxu0
        %v1912 = vadd.f32 0.0, %v1911
        %v1913 = vpop.f32.mrb[0].mxu0
        %1914 = vmatprep.mubr.f32.mxu0 0.0
        %1915 = vmatmul.mubr.f32.gmra.mrb[0].mxu0 %v510
        %v1916 = vpop.f32.mrb[0].mxu0
        %v1917 = vadd.f32 0.0, %v1916
        %v1918 = vpop.f32.mrb[0].mxu0
        %1919 = vmatprep.mubr.f32.mxu0 0.0
        %1920 = vmatmul.mubr.f32.gmra.mrb[0].mxu0 %v512
        %v1921 = vpop.f32.mrb[0].mxu0
        %v1922 = vadd.f32 0.0, %v1921
        %v1923 = vpop.f32.mrb[0].mxu0
        %1924 = vmatprep.mubr.f32.mxu0 0.0
        %1925 = vmatmul.mubr.f32.gmra.mrb[0].mxu0 %v514
        %v1926 = vpop.f32.mrb[0].mxu0
        %v1927 = vadd.f32 0.0, %v1926
        %v1928 = vpop.f32.mrb[0].mxu0
        %1929 = vmatprep.mubr.f32.mxu0 0.0
        %1930 = vmatmul.mubr.f32.gmra.mrb[0].mxu0 %v516
        %v1931 = vpop.f32.mrb[0].mxu0
        %v1932 = vadd.f32 0.0, %v1931
        %v1933 = vpop.f32.mrb[0].mxu0
        %1934 = vmatprep.mubr.f32.mxu0 0.0
        %1935 = vmatmul.mubr.f32.gmra.mrb[0].mxu0 %v518
        %v1936 = vpop.f32.mrb[0].mxu0
        %v1937 = vadd.f32 0.0, %v1936
        %v1938 = vpop.f32.mrb[0].mxu0
        %1939 = vmatprep.mubr.f32.mxu0 0.0
        %1940 = vmatmul.mubr.f32.gmra.mrb[0].mxu0 %v520
        %v1941 = vpop.f32.mrb[0].mxu0
        %v1942 = vadd.f32 0.0, %v1941
        %v1943 = vpop.f32.mrb[0].mxu0
        %1944 = vmatprep.mubr.f32.mxu0 0.0
        %1945 = vmatmul.mubr.f32.gmra.mrb[0].mxu0 %v522
        %v1946 = vpop.f32.mrb[0].mxu0
        %v1947 = vadd.f32 0.0, %v1946
        %v1948 = vpop.f32.mrb[0].mxu0
        %1949 = vmatprep.mubr.f32.mxu0 0.0
        %1950 = vmatmul.mubr.f32.gmra.mrb[0].mxu0 %v1728
        %v1951 = vpop.f32.mrb[0].mxu0
        %v1952 = vadd.f32 0.0, %v1951
        %v1953 = vpop.f32.mrb[0].mxu0
        %1954 = vmatprep.mubr.f32.mxu0 0.0
        %1955 = vmatmul.mubr.f32.gmra.mrb[0].mxu0 %v1730
        %v1956 = vpop.f32.mrb[0].mxu0
        %v1957 = vadd.f32 0.0, %v1956
        %v1958 = vpop.f32.mrb[0].mxu0
        %1959 = vdwg.mxu0
        %v1960 = vadd.f32 %v1688, %v1802
        %v1961 = vadd.f32 %v1689, %v1807
        %v1962 = vadd.f32 %v1690, %v1812
        %v1963 = vadd.f32 %v1691, %v1817
        %v1964 = vadd.f32 %v1692, %v1822
        %v1965 = vadd.f32 %v1693, %v1827
        %v1966 = vadd.f32 %v1694, %v1832
        %v1967 = vadd.f32 %v1695, %v1837
        %v1968 = vadd.f32 %v1696, %v1842
        %v1969 = vadd.f32 %v1697, %v1847
        %v1970 = vadd.f32 %v1698, %v1852
        %v1971 = vadd.f32 %v1699, %v1857
        %v1972 = vadd.f32 %v1700, %v1862
        %v1973 = vadd.f32 %v1701, %v1867
        %v1974 = vadd.f32 %v1702, %v1872
        %v1975 = vadd.f32 %v1703, %v1877
        %v1976 = vadd.f32 %v1704, %v1882
        %v1977 = vadd.f32 %v1705, %v1887
        %v1978 = vadd.f32 %v1706, %v1892
        %v1979 = vadd.f32 %v1707, %v1897
        %v1980 = vadd.f32 %v1708, %v1902
        %v1981 = vadd.f32 %v1709, %v1907
        %v1982 = vadd.f32 %v1710, %v1912
        %v1983 = vadd.f32 %v1711, %v1917
        %v1984 = vadd.f32 %v1712, %v1922
        %v1985 = vadd.f32 %v1713, %v1927
        %v1986 = vadd.f32 %v1714, %v1932
        %v1987 = vadd.f32 %v1715, %v1937
        %v1988 = vadd.f32 %v1716, %v1942
        %v1989 = vadd.f32 %v1717, %v1947
        %v1990 = vadd.f32 %v1718, %v1952
        %v1991 = vadd.f32 %v1719, %v1957
        %v1992 = vrot.slane %v321, 2
        %v1993 = vrot.slane %v322, 2
        %v1994 = vsel %vm1045, %v1992, %v1993
        %v1995 = vrot.slane %v323, 2
        %v1996 = vsel %vm1045, %v1993, %v1995
        %s1997 = scalar_lea.vmem [#allocation5], 20
        %v1998 = vld [vmem:[%s1997] sm:$0xf]
        %v1999 = vsel %vm459, %v1994, 0
        %v2001 = vsel %vm459, %v1996, 0
        %v2004 = vsel %vm524, %v1998, 0
        %2006 = vmatprep.subr.mxu0 0.0
        %2007 = vmatpush1.msra.mxu0 %v2004
        %2008 = vmatprep.subr.mxu0 0.0
        %2009 = vmatpush1.msra.mxu0 0.0
        %2010 = vmatprep.subr.mxu0 0.0
        %2011 = vmatpush1.msra.mxu0 0.0
        %2012 = vmatprep.subr.mxu0 0.0
        %2013 = vmatpush1.msra.mxu0 0.0
        %2014 = vmatprep.subr.mxu0 0.0
        %2015 = vmatpush1.msra.mxu0 0.0
        %2016 = vmatprep.subr.mxu0 0.0
        %2017 = vmatpush1.msra.mxu0 0.0
        %2018 = vmatprep.subr.mxu0 0.0
        %2019 = vmatpush1.msra.mxu0 0.0
        %2020 = vmatprep.subr.mxu0 0.0
        %2021 = vmatpush1.msra.mxu0 0.0
        %2022 = vmatprep.subr.mxu0 0.0
        %2023 = vmatpush1.msra.mxu0 0.0
        %2024 = vmatprep.subr.mxu0 0.0
        %2025 = vmatpush1.msra.mxu0 0.0
        %2026 = vmatprep.subr.mxu0 0.0
        %2027 = vmatpush1.msra.mxu0 0.0
        %2028 = vmatprep.subr.mxu0 0.0
        %2029 = vmatpush1.msra.mxu0 0.0
        %2030 = vmatprep.subr.mxu0 0.0
        %2031 = vmatpush1.msra.mxu0 0.0
        %2032 = vmatprep.subr.mxu0 0.0
        %2033 = vmatpush1.msra.mxu0 0.0
        %2034 = vmatprep.subr.mxu0 0.0
        %2035 = vmatpush1.msra.mxu0 0.0
        %2036 = vmatprep.subr.mxu0 0.0
        %2037 = vmatpush1.msra.mxu0 0.0
        %2038 = vmatprep.subr.mxu0 0.0
        %2039 = vmatpush1.msra.mxu0 0.0
        %2040 = vmatprep.subr.mxu0 0.0
        %2041 = vmatpush1.msra.mxu0 0.0
        %2042 = vmatprep.subr.mxu0 0.0
        %2043 = vmatpush1.msra.mxu0 0.0
        %2044 = vmatprep.subr.mxu0 0.0
        %2045 = vmatpush1.msra.mxu0 0.0
        %2046 = vmatprep.subr.mxu0 0.0
        %2047 = vmatpush1.msra.mxu0 0.0
        %2048 = vmatprep.subr.mxu0 0.0
        %2049 = vmatpush1.msra.mxu0 0.0
        %2050 = vmatprep.subr.mxu0 0.0
        %2051 = vmatpush1.msra.mxu0 0.0
        %2052 = vmatprep.subr.mxu0 0.0
        %2053 = vmatpush1.msra.mxu0 0.0
        %2054 = vmatprep.subr.mxu0 0.0
        %2055 = vmatpush1.msra.mxu0 0.0
        %2056 = vmatprep.subr.mxu0 0.0
        %2057 = vmatpush1.msra.mxu0 0.0
        %2058 = vmatprep.subr.mxu0 0.0
        %2059 = vmatpush1.msra.mxu0 0.0
        %2060 = vmatprep.subr.mxu0 0.0
        %2061 = vmatpush1.msra.mxu0 0.0
        %2062 = vmatprep.subr.mxu0 0.0
        %2063 = vmatpush1.msra.mxu0 0.0
        %2064 = vmatprep.subr.mxu0 0.0
        %2065 = vmatpush1.msra.mxu0 0.0
        %2066 = vmatprep.subr.mxu0 0.0
        %2067 = vmatpush1.msra.mxu0 0.0
        %2068 = vmatprep.subr.mxu0 0.0
        %2069 = vmatpush1.msra.mxu0 0.0
        %2070 = vmatprep.mubr.f32.mxu0 0.0
        %2071 = vmatmul.mubr.f32.gmra.mrb[0].mxu0 %v1132
        %v2072 = vpop.f32.mrb[0].mxu0
        %v2073 = vadd.f32 0.0, %v2072
        %v2074 = vpop.f32.mrb[0].mxu0
        %2075 = vmatprep.mubr.f32.mxu0 0.0
        %2076 = vmatmul.mubr.f32.gmra.mrb[0].mxu0 %v1134
        %v2077 = vpop.f32.mrb[0].mxu0
        %v2078 = vadd.f32 0.0, %v2077
        %v2079 = vpop.f32.mrb[0].mxu0
        %2080 = vmatprep.mubr.f32.mxu0 0.0
        %2081 = vmatmul.mubr.f32.gmra.mrb[0].mxu0 %v1136
        %v2082 = vpop.f32.mrb[0].mxu0
        %v2083 = vadd.f32 0.0, %v2082
        %v2084 = vpop.f32.mrb[0].mxu0
        %2085 = vmatprep.mubr.f32.mxu0 0.0
        %2086 = vmatmul.mubr.f32.gmra.mrb[0].mxu0 %v1138
        %v2087 = vpop.f32.mrb[0].mxu0
        %v2088 = vadd.f32 0.0, %v2087
        %v2089 = vpop.f32.mrb[0].mxu0
        %2090 = vmatprep.mubr.f32.mxu0 0.0
        %2091 = vmatmul.mubr.f32.gmra.mrb[0].mxu0 %v1140
        %v2092 = vpop.f32.mrb[0].mxu0
        %v2093 = vadd.f32 0.0, %v2092
        %v2094 = vpop.f32.mrb[0].mxu0
        %2095 = vmatprep.mubr.f32.mxu0 0.0
        %2096 = vmatmul.mubr.f32.gmra.mrb[0].mxu0 %v1142
        %v2097 = vpop.f32.mrb[0].mxu0
        %v2098 = vadd.f32 0.0, %v2097
        %v2099 = vpop.f32.mrb[0].mxu0
        %2100 = vmatprep.mubr.f32.mxu0 0.0
        %2101 = vmatmul.mubr.f32.gmra.mrb[0].mxu0 %v1144
        %v2102 = vpop.f32.mrb[0].mxu0
        %v2103 = vadd.f32 0.0, %v2102
        %v2104 = vpop.f32.mrb[0].mxu0
        %2105 = vmatprep.mubr.f32.mxu0 0.0
        %2106 = vmatmul.mubr.f32.gmra.mrb[0].mxu0 %v1146
        %v2107 = vpop.f32.mrb[0].mxu0
        %v2108 = vadd.f32 0.0, %v2107
        %v2109 = vpop.f32.mrb[0].mxu0
        %2110 = vmatprep.mubr.f32.mxu0 0.0
        %2111 = vmatmul.mubr.f32.gmra.mrb[0].mxu0 %v1148
        %v2112 = vpop.f32.mrb[0].mxu0
        %v2113 = vadd.f32 0.0, %v2112
        %v2114 = vpop.f32.mrb[0].mxu0
        %2115 = vmatprep.mubr.f32.mxu0 0.0
        %2116 = vmatmul.mubr.f32.gmra.mrb[0].mxu0 %v1150
        %v2117 = vpop.f32.mrb[0].mxu0
        %v2118 = vadd.f32 0.0, %v2117
        %v2119 = vpop.f32.mrb[0].mxu0
        %2120 = vmatprep.mubr.f32.mxu0 0.0
        %2121 = vmatmul.mubr.f32.gmra.mrb[0].mxu0 %v1152
        %v2122 = vpop.f32.mrb[0].mxu0
        %v2123 = vadd.f32 0.0, %v2122
        %v2124 = vpop.f32.mrb[0].mxu0
        %2125 = vmatprep.mubr.f32.mxu0 0.0
        %2126 = vmatmul.mubr.f32.gmra.mrb[0].mxu0 %v1154
        %v2127 = vpop.f32.mrb[0].mxu0
        %v2128 = vadd.f32 0.0, %v2127
        %v2129 = vpop.f32.mrb[0].mxu0
        %2130 = vmatprep.mubr.f32.mxu0 0.0
        %2131 = vmatmul.mubr.f32.gmra.mrb[0].mxu0 %v1156
        %v2132 = vpop.f32.mrb[0].mxu0
        %v2133 = vadd.f32 0.0, %v2132
        %v2134 = vpop.f32.mrb[0].mxu0
        %2135 = vmatprep.mubr.f32.mxu0 0.0
        %2136 = vmatmul.mubr.f32.gmra.mrb[0].mxu0 %v1158
        %v2137 = vpop.f32.mrb[0].mxu0
        %v2138 = vadd.f32 0.0, %v2137
        %v2139 = vpop.f32.mrb[0].mxu0
        %2140 = vmatprep.mubr.f32.mxu0 0.0
        %2141 = vmatmul.mubr.f32.gmra.mrb[0].mxu0 %v1160
        %v2142 = vpop.f32.mrb[0].mxu0
        %v2143 = vadd.f32 0.0, %v2142
        %v2144 = vpop.f32.mrb[0].mxu0
        %2145 = vmatprep.mubr.f32.mxu0 0.0
        %2146 = vmatmul.mubr.f32.gmra.mrb[0].mxu0 %v1162
        %v2147 = vpop.f32.mrb[0].mxu0
        %v2148 = vadd.f32 0.0, %v2147
        %v2149 = vpop.f32.mrb[0].mxu0
        %2150 = vmatprep.mubr.f32.mxu0 0.0
        %2151 = vmatmul.mubr.f32.gmra.mrb[0].mxu0 %v1164
        %v2152 = vpop.f32.mrb[0].mxu0
        %v2153 = vadd.f32 0.0, %v2152
        %v2154 = vpop.f32.mrb[0].mxu0
        %2155 = vmatprep.mubr.f32.mxu0 0.0
        %2156 = vmatmul.mubr.f32.gmra.mrb[0].mxu0 %v1166
        %v2157 = vpop.f32.mrb[0].mxu0
        %v2158 = vadd.f32 0.0, %v2157
        %v2159 = vpop.f32.mrb[0].mxu0
        %2160 = vmatprep.mubr.f32.mxu0 0.0
        %2161 = vmatmul.mubr.f32.gmra.mrb[0].mxu0 %v1168
        %v2162 = vpop.f32.mrb[0].mxu0
        %v2163 = vadd.f32 0.0, %v2162
        %v2164 = vpop.f32.mrb[0].mxu0
        %2165 = vmatprep.mubr.f32.mxu0 0.0
        %2166 = vmatmul.mubr.f32.gmra.mrb[0].mxu0 %v1170
        %v2167 = vpop.f32.mrb[0].mxu0
        %v2168 = vadd.f32 0.0, %v2167
        %v2169 = vpop.f32.mrb[0].mxu0
        %2170 = vmatprep.mubr.f32.mxu0 0.0
        %2171 = vmatmul.mubr.f32.gmra.mrb[0].mxu0 %v1172
        %v2172 = vpop.f32.mrb[0].mxu0
        %v2173 = vadd.f32 0.0, %v2172
        %v2174 = vpop.f32.mrb[0].mxu0
        %2175 = vmatprep.mubr.f32.mxu0 0.0
        %2176 = vmatmul.mubr.f32.gmra.mrb[0].mxu0 %v1174
        %v2177 = vpop.f32.mrb[0].mxu0
        %v2178 = vadd.f32 0.0, %v2177
        %v2179 = vpop.f32.mrb[0].mxu0
        %2180 = vmatprep.mubr.f32.mxu0 0.0
        %2181 = vmatmul.mubr.f32.gmra.mrb[0].mxu0 %v1176
        %v2182 = vpop.f32.mrb[0].mxu0
        %v2183 = vadd.f32 0.0, %v2182
        %v2184 = vpop.f32.mrb[0].mxu0
        %2185 = vmatprep.mubr.f32.mxu0 0.0
        %2186 = vmatmul.mubr.f32.gmra.mrb[0].mxu0 %v1178
        %v2187 = vpop.f32.mrb[0].mxu0
        %v2188 = vadd.f32 0.0, %v2187
        %v2189 = vpop.f32.mrb[0].mxu0
        %2190 = vmatprep.mubr.f32.mxu0 0.0
        %2191 = vmatmul.mubr.f32.gmra.mrb[0].mxu0 %v1180
        %v2192 = vpop.f32.mrb[0].mxu0
        %v2193 = vadd.f32 0.0, %v2192
        %v2194 = vpop.f32.mrb[0].mxu0
        %2195 = vmatprep.mubr.f32.mxu0 0.0
        %2196 = vmatmul.mubr.f32.gmra.mrb[0].mxu0 %v1182
        %v2197 = vpop.f32.mrb[0].mxu0
        %v2198 = vadd.f32 0.0, %v2197
        %v2199 = vpop.f32.mrb[0].mxu0
        %2200 = vmatprep.mubr.f32.mxu0 0.0
        %2201 = vmatmul.mubr.f32.gmra.mrb[0].mxu0 %v1184
        %v2202 = vpop.f32.mrb[0].mxu0
        %v2203 = vadd.f32 0.0, %v2202
        %v2204 = vpop.f32.mrb[0].mxu0
        %2205 = vmatprep.mubr.f32.mxu0 0.0
        %2206 = vmatmul.mubr.f32.gmra.mrb[0].mxu0 %v1186
        %v2207 = vpop.f32.mrb[0].mxu0
        %v2208 = vadd.f32 0.0, %v2207
        %v2209 = vpop.f32.mrb[0].mxu0
        %2210 = vmatprep.mubr.f32.mxu0 0.0
        %2211 = vmatmul.mubr.f32.gmra.mrb[0].mxu0 %v1188
        %v2212 = vpop.f32.mrb[0].mxu0
        %v2213 = vadd.f32 0.0, %v2212
        %v2214 = vpop.f32.mrb[0].mxu0
        %2215 = vmatprep.mubr.f32.mxu0 0.0
        %2216 = vmatmul.mubr.f32.gmra.mrb[0].mxu0 %v1190
        %v2217 = vpop.f32.mrb[0].mxu0
        %v2218 = vadd.f32 0.0, %v2217
        %v2219 = vpop.f32.mrb[0].mxu0
        %2220 = vmatprep.mubr.f32.mxu0 0.0
        %2221 = vmatmul.mubr.f32.gmra.mrb[0].mxu0 %v1999
        %v2222 = vpop.f32.mrb[0].mxu0
        %v2223 = vadd.f32 0.0, %v2222
        %v2224 = vpop.f32.mrb[0].mxu0
        %2225 = vmatprep.mubr.f32.mxu0 0.0
        %2226 = vmatmul.mubr.f32.gmra.mrb[0].mxu0 %v2001
        %v2227 = vpop.f32.mrb[0].mxu0
        %v2228 = vadd.f32 0.0, %v2227
        %v2229 = vpop.f32.mrb[0].mxu0
        %2230 = vdwg.mxu0
        %v2231 = vadd.f32 %v1960, %v2073
        %v2232 = vadd.f32 %v1961, %v2078
        %v2233 = vadd.f32 %v1962, %v2083
        %v2234 = vadd.f32 %v1963, %v2088
        %v2235 = vadd.f32 %v1964, %v2093
        %v2236 = vadd.f32 %v1965, %v2098
        %v2237 = vadd.f32 %v1966, %v2103
        %v2238 = vadd.f32 %v1967, %v2108
        %v2239 = vadd.f32 %v1968, %v2113
        %v2240 = vadd.f32 %v1969, %v2118
        %v2241 = vadd.f32 %v1970, %v2123
        %v2242 = vadd.f32 %v1971, %v2128
        %v2243 = vadd.f32 %v1972, %v2133
        %v2244 = vadd.f32 %v1973, %v2138
        %v2245 = vadd.f32 %v1974, %v2143
        %v2246 = vadd.f32 %v1975, %v2148
        %v2247 = vadd.f32 %v1976, %v2153
        %v2248 = vadd.f32 %v1977, %v2158
        %v2249 = vadd.f32 %v1978, %v2163
        %v2250 = vadd.f32 %v1979, %v2168
        %v2251 = vadd.f32 %v1980, %v2173
        %v2252 = vadd.f32 %v1981, %v2178
        %v2253 = vadd.f32 %v1982, %v2183
        %v2254 = vadd.f32 %v1983, %v2188
        %v2255 = vadd.f32 %v1984, %v2193
        %v2256 = vadd.f32 %v1985, %v2198
        %v2257 = vadd.f32 %v1986, %v2203
        %v2258 = vadd.f32 %v1987, %v2208
        %v2259 = vadd.f32 %v1988, %v2213
        %v2260 = vadd.f32 %v1989, %v2218
        %v2261 = vadd.f32 %v1990, %v2223
        %v2262 = vadd.f32 %v1991, %v2228
        %s2263 = scalar_lea.vmem [#allocation5], 24
        %v2264 = vld [vmem:[%s2263] sm:$0xf]
        %v2266 = vsel %vm459, %v324, 0
        %v2269 = vsel %vm459, %v325, 0
        %v2272 = vsel %vm524, %v2264, 0
        %2274 = vmatprep.subr.mxu0 0.0
        %2275 = vmatpush1.msra.mxu0 %v2272
        %2276 = vmatprep.subr.mxu0 0.0
        %2277 = vmatpush1.msra.mxu0 0.0
        %2278 = vmatprep.subr.mxu0 0.0
        %2279 = vmatpush1.msra.mxu0 0.0
        %2280 = vmatprep.subr.mxu0 0.0
        %2281 = vmatpush1.msra.mxu0 0.0
        %2282 = vmatprep.subr.mxu0 0.0
        %2283 = vmatpush1.msra.mxu0 0.0
        %2284 = vmatprep.subr.mxu0 0.0
        %2285 = vmatpush1.msra.mxu0 0.0
        %2286 = vmatprep.subr.mxu0 0.0
        %2287 = vmatpush1.msra.mxu0 0.0
        %2288 = vmatprep.subr.mxu0 0.0
        %2289 = vmatpush1.msra.mxu0 0.0
        %2290 = vmatprep.subr.mxu0 0.0
        %2291 = vmatpush1.msra.mxu0 0.0
        %2292 = vmatprep.subr.mxu0 0.0
        %2293 = vmatpush1.msra.mxu0 0.0
        %2294 = vmatprep.subr.mxu0 0.0
        %2295 = vmatpush1.msra.mxu0 0.0
        %2296 = vmatprep.subr.mxu0 0.0
        %2297 = vmatpush1.msra.mxu0 0.0
        %2298 = vmatprep.subr.mxu0 0.0
        %2299 = vmatpush1.msra.mxu0 0.0
        %2300 = vmatprep.subr.mxu0 0.0
        %2301 = vmatpush1.msra.mxu0 0.0
        %2302 = vmatprep.subr.mxu0 0.0
        %2303 = vmatpush1.msra.mxu0 0.0
        %2304 = vmatprep.subr.mxu0 0.0
        %2305 = vmatpush1.msra.mxu0 0.0
        %2306 = vmatprep.subr.mxu0 0.0
        %2307 = vmatpush1.msra.mxu0 0.0
        %2308 = vmatprep.subr.mxu0 0.0
        %2309 = vmatpush1.msra.mxu0 0.0
        %2310 = vmatprep.subr.mxu0 0.0
        %2311 = vmatpush1.msra.mxu0 0.0
        %2312 = vmatprep.subr.mxu0 0.0
        %2313 = vmatpush1.msra.mxu0 0.0
        %2314 = vmatprep.subr.mxu0 0.0
        %2315 = vmatpush1.msra.mxu0 0.0
        %2316 = vmatprep.subr.mxu0 0.0
        %2317 = vmatpush1.msra.mxu0 0.0
        %2318 = vmatprep.subr.mxu0 0.0
        %2319 = vmatpush1.msra.mxu0 0.0
        %2320 = vmatprep.subr.mxu0 0.0
        %2321 = vmatpush1.msra.mxu0 0.0
        %2322 = vmatprep.subr.mxu0 0.0
        %2323 = vmatpush1.msra.mxu0 0.0
        %2324 = vmatprep.subr.mxu0 0.0
        %2325 = vmatpush1.msra.mxu0 0.0
        %2326 = vmatprep.subr.mxu0 0.0
        %2327 = vmatpush1.msra.mxu0 0.0
        %2328 = vmatprep.subr.mxu0 0.0
        %2329 = vmatpush1.msra.mxu0 0.0
        %2330 = vmatprep.subr.mxu0 0.0
        %2331 = vmatpush1.msra.mxu0 0.0
        %2332 = vmatprep.subr.mxu0 0.0
        %2333 = vmatpush1.msra.mxu0 0.0
        %2334 = vmatprep.subr.mxu0 0.0
        %2335 = vmatpush1.msra.mxu0 0.0
        %2336 = vmatprep.subr.mxu0 0.0
        %2337 = vmatpush1.msra.mxu0 0.0
        %2338 = vmatprep.mubr.f32.mxu0 0.0
        %2339 = vmatmul.mubr.f32.gmra.mrb[0].mxu0 %v761
        %v2340 = vpop.f32.mrb[0].mxu0
        %v2341 = vadd.f32 0.0, %v2340
        %v2342 = vpop.f32.mrb[0].mxu0
        %2343 = vmatprep.mubr.f32.mxu0 0.0
        %2344 = vmatmul.mubr.f32.gmra.mrb[0].mxu0 %v763
        %v2345 = vpop.f32.mrb[0].mxu0
        %v2346 = vadd.f32 0.0, %v2345
        %v2347 = vpop.f32.mrb[0].mxu0
        %2348 = vmatprep.mubr.f32.mxu0 0.0
        %2349 = vmatmul.mubr.f32.gmra.mrb[0].mxu0 %v765
        %v2350 = vpop.f32.mrb[0].mxu0
        %v2351 = vadd.f32 0.0, %v2350
        %v2352 = vpop.f32.mrb[0].mxu0
        %2353 = vmatprep.mubr.f32.mxu0 0.0
        %2354 = vmatmul.mubr.f32.gmra.mrb[0].mxu0 %v767
        %v2355 = vpop.f32.mrb[0].mxu0
        %v2356 = vadd.f32 0.0, %v2355
        %v2357 = vpop.f32.mrb[0].mxu0
        %2358 = vmatprep.mubr.f32.mxu0 0.0
        %2359 = vmatmul.mubr.f32.gmra.mrb[0].mxu0 %v769
        %v2360 = vpop.f32.mrb[0].mxu0
        %v2361 = vadd.f32 0.0, %v2360
        %v2362 = vpop.f32.mrb[0].mxu0
        %2363 = vmatprep.mubr.f32.mxu0 0.0
        %2364 = vmatmul.mubr.f32.gmra.mrb[0].mxu0 %v771
        %v2365 = vpop.f32.mrb[0].mxu0
        %v2366 = vadd.f32 0.0, %v2365
        %v2367 = vpop.f32.mrb[0].mxu0
        %2368 = vmatprep.mubr.f32.mxu0 0.0
        %2369 = vmatmul.mubr.f32.gmra.mrb[0].mxu0 %v773
        %v2370 = vpop.f32.mrb[0].mxu0
        %v2371 = vadd.f32 0.0, %v2370
        %v2372 = vpop.f32.mrb[0].mxu0
        %2373 = vmatprep.mubr.f32.mxu0 0.0
        %2374 = vmatmul.mubr.f32.gmra.mrb[0].mxu0 %v775
        %v2375 = vpop.f32.mrb[0].mxu0
        %v2376 = vadd.f32 0.0, %v2375
        %v2377 = vpop.f32.mrb[0].mxu0
        %2378 = vmatprep.mubr.f32.mxu0 0.0
        %2379 = vmatmul.mubr.f32.gmra.mrb[0].mxu0 %v777
        %v2380 = vpop.f32.mrb[0].mxu0
        %v2381 = vadd.f32 0.0, %v2380
        %v2382 = vpop.f32.mrb[0].mxu0
        %2383 = vmatprep.mubr.f32.mxu0 0.0
        %2384 = vmatmul.mubr.f32.gmra.mrb[0].mxu0 %v779
        %v2385 = vpop.f32.mrb[0].mxu0
        %v2386 = vadd.f32 0.0, %v2385
        %v2387 = vpop.f32.mrb[0].mxu0
        %2388 = vmatprep.mubr.f32.mxu0 0.0
        %2389 = vmatmul.mubr.f32.gmra.mrb[0].mxu0 %v781
        %v2390 = vpop.f32.mrb[0].mxu0
        %v2391 = vadd.f32 0.0, %v2390
        %v2392 = vpop.f32.mrb[0].mxu0
        %2393 = vmatprep.mubr.f32.mxu0 0.0
        %2394 = vmatmul.mubr.f32.gmra.mrb[0].mxu0 %v783
        %v2395 = vpop.f32.mrb[0].mxu0
        %v2396 = vadd.f32 0.0, %v2395
        %v2397 = vpop.f32.mrb[0].mxu0
        %2398 = vmatprep.mubr.f32.mxu0 0.0
        %2399 = vmatmul.mubr.f32.gmra.mrb[0].mxu0 %v785
        %v2400 = vpop.f32.mrb[0].mxu0
        %v2401 = vadd.f32 0.0, %v2400
        %v2402 = vpop.f32.mrb[0].mxu0
        %2403 = vmatprep.mubr.f32.mxu0 0.0
        %2404 = vmatmul.mubr.f32.gmra.mrb[0].mxu0 %v787
        %v2405 = vpop.f32.mrb[0].mxu0
        %v2406 = vadd.f32 0.0, %v2405
        %v2407 = vpop.f32.mrb[0].mxu0
        %2408 = vmatprep.mubr.f32.mxu0 0.0
        %2409 = vmatmul.mubr.f32.gmra.mrb[0].mxu0 %v789
        %v2410 = vpop.f32.mrb[0].mxu0
        %v2411 = vadd.f32 0.0, %v2410
        %v2412 = vpop.f32.mrb[0].mxu0
        %2413 = vmatprep.mubr.f32.mxu0 0.0
        %2414 = vmatmul.mubr.f32.gmra.mrb[0].mxu0 %v791
        %v2415 = vpop.f32.mrb[0].mxu0
        %v2416 = vadd.f32 0.0, %v2415
        %v2417 = vpop.f32.mrb[0].mxu0
        %2418 = vmatprep.mubr.f32.mxu0 0.0
        %2419 = vmatmul.mubr.f32.gmra.mrb[0].mxu0 %v793
        %v2420 = vpop.f32.mrb[0].mxu0
        %v2421 = vadd.f32 0.0, %v2420
        %v2422 = vpop.f32.mrb[0].mxu0
        %2423 = vmatprep.mubr.f32.mxu0 0.0
        %2424 = vmatmul.mubr.f32.gmra.mrb[0].mxu0 %v795
        %v2425 = vpop.f32.mrb[0].mxu0
        %v2426 = vadd.f32 0.0, %v2425
        %v2427 = vpop.f32.mrb[0].mxu0
        %2428 = vmatprep.mubr.f32.mxu0 0.0
        %2429 = vmatmul.mubr.f32.gmra.mrb[0].mxu0 %v797
        %v2430 = vpop.f32.mrb[0].mxu0
        %v2431 = vadd.f32 0.0, %v2430
        %v2432 = vpop.f32.mrb[0].mxu0
        %2433 = vmatprep.mubr.f32.mxu0 0.0
        %2434 = vmatmul.mubr.f32.gmra.mrb[0].mxu0 %v799
        %v2435 = vpop.f32.mrb[0].mxu0
        %v2436 = vadd.f32 0.0, %v2435
        %v2437 = vpop.f32.mrb[0].mxu0
        %2438 = vmatprep.mubr.f32.mxu0 0.0
        %2439 = vmatmul.mubr.f32.gmra.mrb[0].mxu0 %v801
        %v2440 = vpop.f32.mrb[0].mxu0
        %v2441 = vadd.f32 0.0, %v2440
        %v2442 = vpop.f32.mrb[0].mxu0
        %2443 = vmatprep.mubr.f32.mxu0 0.0
        %2444 = vmatmul.mubr.f32.gmra.mrb[0].mxu0 %v803
        %v2445 = vpop.f32.mrb[0].mxu0
        %v2446 = vadd.f32 0.0, %v2445
        %v2447 = vpop.f32.mrb[0].mxu0
        %2448 = vmatprep.mubr.f32.mxu0 0.0
        %2449 = vmatmul.mubr.f32.gmra.mrb[0].mxu0 %v805
        %v2450 = vpop.f32.mrb[0].mxu0
        %v2451 = vadd.f32 0.0, %v2450
        %v2452 = vpop.f32.mrb[0].mxu0
        %2453 = vmatprep.mubr.f32.mxu0 0.0
        %2454 = vmatmul.mubr.f32.gmra.mrb[0].mxu0 %v807
        %v2455 = vpop.f32.mrb[0].mxu0
        %v2456 = vadd.f32 0.0, %v2455
        %v2457 = vpop.f32.mrb[0].mxu0
        %2458 = vmatprep.mubr.f32.mxu0 0.0
        %2459 = vmatmul.mubr.f32.gmra.mrb[0].mxu0 %v809
        %v2460 = vpop.f32.mrb[0].mxu0
        %v2461 = vadd.f32 0.0, %v2460
        %v2462 = vpop.f32.mrb[0].mxu0
        %2463 = vmatprep.mubr.f32.mxu0 0.0
        %2464 = vmatmul.mubr.f32.gmra.mrb[0].mxu0 %v811
        %v2465 = vpop.f32.mrb[0].mxu0
        %v2466 = vadd.f32 0.0, %v2465
        %v2467 = vpop.f32.mrb[0].mxu0
        %2468 = vmatprep.mubr.f32.mxu0 0.0
        %2469 = vmatmul.mubr.f32.gmra.mrb[0].mxu0 %v813
        %v2470 = vpop.f32.mrb[0].mxu0
        %v2471 = vadd.f32 0.0, %v2470
        %v2472 = vpop.f32.mrb[0].mxu0
        %2473 = vmatprep.mubr.f32.mxu0 0.0
        %2474 = vmatmul.mubr.f32.gmra.mrb[0].mxu0 %v815
        %v2475 = vpop.f32.mrb[0].mxu0
        %v2476 = vadd.f32 0.0, %v2475
        %v2477 = vpop.f32.mrb[0].mxu0
        %2478 = vmatprep.mubr.f32.mxu0 0.0
        %2479 = vmatmul.mubr.f32.gmra.mrb[0].mxu0 %v1455
        %v2480 = vpop.f32.mrb[0].mxu0
        %v2481 = vadd.f32 0.0, %v2480
        %v2482 = vpop.f32.mrb[0].mxu0
        %2483 = vmatprep.mubr.f32.mxu0 0.0
        %2484 = vmatmul.mubr.f32.gmra.mrb[0].mxu0 %v1458
        %v2485 = vpop.f32.mrb[0].mxu0
        %v2486 = vadd.f32 0.0, %v2485
        %v2487 = vpop.f32.mrb[0].mxu0
        %2488 = vmatprep.mubr.f32.mxu0 0.0
        %2489 = vmatmul.mubr.f32.gmra.mrb[0].mxu0 %v2266
        %v2490 = vpop.f32.mrb[0].mxu0
        %v2491 = vadd.f32 0.0, %v2490
        %v2492 = vpop.f32.mrb[0].mxu0
        %2493 = vmatprep.mubr.f32.mxu0 0.0
        %2494 = vmatmul.mubr.f32.gmra.mrb[0].mxu0 %v2269
        %v2495 = vpop.f32.mrb[0].mxu0
        %v2496 = vadd.f32 0.0, %v2495
        %v2497 = vpop.f32.mrb[0].mxu0
        %2498 = vdwg.mxu0
        %v2499 = vadd.f32 %v2231, %v2341
        %v2500 = vadd.f32 %v2232, %v2346
        %v2501 = vadd.f32 %v2233, %v2351
        %v2502 = vadd.f32 %v2234, %v2356
        %v2503 = vadd.f32 %v2235, %v2361
        %v2504 = vadd.f32 %v2236, %v2366
        %v2505 = vadd.f32 %v2237, %v2371
        %v2506 = vadd.f32 %v2238, %v2376
        %v2507 = vadd.f32 %v2239, %v2381
        %v2508 = vadd.f32 %v2240, %v2386
        %v2509 = vadd.f32 %v2241, %v2391
        %v2510 = vadd.f32 %v2242, %v2396
        %v2511 = vadd.f32 %v2243, %v2401
        %v2512 = vadd.f32 %v2244, %v2406
        %v2513 = vadd.f32 %v2245, %v2411
        %v2514 = vadd.f32 %v2246, %v2416
        %v2515 = vadd.f32 %v2247, %v2421
        %v2516 = vadd.f32 %v2248, %v2426
        %v2517 = vadd.f32 %v2249, %v2431
        %v2518 = vadd.f32 %v2250, %v2436
        %v2519 = vadd.f32 %v2251, %v2441
        %v2520 = vadd.f32 %v2252, %v2446
        %v2521 = vadd.f32 %v2253, %v2451
        %v2522 = vadd.f32 %v2254, %v2456
        %v2523 = vadd.f32 %v2255, %v2461
        %v2524 = vadd.f32 %v2256, %v2466
        %v2525 = vadd.f32 %v2257, %v2471
        %v2526 = vadd.f32 %v2258, %v2476
        %v2527 = vadd.f32 %v2259, %v2481
        %v2528 = vadd.f32 %v2260, %v2486
        %v2529 = vadd.f32 %v2261, %v2491
        %v2530 = vadd.f32 %v2262, %v2496
        %v2532 = vrot.slane %v324, 1
        %v2533 = vrot.slane %v325, 1
        %v2534 = vsel %vm376, %v2532, %v2533
        %v2535 = vrot.slane %v326, 1
        %v2536 = vsel %vm376, %v2533, %v2535
        %s2537 = scalar_lea.vmem [#allocation5], 28
        %v2538 = vld [vmem:[%s2537] sm:$0xf]
        %v2539 = vsel %vm459, %v2534, 0
        %v2541 = vsel %vm459, %v2536, 0
        %v2544 = vsel %vm524, %v2538, 0
        %2546 = vmatprep.subr.mxu0 0.0
        %2547 = vmatpush1.msra.mxu0 %v2544
        %2548 = vmatprep.subr.mxu0 0.0
        %2549 = vmatpush1.msra.mxu0 0.0
        %2550 = vmatprep.subr.mxu0 0.0
        %2551 = vmatpush1.msra.mxu0 0.0
        %2552 = vmatprep.subr.mxu0 0.0
        %2553 = vmatpush1.msra.mxu0 0.0
        %2554 = vmatprep.subr.mxu0 0.0
        %2555 = vmatpush1.msra.mxu0 0.0
        %2556 = vmatprep.subr.mxu0 0.0
        %2557 = vmatpush1.msra.mxu0 0.0
        %2558 = vmatprep.subr.mxu0 0.0
        %2559 = vmatpush1.msra.mxu0 0.0
        %2560 = vmatprep.subr.mxu0 0.0
        %2561 = vmatpush1.msra.mxu0 0.0
        %2562 = vmatprep.subr.mxu0 0.0
        %2563 = vmatpush1.msra.mxu0 0.0
        %2564 = vmatprep.subr.mxu0 0.0
        %2565 = vmatpush1.msra.mxu0 0.0
        %2566 = vmatprep.subr.mxu0 0.0
        %2567 = vmatpush1.msra.mxu0 0.0
        %2568 = vmatprep.subr.mxu0 0.0
        %2569 = vmatpush1.msra.mxu0 0.0
        %2570 = vmatprep.subr.mxu0 0.0
        %2571 = vmatpush1.msra.mxu0 0.0
        %2572 = vmatprep.subr.mxu0 0.0
        %2573 = vmatpush1.msra.mxu0 0.0
        %2574 = vmatprep.subr.mxu0 0.0
        %2575 = vmatpush1.msra.mxu0 0.0
        %2576 = vmatprep.subr.mxu0 0.0
        %2577 = vmatpush1.msra.mxu0 0.0
        %2578 = vmatprep.subr.mxu0 0.0
        %2579 = vmatpush1.msra.mxu0 0.0
        %2580 = vmatprep.subr.mxu0 0.0
        %2581 = vmatpush1.msra.mxu0 0.0
        %2582 = vmatprep.subr.mxu0 0.0
        %2583 = vmatpush1.msra.mxu0 0.0
        %2584 = vmatprep.subr.mxu0 0.0
        %2585 = vmatpush1.msra.mxu0 0.0
        %2586 = vmatprep.subr.mxu0 0.0
        %2587 = vmatpush1.msra.mxu0 0.0
        %2588 = vmatprep.subr.mxu0 0.0
        %2589 = vmatpush1.msra.mxu0 0.0
        %2590 = vmatprep.subr.mxu0 0.0
        %2591 = vmatpush1.msra.mxu0 0.0
        %2592 = vmatprep.subr.mxu0 0.0
        %2593 = vmatpush1.msra.mxu0 0.0
        %2594 = vmatprep.subr.mxu0 0.0
        %2595 = vmatpush1.msra.mxu0 0.0
        %2596 = vmatprep.subr.mxu0 0.0
        %2597 = vmatpush1.msra.mxu0 0.0
        %2598 = vmatprep.subr.mxu0 0.0
        %2599 = vmatpush1.msra.mxu0 0.0
        %2600 = vmatprep.subr.mxu0 0.0
        %2601 = vmatpush1.msra.mxu0 0.0
        %2602 = vmatprep.subr.mxu0 0.0
        %2603 = vmatpush1.msra.mxu0 0.0
        %2604 = vmatprep.subr.mxu0 0.0
        %2605 = vmatpush1.msra.mxu0 0.0
        %2606 = vmatprep.subr.mxu0 0.0
        %2607 = vmatpush1.msra.mxu0 0.0
        %2608 = vmatprep.subr.mxu0 0.0
        %2609 = vmatpush1.msra.mxu0 0.0
        %2610 = vmatprep.mubr.f32.mxu0 0.0
        %2611 = vmatmul.mubr.f32.gmra.mrb[0].mxu0 %v468
        %v2612 = vpop.f32.mrb[0].mxu0
        %v2613 = vadd.f32 0.0, %v2612
        %v2614 = vpop.f32.mrb[0].mxu0
        %2615 = vmatprep.mubr.f32.mxu0 0.0
        %2616 = vmatmul.mubr.f32.gmra.mrb[0].mxu0 %v470
        %v2617 = vpop.f32.mrb[0].mxu0
        %v2618 = vadd.f32 0.0, %v2617
        %v2619 = vpop.f32.mrb[0].mxu0
        %2620 = vmatprep.mubr.f32.mxu0 0.0
        %2621 = vmatmul.mubr.f32.gmra.mrb[0].mxu0 %v472
        %v2622 = vpop.f32.mrb[0].mxu0
        %v2623 = vadd.f32 0.0, %v2622
        %v2624 = vpop.f32.mrb[0].mxu0
        %2625 = vmatprep.mubr.f32.mxu0 0.0
        %2626 = vmatmul.mubr.f32.gmra.mrb[0].mxu0 %v474
        %v2627 = vpop.f32.mrb[0].mxu0
        %v2628 = vadd.f32 0.0, %v2627
        %v2629 = vpop.f32.mrb[0].mxu0
        %2630 = vmatprep.mubr.f32.mxu0 0.0
        %2631 = vmatmul.mubr.f32.gmra.mrb[0].mxu0 %v476
        %v2632 = vpop.f32.mrb[0].mxu0
        %v2633 = vadd.f32 0.0, %v2632
        %v2634 = vpop.f32.mrb[0].mxu0
        %2635 = vmatprep.mubr.f32.mxu0 0.0
        %2636 = vmatmul.mubr.f32.gmra.mrb[0].mxu0 %v478
        %v2637 = vpop.f32.mrb[0].mxu0
        %v2638 = vadd.f32 0.0, %v2637
        %v2639 = vpop.f32.mrb[0].mxu0
        %2640 = vmatprep.mubr.f32.mxu0 0.0
        %2641 = vmatmul.mubr.f32.gmra.mrb[0].mxu0 %v480
        %v2642 = vpop.f32.mrb[0].mxu0
        %v2643 = vadd.f32 0.0, %v2642
        %v2644 = vpop.f32.mrb[0].mxu0
        %2645 = vmatprep.mubr.f32.mxu0 0.0
        %2646 = vmatmul.mubr.f32.gmra.mrb[0].mxu0 %v482
        %v2647 = vpop.f32.mrb[0].mxu0
        %v2648 = vadd.f32 0.0, %v2647
        %v2649 = vpop.f32.mrb[0].mxu0
        %2650 = vmatprep.mubr.f32.mxu0 0.0
        %2651 = vmatmul.mubr.f32.gmra.mrb[0].mxu0 %v484
        %v2652 = vpop.f32.mrb[0].mxu0
        %v2653 = vadd.f32 0.0, %v2652
        %v2654 = vpop.f32.mrb[0].mxu0
        %2655 = vmatprep.mubr.f32.mxu0 0.0
        %2656 = vmatmul.mubr.f32.gmra.mrb[0].mxu0 %v486
        %v2657 = vpop.f32.mrb[0].mxu0
        %v2658 = vadd.f32 0.0, %v2657
        %v2659 = vpop.f32.mrb[0].mxu0
        %2660 = vmatprep.mubr.f32.mxu0 0.0
        %2661 = vmatmul.mubr.f32.gmra.mrb[0].mxu0 %v488
        %v2662 = vpop.f32.mrb[0].mxu0
        %v2663 = vadd.f32 0.0, %v2662
        %v2664 = vpop.f32.mrb[0].mxu0
        %2665 = vmatprep.mubr.f32.mxu0 0.0
        %2666 = vmatmul.mubr.f32.gmra.mrb[0].mxu0 %v490
        %v2667 = vpop.f32.mrb[0].mxu0
        %v2668 = vadd.f32 0.0, %v2667
        %v2669 = vpop.f32.mrb[0].mxu0
        %2670 = vmatprep.mubr.f32.mxu0 0.0
        %2671 = vmatmul.mubr.f32.gmra.mrb[0].mxu0 %v492
        %v2672 = vpop.f32.mrb[0].mxu0
        %v2673 = vadd.f32 0.0, %v2672
        %v2674 = vpop.f32.mrb[0].mxu0
        %2675 = vmatprep.mubr.f32.mxu0 0.0
        %2676 = vmatmul.mubr.f32.gmra.mrb[0].mxu0 %v494
        %v2677 = vpop.f32.mrb[0].mxu0
        %v2678 = vadd.f32 0.0, %v2677
        %v2679 = vpop.f32.mrb[0].mxu0
        %2680 = vmatprep.mubr.f32.mxu0 0.0
        %2681 = vmatmul.mubr.f32.gmra.mrb[0].mxu0 %v496
        %v2682 = vpop.f32.mrb[0].mxu0
        %v2683 = vadd.f32 0.0, %v2682
        %v2684 = vpop.f32.mrb[0].mxu0
        %2685 = vmatprep.mubr.f32.mxu0 0.0
        %2686 = vmatmul.mubr.f32.gmra.mrb[0].mxu0 %v498
        %v2687 = vpop.f32.mrb[0].mxu0
        %v2688 = vadd.f32 0.0, %v2687
        %v2689 = vpop.f32.mrb[0].mxu0
        %2690 = vmatprep.mubr.f32.mxu0 0.0
        %2691 = vmatmul.mubr.f32.gmra.mrb[0].mxu0 %v500
        %v2692 = vpop.f32.mrb[0].mxu0
        %v2693 = vadd.f32 0.0, %v2692
        %v2694 = vpop.f32.mrb[0].mxu0
        %2695 = vmatprep.mubr.f32.mxu0 0.0
        %2696 = vmatmul.mubr.f32.gmra.mrb[0].mxu0 %v502
        %v2697 = vpop.f32.mrb[0].mxu0
        %v2698 = vadd.f32 0.0, %v2697
        %v2699 = vpop.f32.mrb[0].mxu0
        %2700 = vmatprep.mubr.f32.mxu0 0.0
        %2701 = vmatmul.mubr.f32.gmra.mrb[0].mxu0 %v504
        %v2702 = vpop.f32.mrb[0].mxu0
        %v2703 = vadd.f32 0.0, %v2702
        %v2704 = vpop.f32.mrb[0].mxu0
        %2705 = vmatprep.mubr.f32.mxu0 0.0
        %2706 = vmatmul.mubr.f32.gmra.mrb[0].mxu0 %v506
        %v2707 = vpop.f32.mrb[0].mxu0
        %v2708 = vadd.f32 0.0, %v2707
        %v2709 = vpop.f32.mrb[0].mxu0
        %2710 = vmatprep.mubr.f32.mxu0 0.0
        %2711 = vmatmul.mubr.f32.gmra.mrb[0].mxu0 %v508
        %v2712 = vpop.f32.mrb[0].mxu0
        %v2713 = vadd.f32 0.0, %v2712
        %v2714 = vpop.f32.mrb[0].mxu0
        %2715 = vmatprep.mubr.f32.mxu0 0.0
        %2716 = vmatmul.mubr.f32.gmra.mrb[0].mxu0 %v510
        %v2717 = vpop.f32.mrb[0].mxu0
        %v2718 = vadd.f32 0.0, %v2717
        %v2719 = vpop.f32.mrb[0].mxu0
        %2720 = vmatprep.mubr.f32.mxu0 0.0
        %2721 = vmatmul.mubr.f32.gmra.mrb[0].mxu0 %v512
        %v2722 = vpop.f32.mrb[0].mxu0
        %v2723 = vadd.f32 0.0, %v2722
        %v2724 = vpop.f32.mrb[0].mxu0
        %2725 = vmatprep.mubr.f32.mxu0 0.0
        %2726 = vmatmul.mubr.f32.gmra.mrb[0].mxu0 %v514
        %v2727 = vpop.f32.mrb[0].mxu0
        %v2728 = vadd.f32 0.0, %v2727
        %v2729 = vpop.f32.mrb[0].mxu0
        %2730 = vmatprep.mubr.f32.mxu0 0.0
        %2731 = vmatmul.mubr.f32.gmra.mrb[0].mxu0 %v516
        %v2732 = vpop.f32.mrb[0].mxu0
        %v2733 = vadd.f32 0.0, %v2732
        %v2734 = vpop.f32.mrb[0].mxu0
        %2735 = vmatprep.mubr.f32.mxu0 0.0
        %2736 = vmatmul.mubr.f32.gmra.mrb[0].mxu0 %v518
        %v2737 = vpop.f32.mrb[0].mxu0
        %v2738 = vadd.f32 0.0, %v2737
        %v2739 = vpop.f32.mrb[0].mxu0
        %2740 = vmatprep.mubr.f32.mxu0 0.0
        %2741 = vmatmul.mubr.f32.gmra.mrb[0].mxu0 %v520
        %v2742 = vpop.f32.mrb[0].mxu0
        %v2743 = vadd.f32 0.0, %v2742
        %v2744 = vpop.f32.mrb[0].mxu0
        %2745 = vmatprep.mubr.f32.mxu0 0.0
        %2746 = vmatmul.mubr.f32.gmra.mrb[0].mxu0 %v522
        %v2747 = vpop.f32.mrb[0].mxu0
        %v2748 = vadd.f32 0.0, %v2747
        %v2749 = vpop.f32.mrb[0].mxu0
        %2750 = vmatprep.mubr.f32.mxu0 0.0
        %2751 = vmatmul.mubr.f32.gmra.mrb[0].mxu0 %v1728
        %v2752 = vpop.f32.mrb[0].mxu0
        %v2753 = vadd.f32 0.0, %v2752
        %v2754 = vpop.f32.mrb[0].mxu0
        %2755 = vmatprep.mubr.f32.mxu0 0.0
        %2756 = vmatmul.mubr.f32.gmra.mrb[0].mxu0 %v1730
        %v2757 = vpop.f32.mrb[0].mxu0
        %v2758 = vadd.f32 0.0, %v2757
        %v2759 = vpop.f32.mrb[0].mxu0
        %2760 = vmatprep.mubr.f32.mxu0 0.0
        %2761 = vmatmul.mubr.f32.gmra.mrb[0].mxu0 %v2539
        %v2762 = vpop.f32.mrb[0].mxu0
        %v2763 = vadd.f32 0.0, %v2762
        %v2764 = vpop.f32.mrb[0].mxu0
        %2765 = vmatprep.mubr.f32.mxu0 0.0
        %2766 = vmatmul.mubr.f32.gmra.mrb[0].mxu0 %v2541
        %v2767 = vpop.f32.mrb[0].mxu0
        %v2768 = vadd.f32 0.0, %v2767
        %v2769 = vpop.f32.mrb[0].mxu0
        %2770 = vdwg.mxu0
        %v2771 = vadd.f32 %v2499, %v2613
        %v2772 = vadd.f32 %v2500, %v2618
        %v2773 = vadd.f32 %v2501, %v2623
        %v2774 = vadd.f32 %v2502, %v2628
        %v2775 = vadd.f32 %v2503, %v2633
        %v2776 = vadd.f32 %v2504, %v2638
        %v2777 = vadd.f32 %v2505, %v2643
        %v2778 = vadd.f32 %v2506, %v2648
        %v2779 = vadd.f32 %v2507, %v2653
        %v2780 = vadd.f32 %v2508, %v2658
        %v2781 = vadd.f32 %v2509, %v2663
        %v2782 = vadd.f32 %v2510, %v2668
        %v2783 = vadd.f32 %v2511, %v2673
        %v2784 = vadd.f32 %v2512, %v2678
        %v2785 = vadd.f32 %v2513, %v2683
        %v2786 = vadd.f32 %v2514, %v2688
        %v2787 = vadd.f32 %v2515, %v2693
        %v2788 = vadd.f32 %v2516, %v2698
        %v2789 = vadd.f32 %v2517, %v2703
        %v2790 = vadd.f32 %v2518, %v2708
        %v2791 = vadd.f32 %v2519, %v2713
        %v2792 = vadd.f32 %v2520, %v2718
        %v2793 = vadd.f32 %v2521, %v2723
        %v2794 = vadd.f32 %v2522, %v2728
        %v2795 = vadd.f32 %v2523, %v2733
        %v2796 = vadd.f32 %v2524, %v2738
        %v2797 = vadd.f32 %v2525, %v2743
        %v2798 = vadd.f32 %v2526, %v2748
        %v2799 = vadd.f32 %v2527, %v2753
        %v2800 = vadd.f32 %v2528, %v2758
        %v2801 = vadd.f32 %v2529, %v2763
        %v2802 = vadd.f32 %v2530, %v2768
        %v2803 = vrot.slane %v324, 2
        %v2804 = vrot.slane %v325, 2
        %v2805 = vsel %vm1045, %v2803, %v2804
        %v2806 = vrot.slane %v326, 2
        %v2807 = vsel %vm1045, %v2804, %v2806
        %s2808 = scalar_lea.vmem [#allocation5], 32
        %v2809 = vld [vmem:[%s2808] sm:$0xf]
        %v2810 = vsel %vm459, %v2805, 0
        %v2812 = vsel %vm459, %v2807, 0
        %v2815 = vsel %vm524, %v2809, 0
        %2817 = vmatprep.subr.mxu0 0.0
        %2818 = vmatpush1.msra.mxu0 %v2815
        %2819 = vmatprep.subr.mxu0 0.0
        %2820 = vmatpush1.msra.mxu0 0.0
        %2821 = vmatprep.subr.mxu0 0.0
        %2822 = vmatpush1.msra.mxu0 0.0
        %2823 = vmatprep.subr.mxu0 0.0
        %2824 = vmatpush1.msra.mxu0 0.0
        %2825 = vmatprep.subr.mxu0 0.0
        %2826 = vmatpush1.msra.mxu0 0.0
        %2827 = vmatprep.subr.mxu0 0.0
        %2828 = vmatpush1.msra.mxu0 0.0
        %2829 = vmatprep.subr.mxu0 0.0
        %2830 = vmatpush1.msra.mxu0 0.0
        %2831 = vmatprep.subr.mxu0 0.0
        %2832 = vmatpush1.msra.mxu0 0.0
        %2833 = vmatprep.subr.mxu0 0.0
        %2834 = vmatpush1.msra.mxu0 0.0
        %2835 = vmatprep.subr.mxu0 0.0
        %2836 = vmatpush1.msra.mxu0 0.0
        %2837 = vmatprep.subr.mxu0 0.0
        %2838 = vmatpush1.msra.mxu0 0.0
        %2839 = vmatprep.subr.mxu0 0.0
        %2840 = vmatpush1.msra.mxu0 0.0
        %2841 = vmatprep.subr.mxu0 0.0
        %2842 = vmatpush1.msra.mxu0 0.0
        %2843 = vmatprep.subr.mxu0 0.0
        %2844 = vmatpush1.msra.mxu0 0.0
        %2845 = vmatprep.subr.mxu0 0.0
        %2846 = vmatpush1.msra.mxu0 0.0
        %2847 = vmatprep.subr.mxu0 0.0
        %2848 = vmatpush1.msra.mxu0 0.0
        %2849 = vmatprep.subr.mxu0 0.0
        %2850 = vmatpush1.msra.mxu0 0.0
        %2851 = vmatprep.subr.mxu0 0.0
        %2852 = vmatpush1.msra.mxu0 0.0
        %2853 = vmatprep.subr.mxu0 0.0
        %2854 = vmatpush1.msra.mxu0 0.0
        %2855 = vmatprep.subr.mxu0 0.0
        %2856 = vmatpush1.msra.mxu0 0.0
        %2857 = vmatprep.subr.mxu0 0.0
        %2858 = vmatpush1.msra.mxu0 0.0
        %2859 = vmatprep.subr.mxu0 0.0
        %2860 = vmatpush1.msra.mxu0 0.0
        %2861 = vmatprep.subr.mxu0 0.0
        %2862 = vmatpush1.msra.mxu0 0.0
        %2863 = vmatprep.subr.mxu0 0.0
        %2864 = vmatpush1.msra.mxu0 0.0
        %2865 = vmatprep.subr.mxu0 0.0
        %2866 = vmatpush1.msra.mxu0 0.0
        %2867 = vmatprep.subr.mxu0 0.0
        %2868 = vmatpush1.msra.mxu0 0.0
        %2869 = vmatprep.subr.mxu0 0.0
        %2870 = vmatpush1.msra.mxu0 0.0
        %2871 = vmatprep.subr.mxu0 0.0
        %2872 = vmatpush1.msra.mxu0 0.0
        %2873 = vmatprep.subr.mxu0 0.0
        %2874 = vmatpush1.msra.mxu0 0.0
        %2875 = vmatprep.subr.mxu0 0.0
        %2876 = vmatpush1.msra.mxu0 0.0
        %2877 = vmatprep.subr.mxu0 0.0
        %2878 = vmatpush1.msra.mxu0 0.0
        %2879 = vmatprep.subr.mxu0 0.0
        %2880 = vmatpush1.msra.mxu0 0.0
        %2881 = vmatprep.mubr.f32.mxu0 0.0
        %2882 = vmatmul.mubr.f32.gmra.mrb[0].mxu0 %v1136
        %v2883 = vpop.f32.mrb[0].mxu0
        %v2884 = vadd.f32 0.0, %v2883
        %v2885 = vpop.f32.mrb[0].mxu0
        %2886 = vmatprep.mubr.f32.mxu0 0.0
        %2887 = vmatmul.mubr.f32.gmra.mrb[0].mxu0 %v1138
        %v2888 = vpop.f32.mrb[0].mxu0
        %v2889 = vadd.f32 0.0, %v2888
        %v2890 = vpop.f32.mrb[0].mxu0
        %2891 = vmatprep.mubr.f32.mxu0 0.0
        %2892 = vmatmul.mubr.f32.gmra.mrb[0].mxu0 %v1140
        %v2893 = vpop.f32.mrb[0].mxu0
        %v2894 = vadd.f32 0.0, %v2893
        %v2895 = vpop.f32.mrb[0].mxu0
        %2896 = vmatprep.mubr.f32.mxu0 0.0
        %2897 = vmatmul.mubr.f32.gmra.mrb[0].mxu0 %v1142
        %v2898 = vpop.f32.mrb[0].mxu0
        %v2899 = vadd.f32 0.0, %v2898
        %v2900 = vpop.f32.mrb[0].mxu0
        %2901 = vmatprep.mubr.f32.mxu0 0.0
        %2902 = vmatmul.mubr.f32.gmra.mrb[0].mxu0 %v1144
        %v2903 = vpop.f32.mrb[0].mxu0
        %v2904 = vadd.f32 0.0, %v2903
        %v2905 = vpop.f32.mrb[0].mxu0
        %2906 = vmatprep.mubr.f32.mxu0 0.0
        %2907 = vmatmul.mubr.f32.gmra.mrb[0].mxu0 %v1146
        %v2908 = vpop.f32.mrb[0].mxu0
        %v2909 = vadd.f32 0.0, %v2908
        %v2910 = vpop.f32.mrb[0].mxu0
        %2911 = vmatprep.mubr.f32.mxu0 0.0
        %2912 = vmatmul.mubr.f32.gmra.mrb[0].mxu0 %v1148
        %v2913 = vpop.f32.mrb[0].mxu0
        %v2914 = vadd.f32 0.0, %v2913
        %v2915 = vpop.f32.mrb[0].mxu0
        %2916 = vmatprep.mubr.f32.mxu0 0.0
        %2917 = vmatmul.mubr.f32.gmra.mrb[0].mxu0 %v1150
        %v2918 = vpop.f32.mrb[0].mxu0
        %v2919 = vadd.f32 0.0, %v2918
        %v2920 = vpop.f32.mrb[0].mxu0
        %2921 = vmatprep.mubr.f32.mxu0 0.0
        %2922 = vmatmul.mubr.f32.gmra.mrb[0].mxu0 %v1152
        %v2923 = vpop.f32.mrb[0].mxu0
        %v2924 = vadd.f32 0.0, %v2923
        %v2925 = vpop.f32.mrb[0].mxu0
        %2926 = vmatprep.mubr.f32.mxu0 0.0
        %2927 = vmatmul.mubr.f32.gmra.mrb[0].mxu0 %v1154
        %v2928 = vpop.f32.mrb[0].mxu0
        %v2929 = vadd.f32 0.0, %v2928
        %v2930 = vpop.f32.mrb[0].mxu0
        %2931 = vmatprep.mubr.f32.mxu0 0.0
        %2932 = vmatmul.mubr.f32.gmra.mrb[0].mxu0 %v1156
        %v2933 = vpop.f32.mrb[0].mxu0
        %v2934 = vadd.f32 0.0, %v2933
        %v2935 = vpop.f32.mrb[0].mxu0
        %2936 = vmatprep.mubr.f32.mxu0 0.0
        %2937 = vmatmul.mubr.f32.gmra.mrb[0].mxu0 %v1158
        %v2938 = vpop.f32.mrb[0].mxu0
        %v2939 = vadd.f32 0.0, %v2938
        %v2940 = vpop.f32.mrb[0].mxu0
        %2941 = vmatprep.mubr.f32.mxu0 0.0
        %2942 = vmatmul.mubr.f32.gmra.mrb[0].mxu0 %v1160
        %v2943 = vpop.f32.mrb[0].mxu0
        %v2944 = vadd.f32 0.0, %v2943
        %v2945 = vpop.f32.mrb[0].mxu0
        %2946 = vmatprep.mubr.f32.mxu0 0.0
        %2947 = vmatmul.mubr.f32.gmra.mrb[0].mxu0 %v1162
        %v2948 = vpop.f32.mrb[0].mxu0
        %v2949 = vadd.f32 0.0, %v2948
        %v2950 = vpop.f32.mrb[0].mxu0
        %2951 = vmatprep.mubr.f32.mxu0 0.0
        %2952 = vmatmul.mubr.f32.gmra.mrb[0].mxu0 %v1164
        %v2953 = vpop.f32.mrb[0].mxu0
        %v2954 = vadd.f32 0.0, %v2953
        %v2955 = vpop.f32.mrb[0].mxu0
        %2956 = vmatprep.mubr.f32.mxu0 0.0
        %2957 = vmatmul.mubr.f32.gmra.mrb[0].mxu0 %v1166
        %v2958 = vpop.f32.mrb[0].mxu0
        %v2959 = vadd.f32 0.0, %v2958
        %v2960 = vpop.f32.mrb[0].mxu0
        %2961 = vmatprep.mubr.f32.mxu0 0.0
        %2962 = vmatmul.mubr.f32.gmra.mrb[0].mxu0 %v1168
        %v2963 = vpop.f32.mrb[0].mxu0
        %v2964 = vadd.f32 0.0, %v2963
        %v2965 = vpop.f32.mrb[0].mxu0
        %2966 = vmatprep.mubr.f32.mxu0 0.0
        %2967 = vmatmul.mubr.f32.gmra.mrb[0].mxu0 %v1170
        %v2968 = vpop.f32.mrb[0].mxu0
        %v2969 = vadd.f32 0.0, %v2968
        %v2970 = vpop.f32.mrb[0].mxu0
        %2971 = vmatprep.mubr.f32.mxu0 0.0
        %2972 = vmatmul.mubr.f32.gmra.mrb[0].mxu0 %v1172
        %v2973 = vpop.f32.mrb[0].mxu0
        %v2974 = vadd.f32 0.0, %v2973
        %v2975 = vpop.f32.mrb[0].mxu0
        %2976 = vmatprep.mubr.f32.mxu0 0.0
        %2977 = vmatmul.mubr.f32.gmra.mrb[0].mxu0 %v1174
        %v2978 = vpop.f32.mrb[0].mxu0
        %v2979 = vadd.f32 0.0, %v2978
        %v2980 = vpop.f32.mrb[0].mxu0
        %2981 = vmatprep.mubr.f32.mxu0 0.0
        %2982 = vmatmul.mubr.f32.gmra.mrb[0].mxu0 %v1176
        %v2983 = vpop.f32.mrb[0].mxu0
        %v2984 = vadd.f32 0.0, %v2983
        %v2985 = vpop.f32.mrb[0].mxu0
        %2986 = vmatprep.mubr.f32.mxu0 0.0
        %2987 = vmatmul.mubr.f32.gmra.mrb[0].mxu0 %v1178
        %v2988 = vpop.f32.mrb[0].mxu0
        %v2989 = vadd.f32 0.0, %v2988
        %v2990 = vpop.f32.mrb[0].mxu0
        %2991 = vmatprep.mubr.f32.mxu0 0.0
        %2992 = vmatmul.mubr.f32.gmra.mrb[0].mxu0 %v1180
        %v2993 = vpop.f32.mrb[0].mxu0
        %v2994 = vadd.f32 0.0, %v2993
        %v2995 = vpop.f32.mrb[0].mxu0
        %2996 = vmatprep.mubr.f32.mxu0 0.0
        %2997 = vmatmul.mubr.f32.gmra.mrb[0].mxu0 %v1182
        %v2998 = vpop.f32.mrb[0].mxu0
        %v2999 = vadd.f32 0.0, %v2998
        %v3000 = vpop.f32.mrb[0].mxu0
        %3001 = vmatprep.mubr.f32.mxu0 0.0
        %3002 = vmatmul.mubr.f32.gmra.mrb[0].mxu0 %v1184
        %v3003 = vpop.f32.mrb[0].mxu0
        %v3004 = vadd.f32 0.0, %v3003
        %v3005 = vpop.f32.mrb[0].mxu0
        %3006 = vmatprep.mubr.f32.mxu0 0.0
        %3007 = vmatmul.mubr.f32.gmra.mrb[0].mxu0 %v1186
        %v3008 = vpop.f32.mrb[0].mxu0
        %v3009 = vadd.f32 0.0, %v3008
        %v3010 = vpop.f32.mrb[0].mxu0
        %3011 = vmatprep.mubr.f32.mxu0 0.0
        %3012 = vmatmul.mubr.f32.gmra.mrb[0].mxu0 %v1188
        %v3013 = vpop.f32.mrb[0].mxu0
        %v3014 = vadd.f32 0.0, %v3013
        %v3015 = vpop.f32.mrb[0].mxu0
        %3016 = vmatprep.mubr.f32.mxu0 0.0
        %3017 = vmatmul.mubr.f32.gmra.mrb[0].mxu0 %v1190
        %v3018 = vpop.f32.mrb[0].mxu0
        %v3019 = vadd.f32 0.0, %v3018
        %v3020 = vpop.f32.mrb[0].mxu0
        %3021 = vmatprep.mubr.f32.mxu0 0.0
        %3022 = vmatmul.mubr.f32.gmra.mrb[0].mxu0 %v1999
        %v3023 = vpop.f32.mrb[0].mxu0
        %v3024 = vadd.f32 0.0, %v3023
        %v3025 = vpop.f32.mrb[0].mxu0
        %3026 = vmatprep.mubr.f32.mxu0 0.0
        %3027 = vmatmul.mubr.f32.gmra.mrb[0].mxu0 %v2001
        %v3028 = vpop.f32.mrb[0].mxu0
        %v3029 = vadd.f32 0.0, %v3028
        %v3030 = vpop.f32.mrb[0].mxu0
        %3031 = vmatprep.mubr.f32.mxu0 0.0
        %3032 = vmatmul.mubr.f32.gmra.mrb[0].mxu0 %v2810
        %v3033 = vpop.f32.mrb[0].mxu0
        %v3034 = vadd.f32 0.0, %v3033
        %v3035 = vpop.f32.mrb[0].mxu0
        %3036 = vmatprep.mubr.f32.mxu0 0.0
        %3037 = vmatmul.mubr.f32.gmra.mrb[0].mxu0 %v2812
        %v3038 = vpop.f32.mrb[0].mxu0
        %v3039 = vadd.f32 0.0, %v3038
        %v3040 = vpop.f32.mrb[0].mxu0
        %3041 = vdwg.mxu0
        %v3042 = vadd.f32 %v2771, %v2884
        %v3043 = vadd.f32 %v2772, %v2889
        %v3044 = vadd.f32 %v2773, %v2894
        %v3045 = vadd.f32 %v2774, %v2899
        %v3046 = vadd.f32 %v2775, %v2904
        %v3047 = vadd.f32 %v2776, %v2909
        %v3048 = vadd.f32 %v2777, %v2914
        %v3049 = vadd.f32 %v2778, %v2919
        %v3050 = vadd.f32 %v2779, %v2924
        %v3051 = vadd.f32 %v2780, %v2929
        %v3052 = vadd.f32 %v2781, %v2934
        %v3053 = vadd.f32 %v2782, %v2939
        %v3054 = vadd.f32 %v2783, %v2944
        %v3055 = vadd.f32 %v2784, %v2949
        %v3056 = vadd.f32 %v2785, %v2954
        %v3057 = vadd.f32 %v2786, %v2959
        %v3058 = vadd.f32 %v2787, %v2964
        %v3059 = vadd.f32 %v2788, %v2969
        %v3060 = vadd.f32 %v2789, %v2974
        %v3061 = vadd.f32 %v2790, %v2979
        %v3062 = vadd.f32 %v2791, %v2984
        %v3063 = vadd.f32 %v2792, %v2989
        %v3064 = vadd.f32 %v2793, %v2994
        %v3065 = vadd.f32 %v2794, %v2999
        %v3066 = vadd.f32 %v2795, %v3004
        %v3067 = vadd.f32 %v2796, %v3009
        %v3068 = vadd.f32 %v2797, %v3014
        %v3069 = vadd.f32 %v2798, %v3019
        %v3070 = vadd.f32 %v2799, %v3024
        %v3071 = vadd.f32 %v2800, %v3029
        %v3072 = vadd.f32 %v2801, %v3034
        %v3073 = vadd.f32 %v2802, %v3039
        %v3074 = vld [vmem:[#allocation7] sm:$0x1]
        %v3076 = vlaneseq
        %v3077 = vshrl.u32 %v3076, 7
        %v3078 = vsub.s32 0, %v3077
        %v3079 = vrot.slane %v3074, %v3078
        %v3081 = vadd.f32 %v3042, %v3079
        %v3082 = vadd.f32 %v3043, %v3079
        %v3083 = vadd.f32 %v3044, %v3079
        %v3084 = vadd.f32 %v3045, %v3079
        %v3085 = vadd.f32 %v3046, %v3079
        %v3086 = vadd.f32 %v3047, %v3079
        %v3087 = vadd.f32 %v3048, %v3079
        %v3088 = vadd.f32 %v3049, %v3079
        %v3089 = vadd.f32 %v3050, %v3079
        %v3090 = vadd.f32 %v3051, %v3079
        %v3091 = vadd.f32 %v3052, %v3079
        %v3092 = vadd.f32 %v3053, %v3079
        %v3093 = vadd.f32 %v3054, %v3079
        %v3094 = vadd.f32 %v3055, %v3079
        %v3095 = vadd.f32 %v3056, %v3079
        %v3096 = vadd.f32 %v3057, %v3079
        %v3097 = vadd.f32 %v3058, %v3079
        %v3098 = vadd.f32 %v3059, %v3079
        %v3099 = vadd.f32 %v3060, %v3079
        %v3100 = vadd.f32 %v3061, %v3079
        %v3101 = vadd.f32 %v3062, %v3079
        %v3102 = vadd.f32 %v3063, %v3079
        %v3103 = vadd.f32 %v3064, %v3079
        %v3104 = vadd.f32 %v3065, %v3079
        %v3105 = vadd.f32 %v3066, %v3079
        %v3106 = vadd.f32 %v3067, %v3079
        %v3107 = vadd.f32 %v3068, %v3079
        %v3108 = vadd.f32 %v3069, %v3079
        %v3109 = vadd.f32 %v3070, %v3079
        %v3110 = vadd.f32 %v3071, %v3079
        %v3111 = vadd.f32 %v3072, %v3079
        %v3112 = vadd.f32 %v3073, %v3079
        %vm3113 = vcmask 261120
        %3114 = vst.msk [vmem:[%s261] sm:$0xff] %vm3113, %v3081
        %3115 = vst.msk [vmem:[%s261 + $0x8] sm:$0xff] %vm3113, %v3082
        %3116 = vst.msk [vmem:[%s261 + $0x10] sm:$0xff] %vm3113, %v3083
        %3117 = vst.msk [vmem:[%s261 + $0x18] sm:$0xff] %vm3113, %v3084
        %3118 = vst.msk [vmem:[%s261 + $0x20] sm:$0xff] %vm3113, %v3085
        %3119 = vst.msk [vmem:[%s261 + $0x28] sm:$0xff] %vm3113, %v3086
        %3120 = vst.msk [vmem:[%s261 + $0x30] sm:$0xff] %vm3113, %v3087
        %3121 = vst.msk [vmem:[%s261 + $0x38] sm:$0xff] %vm3113, %v3088
        %3122 = vst.msk [vmem:[%s261 + $0x40] sm:$0xff] %vm3113, %v3089
        %3123 = vst.msk [vmem:[%s261 + $0x48] sm:$0xff] %vm3113, %v3090
        %3124 = vst.msk [vmem:[%s261 + $0x50] sm:$0xff] %vm3113, %v3091
        %3125 = vst.msk [vmem:[%s261 + $0x58] sm:$0xff] %vm3113, %v3092
        %3126 = vst.msk [vmem:[%s261 + $0x60] sm:$0xff] %vm3113, %v3093
        %3127 = vst.msk [vmem:[%s261 + $0x68] sm:$0xff] %vm3113, %v3094
        %3128 = vst.msk [vmem:[%s261 + $0x70] sm:$0xff] %vm3113, %v3095
        %3129 = vst.msk [vmem:[%s261 + $0x78] sm:$0xff] %vm3113, %v3096
        %3130 = vst.msk [vmem:[%s261 + $0x80] sm:$0xff] %vm3113, %v3097
        %3131 = vst.msk [vmem:[%s261 + $0x88] sm:$0xff] %vm3113, %v3098
        %3132 = vst.msk [vmem:[%s261 + $0x90] sm:$0xff] %vm3113, %v3099
        %3133 = vst.msk [vmem:[%s261 + $0x98] sm:$0xff] %vm3113, %v3100
        %3134 = vst.msk [vmem:[%s261 + $0xa0] sm:$0xff] %vm3113, %v3101
        %3135 = vst.msk [vmem:[%s261 + $0xa8] sm:$0xff] %vm3113, %v3102
        %3136 = vst.msk [vmem:[%s261 + $0xb0] sm:$0xff] %vm3113, %v3103
        %3137 = vst.msk [vmem:[%s261 + $0xb8] sm:$0xff] %vm3113, %v3104
        %3138 = vst.msk [vmem:[%s261 + $0xc0] sm:$0xff] %vm3113, %v3105
        %3139 = vst.msk [vmem:[%s261 + $0xc8] sm:$0xff] %vm3113, %v3106
        %3140 = vst.msk [vmem:[%s261 + $0xd0] sm:$0xff] %vm3113, %v3107
        %3141 = vst.msk [vmem:[%s261 + $0xd8] sm:$0xff] %vm3113, %v3108
        %3142 = vst.msk [vmem:[%s261 + $0xe0] sm:$0xff] %vm3113, %v3109
        %3143 = vst.msk [vmem:[%s261 + $0xe8] sm:$0xff] %vm3113, %v3110
        %3144 = vst.msk [vmem:[%s261 + $0xf0] sm:$0xff] %vm3113, %v3111
        %3145 = vst.msk [vmem:[%s261 + $0xf8] sm:$0xff] %vm3113, %v3112
        %v3146 = vld [vmem:[#allocation9] sm:$0x1]
        %v3147 = vsel %vm3113, %v3081, 0.0
        %v3148 = vsel %vm3113, %v3082, 0.0
        %v3149 = vadd.f32 %v3147, %v3148
        %v3150 = vsel %vm3113, %v3083, 0.0
        %v3151 = vadd.f32 %v3149, %v3150
        %v3152 = vsel %vm3113, %v3084, 0.0
        %v3153 = vadd.f32 %v3151, %v3152
        %v3154 = vsel %vm3113, %v3085, 0.0
        %v3155 = vadd.f32 %v3153, %v3154
        %v3156 = vsel %vm3113, %v3086, 0.0
        %v3157 = vadd.f32 %v3155, %v3156
        %v3158 = vsel %vm3113, %v3087, 0.0
        %v3159 = vadd.f32 %v3157, %v3158
        %v3160 = vsel %vm3113, %v3088, 0.0
        %v3161 = vadd.f32 %v3159, %v3160
        %v3162 = vsel %vm3113, %v3089, 0.0
        %v3163 = vadd.f32 %v3161, %v3162
        %v3164 = vsel %vm3113, %v3090, 0.0
        %v3165 = vadd.f32 %v3163, %v3164
        %v3166 = vsel %vm3113, %v3091, 0.0
        %v3167 = vadd.f32 %v3165, %v3166
        %v3168 = vsel %vm3113, %v3092, 0.0
        %v3169 = vadd.f32 %v3167, %v3168
        %v3170 = vsel %vm3113, %v3093, 0.0
        %v3171 = vadd.f32 %v3169, %v3170
        %v3172 = vsel %vm3113, %v3094, 0.0
        %v3173 = vadd.f32 %v3171, %v3172
        %v3174 = vsel %vm3113, %v3095, 0.0
        %v3175 = vadd.f32 %v3173, %v3174
        %v3176 = vsel %vm3113, %v3096, 0.0
        %v3177 = vadd.f32 %v3175, %v3176
        %v3178 = vsel %vm3113, %v3097, 0.0
        %v3179 = vadd.f32 %v3177, %v3178
        %v3180 = vsel %vm3113, %v3098, 0.0
        %v3181 = vadd.f32 %v3179, %v3180
        %v3182 = vsel %vm3113, %v3099, 0.0
        %v3183 = vadd.f32 %v3181, %v3182
        %v3184 = vsel %vm3113, %v3100, 0.0
        %v3185 = vadd.f32 %v3183, %v3184
        %v3186 = vsel %vm3113, %v3101, 0.0
        %v3187 = vadd.f32 %v3185, %v3186
        %v3188 = vsel %vm3113, %v3102, 0.0
        %v3189 = vadd.f32 %v3187, %v3188
        %v3190 = vsel %vm3113, %v3103, 0.0
        %v3191 = vadd.f32 %v3189, %v3190
        %v3192 = vsel %vm3113, %v3104, 0.0
        %v3193 = vadd.f32 %v3191, %v3192
        %v3194 = vsel %vm3113, %v3105, 0.0
        %v3195 = vadd.f32 %v3193, %v3194
        %v3196 = vsel %vm3113, %v3106, 0.0
        %v3197 = vadd.f32 %v3195, %v3196
        %v3198 = vsel %vm3113, %v3107, 0.0
        %v3199 = vadd.f32 %v3197, %v3198
        %v3200 = vsel %vm3113, %v3108, 0.0
        %v3201 = vadd.f32 %v3199, %v3200
        %v3202 = vsel %vm3113, %v3109, 0.0
        %v3203 = vadd.f32 %v3201, %v3202
        %v3204 = vsel %vm3113, %v3110, 0.0
        %v3205 = vadd.f32 %v3203, %v3204
        %v3206 = vsel %vm3113, %v3111, 0.0
        %v3207 = vadd.f32 %v3205, %v3206
        %v3208 = vsel %vm3113, %v3112, 0.0
        %v3209 = vadd.f32 %v3207, %v3208
        %v3210 = vrot.slane %v3209, 4
        %v3211 = vadd.f32 %v3209, %v3210
        %v3212 = vrot.slane %v3211, 2
        %v3213 = vadd.f32 %v3211, %v3212
        %v3214 = vrot.slane %v3213, 1
        %v3215 = vadd.f32 %v3213, %v3214
        %v3216 = vadd.f32 %v3146, %v3215
        %vm3217 = vcmask 253952
        %3218 = vst.msk [vmem:[#allocation9] sm:$0x1] %vm3217, %v3216
        %v3219 = vld [vmem:[#allocation11] sm:$0x1]
        %v3220 = vmul.f32 %v3081, %v3081
        %v3221 = vmul.f32 %v3082, %v3082
        %v3222 = vmul.f32 %v3083, %v3083
        %v3223 = vmul.f32 %v3084, %v3084
        %v3224 = vmul.f32 %v3085, %v3085
        %v3225 = vmul.f32 %v3086, %v3086
        %v3226 = vmul.f32 %v3087, %v3087
        %v3227 = vmul.f32 %v3088, %v3088
        %v3228 = vmul.f32 %v3089, %v3089
        %v3229 = vmul.f32 %v3090, %v3090
        %v3230 = vmul.f32 %v3091, %v3091
        %v3231 = vmul.f32 %v3092, %v3092
        %v3232 = vmul.f32 %v3093, %v3093
        %v3233 = vmul.f32 %v3094, %v3094
        %v3234 = vmul.f32 %v3095, %v3095
        %v3235 = vmul.f32 %v3096, %v3096
        %v3236 = vmul.f32 %v3097, %v3097
        %v3237 = vmul.f32 %v3098, %v3098
        %v3238 = vmul.f32 %v3099, %v3099
        %v3239 = vmul.f32 %v3100, %v3100
        %v3240 = vmul.f32 %v3101, %v3101
        %v3241 = vmul.f32 %v3102, %v3102
        %v3242 = vmul.f32 %v3103, %v3103
        %v3243 = vmul.f32 %v3104, %v3104
        %v3244 = vmul.f32 %v3105, %v3105
        %v3245 = vmul.f32 %v3106, %v3106
        %v3246 = vmul.f32 %v3107, %v3107
        %v3247 = vmul.f32 %v3108, %v3108
        %v3248 = vmul.f32 %v3109, %v3109
        %v3249 = vmul.f32 %v3110, %v3110
        %v3250 = vmul.f32 %v3111, %v3111
        %v3251 = vmul.f32 %v3112, %v3112
        %v3252 = vsel %vm3113, %v3220, 0.0
        %v3253 = vsel %vm3113, %v3221, 0.0
        %v3254 = vadd.f32 %v3252, %v3253
        %v3255 = vsel %vm3113, %v3222, 0.0
        %v3256 = vadd.f32 %v3254, %v3255
        %v3257 = vsel %vm3113, %v3223, 0.0
        %v3258 = vadd.f32 %v3256, %v3257
        %v3259 = vsel %vm3113, %v3224, 0.0
        %v3260 = vadd.f32 %v3258, %v3259
        %v3261 = vsel %vm3113, %v3225, 0.0
        %v3262 = vadd.f32 %v3260, %v3261
        %v3263 = vsel %vm3113, %v3226, 0.0
        %v3264 = vadd.f32 %v3262, %v3263
        %v3265 = vsel %vm3113, %v3227, 0.0
        %v3266 = vadd.f32 %v3264, %v3265
        %v3267 = vsel %vm3113, %v3228, 0.0
        %v3268 = vadd.f32 %v3266, %v3267
        %v3269 = vsel %vm3113, %v3229, 0.0
        %v3270 = vadd.f32 %v3268, %v3269
        %v3271 = vsel %vm3113, %v3230, 0.0
        %v3272 = vadd.f32 %v3270, %v3271
        %v3273 = vsel %vm3113, %v3231, 0.0
        %v3274 = vadd.f32 %v3272, %v3273
        %v3275 = vsel %vm3113, %v3232, 0.0
        %v3276 = vadd.f32 %v3274, %v3275
        %v3277 = vsel %vm3113, %v3233, 0.0
        %v3278 = vadd.f32 %v3276, %v3277
        %v3279 = vsel %vm3113, %v3234, 0.0
        %v3280 = vadd.f32 %v3278, %v3279
        %v3281 = vsel %vm3113, %v3235, 0.0
        %v3282 = vadd.f32 %v3280, %v3281
        %v3283 = vsel %vm3113, %v3236, 0.0
        %v3284 = vadd.f32 %v3282, %v3283
        %v3285 = vsel %vm3113, %v3237, 0.0
        %v3286 = vadd.f32 %v3284, %v3285
        %v3287 = vsel %vm3113, %v3238, 0.0
        %v3288 = vadd.f32 %v3286, %v3287
        %v3289 = vsel %vm3113, %v3239, 0.0
        %v3290 = vadd.f32 %v3288, %v3289
        %v3291 = vsel %vm3113, %v3240, 0.0
        %v3292 = vadd.f32 %v3290, %v3291
        %v3293 = vsel %vm3113, %v3241, 0.0
        %v3294 = vadd.f32 %v3292, %v3293
        %v3295 = vsel %vm3113, %v3242, 0.0
        %v3296 = vadd.f32 %v3294, %v3295
        %v3297 = vsel %vm3113, %v3243, 0.0
        %v3298 = vadd.f32 %v3296, %v3297
        %v3299 = vsel %vm3113, %v3244, 0.0
        %v3300 = vadd.f32 %v3298, %v3299
        %v3301 = vsel %vm3113, %v3245, 0.0
        %v3302 = vadd.f32 %v3300, %v3301
        %v3303 = vsel %vm3113, %v3246, 0.0
        %v3304 = vadd.f32 %v3302, %v3303
        %v3305 = vsel %vm3113, %v3247, 0.0
        %v3306 = vadd.f32 %v3304, %v3305
        %v3307 = vsel %vm3113, %v3248, 0.0
        %v3308 = vadd.f32 %v3306, %v3307
        %v3309 = vsel %vm3113, %v3249, 0.0
        %v3310 = vadd.f32 %v3308, %v3309
        %v3311 = vsel %vm3113, %v3250, 0.0
        %v3312 = vadd.f32 %v3310, %v3311
        %v3313 = vsel %vm3113, %v3251, 0.0
        %v3314 = vadd.f32 %v3312, %v3313
        %v3315 = vrot.slane %v3314, 4
        %v3316 = vadd.f32 %v3314, %v3315
        %v3317 = vrot.slane %v3316, 2
        %v3318 = vadd.f32 %v3316, %v3317
        %v3319 = vrot.slane %v3318, 1
        %v3320 = vadd.f32 %v3318, %v3319
        %v3321 = vadd.f32 %v3219, %v3320
        %3322 = vst.msk [vmem:[#allocation11] sm:$0x1] %vm3217, %v3321
        %s3323 = sand.u32 %s101, 1
        %s3324 = scalar_lea.sflag [#allocation4], %s3323
        %s3325 = sand.u32 %s101, 1
        %s3326 = smul.addr %s3325, 256
        %s3327 = scalar_lea.vmem [#allocation8], %s3326
        // Predicated region
        $region49: #{conv_block_forward.2} parent=31 // pred_check
          %p3328 = pneg %p111
        $region50: #{conv_block_forward.2} parent=31 // pred_check_branch
          %3330 = sbr.rel (%p3328) target = $region52
        $region51: #{conv_block_forward.2} parent=31 // pred_region
          %s3332 = ssub.s32 4096, 4096
          %3333 = vsyncadd %s3324, %s3332
          %s3334 = smul.addr %s25, 32
          %s3335 = smul.addr %s3334, 128
          %s3336 = scalar_lea.hbm %s3, %s3335
          %s3337 = sshll.u32 %s3327, 4
          %s3338 = int_to_ptr.vmem [resolvable:$true] %s3337
          %3343 = dma.vmem_to_hbm [thread:$0]  %s3338, 4096, %s3336, %s3324, 128, 128, 8
        $region52: #{conv_block_forward.2} parent=31 // pred_fallthru
          _
        // Predicated region
        $region53: #{conv_block_forward.2} parent=31 // pred_check
          %p3344 = pneg %p132
        $region54: #{conv_block_forward.2} parent=31 // pred_check_branch
          %3346 = sbr.rel (%p3344) target = $region56
        $region55: #{conv_block_forward.2} parent=31 // pred_region
          %s3348 = ssub.s32 16, 16
          %3349 = vsyncadd [#allocation10], %s3348
          %s3351 = sshll.u32 [#allocation9], 4
          %s3352 = int_to_ptr.vmem [resolvable:$true] %s3351
          %3354 = dma.vmem_to_hbm [thread:$0]  %s3352, 16, %s4, [#allocation10]
        $region56: #{conv_block_forward.2} parent=31 // pred_fallthru
          _
        // Predicated region
        $region57: #{conv_block_forward.2} parent=31 // pred_check
          %p3355 = pneg %p153
        $region58: #{conv_block_forward.2} parent=31 // pred_check_branch
          %3357 = sbr.rel (%p3355) target = $region60
        $region59: #{conv_block_forward.2} parent=31 // pred_region
          %s3359 = ssub.s32 16, 16
          %3360 = vsyncadd [#allocation10], %s3359
          %s3362 = sshll.u32 [#allocation11], 4
          %s3363 = int_to_ptr.vmem [resolvable:$true] %s3362
          %3365 = dma.vmem_to_hbm [thread:$0]  %s3363, 16, %s5, [#allocation10]
        $region60: #{conv_block_forward.2} parent=31 // pred_fallthru
          _
        // Predicated region
        $region61: #{conv_block_forward.2} parent=31 // pred_check
          %p3366 = pneg %p132
        $region62: #{conv_block_forward.2} parent=31 // pred_check_branch
          %3368 = sbr.rel (%p3366) target = $region64
        $region63: #{conv_block_forward.2} parent=31 // pred_region
          %3369 = dma.done [#allocation10], 16
        $region64: #{conv_block_forward.2} parent=31 // pred_fallthru
          _
        // Predicated region
        $region65: #{conv_block_forward.2} parent=31 // pred_check
          %p3370 = pneg %p153
        $region66: #{conv_block_forward.2} parent=31 // pred_check_branch
          %3372 = sbr.rel (%p3370) target = $region68
        $region67: #{conv_block_forward.2} parent=31 // pred_region
          %3373 = dma.done [#allocation10], 16
        $region68: #{conv_block_forward.2} parent=31 // pred_fallthru
          _
      $region32: #{conv_block_forward.2} parent=5 // pred_fallthru
        _
      %p3374 = scmp.le.s32.totalorder 2, %s20
      // Predicated region
      $region69: #{conv_block_forward.2} parent=5 // pred_check
        %p3375 = pneg %p3374
      $region70: #{conv_block_forward.2} parent=5 // pred_check_branch
        %3377 = sbr.rel (%p3375) target = $region72
      $region71: #{conv_block_forward.2} parent=5 // pred_region
        %s3378 = ssub.s32 %s20, 2
        // Predicated region
        $region73: #{conv_block_forward.2} parent=71 // pred_check
          %p3379 = pneg %p117
        $region74: #{conv_block_forward.2} parent=71 // pred_check_branch
          %3381 = sbr.rel (%p3379) target = $region76
        $region75: #{conv_block_forward.2} parent=71 // pred_region
          %s3382 = sand.u32 %s102, 1
          %s3383 = scalar_lea.sflag [#allocation4], %s3382
          %s3384 = sand.u32 %s102, 1
          %s3385 = smul.addr %s3384, 256
          %s3386 = scalar_lea.vmem [#allocation8], %s3385
          %3387 = dma.done %s3383, 4096
        $region76: #{conv_block_forward.2} parent=71 // pred_fallthru
          _
      $region72: #{conv_block_forward.2} parent=5 // pred_fallthru
        _
    $region6: #{conv_block_forward.2} parent=1 // loop_footer
      %s24 = sadd.s32 1, %s20
    $region7: #{conv_block_forward.2} parent=1 // loop_footer_branch
      %19 = sbr.rel target = $region3
    $region8: #{conv_block_forward.2} parent=1 // loop_exit
      _
    %3388 = vsyncpa [#allocation3], 1
    %s3389 = scalar_lea.sflag [#allocation3], 1
    %3390 = vsyncpa %s3389, 1
    %3391 = vsyncpa [#allocation6], 1
    %3392 = vsyncpa [#allocation4], 1
    %s3393 = scalar_lea.sflag [#allocation4], 1
    %3394 = vsyncpa %s3393, 1
    %3395 = vsyncpa [#allocation10], 1

</llo_original>
